<compile_context>
chip_gen: v5e
topology: v5e:2x2
jax: 0.10.0
libtpu: 0.0.40
codegen_flags: <defaults>
</compile_context>

<pallas_src>
import math
import functools

import jax
import jax.numpy as jnp
from jax.experimental import pallas as pl


# ----------------------------- shared math helpers -----------------------------
def _layernorm(v, g, b):
    mu = jnp.mean(v, axis=-1, keepdims=True)
    var = jnp.mean((v - mu) ** 2, axis=-1, keepdims=True)
    return (v - mu) * jax.lax.rsqrt(var + 1e-5) * g + b


def _gelu_exact(v):
    # matches torch.nn.GELU() (erf-based) -- used by the pure-JAX reference
    return 0.5 * v * (1.0 + jax.lax.erf(v * (1.0 / math.sqrt(2.0))))


def _gelu_tanh(v):
    # tanh-approximate GELU (EUP-friendly); well inside the 1e-2 tolerance
    c = math.sqrt(2.0 / math.pi)
    return 0.5 * v * (1.0 + jnp.tanh(c * (v + 0.044715 * v * v * v)))


def _bf16(v):
    return v.astype(jnp.bfloat16)


# --------------------------------- Pallas kernel --------------------------------
def transformer_kernel(x_ref, ln1g, ln1b, wqkv, bqkv, wph, bp,
                       ln2g, ln2b, w1, b1, w2, b2, lnfg, lnfb, whead,
                       out_ref, *, num_heads, num_layers, batch, seq):
    x = x_ref[...]                            # (B*T, C) f32 -- batch folded into rows
    C = x.shape[-1]
    T = seq
    hd = C // num_heads
    scale = 1.0 / math.sqrt(hd)

    for l in range(num_layers):               # static unroll (L is small)
        # ------------------------------ attention ------------------------------
        h = _layernorm(x, ln1g[l], ln1b[l])
        # fused QKV: one (B*T, C) x (C, 3C) matmul, bf16 operands, f32 accumulate
        qkv = jnp.dot(_bf16(h), wqkv[l], preferred_element_type=jnp.float32) + bqkv[l]
        q = qkv[:, :C]
        k = qkv[:, C:2 * C]
        v = qkv[:, 2 * C:3 * C]

        y_parts = []
        for b in range(batch):                # attention is per sequence (static unroll)
            rows = slice(b * T, (b + 1) * T)
            yb = None
            for hh in range(num_heads):       # static unroll over heads
                cols = slice(hh * hd, (hh + 1) * hd)
                qh = _bf16(q[rows, cols])
                kh = _bf16(k[rows, cols])
                vh = _bf16(v[rows, cols])
                s = jax.lax.dot_general(
                    qh, kh, (((1,), (1,)), ((), ())),
                    preferred_element_type=jnp.float32) * scale          # (T, T)
                s = s - jnp.max(s, axis=-1, keepdims=True)
                e = jnp.exp(s)
                p = e * pl.reciprocal(jnp.sum(e, axis=-1, keepdims=True), approx=True)
                av = jnp.dot(_bf16(p), vh, preferred_element_type=jnp.float32)  # (T, hd)
                # output projection folded per head -> no lane concatenate of heads
                contrib = jnp.dot(_bf16(av), wph[l, hh],
                                  preferred_element_type=jnp.float32)    # (T, C)
                yb = contrib if yb is None else yb + contrib
            y_parts.append(yb)
        y = jnp.concatenate(y_parts, axis=0) + bp[l]                     # (B*T, C)
        x = x + y

        # --------------------------------- MLP ---------------------------------
        h2 = _layernorm(x, ln2g[l], ln2b[l])
        m = jnp.dot(_bf16(h2), w1[l], preferred_element_type=jnp.float32) + b1[l]
        m = _gelu_tanh(m)
        m = jnp.dot(_bf16(m), w2[l], preferred_element_type=jnp.float32) + b2[l]
        x = x + m

    # ---- final LN only on the kept (second) half of each sequence + head proj ----
    keep = [x[b * T + T // 2:(b + 1) * T, :] for b in range(batch)]
    xh = jnp.concatenate(keep, axis=0)                                   # (B*T/2, C)
    xh = _layernorm(xh, lnfg[...], lnfb[...])
    # lane-dense output: whead was zero-padded to 128 columns in the wrapper
    out_ref[...] = jnp.dot(_bf16(xh), whead[...], preferred_element_type=jnp.float32)


def run_transformer(x, p, num_heads):
    B, T, C = x.shape
    V = p["whead"].shape[1]
    L = p["wq"].shape[0]
    hd = C // num_heads
    Vpad = 128 * pl.cdiv(V, 128)                      # lane-dense output width

    # fold batch into rows; attention un-folds per sequence inside the kernel
    x2d = x.reshape(B * T, C)

    # fuse Q/K/V weights, reshape proj weight per head, lane-pad the head weight
    wqkv = jnp.concatenate([p["wq"], p["wk"], p["wv"]], axis=-1)          # (L, C, 3C)
    bqkv = jnp.concatenate([p["bq"], p["bk"], p["bv"]], axis=-1)          # (L, 1, 3C)
    wph = p["wp"].reshape(L, num_heads, hd, C)                            # (L, nh, hd, C)
    whead_p = jnp.pad(p["whead"], ((0, 0), (0, Vpad - V)))                # (C, Vpad)

    bf = lambda a: a.astype(jnp.bfloat16)     # matmul operands in bf16, f32 accumulate
    ins = [p["ln1g"], p["ln1b"], bf(wqkv), bqkv, bf(wph), p["bp"],
           p["ln2g"], p["ln2b"], bf(p["w1"]), p["b1"], bf(p["w2"]), p["b2"],
           p["lnfg"], p["lnfb"], bf(whead_p)]

    kernel = functools.partial(transformer_kernel, num_heads=num_heads,
                               num_layers=L, batch=B, seq=T)

    # single invocation, no grid: all weights (~50 KB bf16) + activations stay
    # resident in VMEM.
    # TODO(synk): if the model is scaled up, stream weights with an 'arbitrary'
    # per-layer grid axis instead of keeping every layer resident in VMEM.
    out = pl.pallas_call(
        kernel,
        out_shape=jax.ShapeDtypeStruct((B * (T // 2), Vpad), jnp.float32),
    )(x2d, *ins)
    return out[:, :V].reshape(B, T // 2, V)


# --------------------------- parameter init (synthetic) --------------------------
def init_params(key, embed_dim, num_heads, num_layers, input_shape, dim_gray, vocab_color):
    S = input_shape[0] * input_shape[1]
    C, L = embed_dim, num_layers
    std = 0.02
    ks = jax.random.split(key, 10)

    def nrm(k, shape):
        return (std * jax.random.normal(k, shape)).astype(jnp.float32)

    p = {}
    p["tok_emb"] = nrm(ks[0], (vocab_color + 1, C))
    p["w_gray"] = nrm(ks[1], (dim_gray, C)); p["b_gray"] = jnp.zeros((C,), jnp.float32)
    p["pos_emb"] = jnp.zeros((1, 2 * S, C), jnp.float32)          # stays zero (as in __init__)
    p["w_cond"] = nrm(ks[2], (3, C)); p["b_cond"] = jnp.zeros((C,), jnp.float32)
    p["cond_emb"] = jnp.zeros((C,), jnp.float32)
    p["ln1g"] = jnp.ones((L, 1, C), jnp.float32); p["ln1b"] = jnp.zeros((L, 1, C), jnp.float32)
    p["ln2g"] = jnp.ones((L, 1, C), jnp.float32); p["ln2b"] = jnp.zeros((L, 1, C), jnp.float32)
    p["wq"] = nrm(ks[3], (L, C, C)); p["bq"] = jnp.zeros((L, 1, C), jnp.float32)
    p["wk"] = nrm(ks[4], (L, C, C)); p["bk"] = jnp.zeros((L, 1, C), jnp.float32)
    p["wv"] = nrm(ks[5], (L, C, C)); p["bv"] = jnp.zeros((L, 1, C), jnp.float32)
    p["wp"] = nrm(ks[6], (L, C, C)); p["bp"] = jnp.zeros((L, 1, C), jnp.float32)
    p["w1"] = nrm(ks[7], (L, C, 4 * C)); p["b1"] = jnp.zeros((L, 1, 4 * C), jnp.float32)
    p["w2"] = nrm(ks[8], (L, 4 * C, C)); p["b2"] = jnp.zeros((L, 1, C), jnp.float32)
    p["lnfg"] = jnp.ones((1, C), jnp.float32); p["lnfb"] = jnp.zeros((1, C), jnp.float32)
    p["whead"] = nrm(ks[9], (C, vocab_color))                      # head has no bias
    return p


# ------------------------------- pure-JAX reference ------------------------------
def ref_transformer(x, p, num_heads):
    B, T, C = x.shape
    L = p["wq"].shape[0]
    nh, hd = num_heads, C // num_heads
    for l in range(L):
        h = _layernorm(x, p["ln1g"][l], p["ln1b"][l])
        q = (h @ p["wq"][l] + p["bq"][l]).reshape(B, T, nh, hd).transpose(0, 2, 1, 3)
        k = (h @ p["wk"][l] + p["bk"][l]).reshape(B, T, nh, hd).transpose(0, 2, 1, 3)
        v = (h @ p["wv"][l] + p["bv"][l]).reshape(B, T, nh, hd).transpose(0, 2, 1, 3)
        att = jnp.einsum("bhtd,bhsd->bhts", q, k) * (1.0 / math.sqrt(hd))
        att = jax.nn.softmax(att, axis=-1)
        y = jnp.einsum("bhts,bhsd->bhtd", att, v).transpose(0, 2, 1, 3).reshape(B, T, C)
        x = x + (y @ p["wp"][l] + p["bp"][l])
        h2 = _layernorm(x, p["ln2g"][l], p["ln2b"][l])
        m = _gelu_exact(h2 @ p["w1"][l] + p["b1"][l]) @ p["w2"][l] + p["b2"][l]
        x = x + m
    x = _layernorm(x, p["lnfg"], p["lnfb"])
    return x[:, T // 2:, :] @ p["whead"]


# ------------------------------- HybridTran forward ------------------------------
def hybrid_tran_forward(p, color, gray, cond=None, cond_indices=None,
                        *, num_heads, use_ref=False):
    # glue (embedding lookup, conditional scatter, concat, pos-emb add) in plain JAX
    h_gray = gray @ p["w_gray"] + p["b_gray"]                     # (B, S, C)
    h_color = p["tok_emb"][color]                                 # (B, H, W, C)
    if cond is not None and cond.shape[0] > 0:
        h_cond = cond @ p["w_cond"] + p["b_cond"]                 # (n, C)
        # data-dependent in-place scatter stays in glue (no clean Pallas equivalent needed)
        for i, (b, r, c) in enumerate(cond_indices):
            h_color = h_color.at[b, r, c, :].set(h_cond[i] + p["cond_emb"])
    B = color.shape[0]
    x = jnp.concatenate([h_gray, h_color.reshape(B, -1, h_color.shape[-1])], axis=1)
    length = x.shape[1]
    x = x + p["pos_emb"][:, :length, :]
    if use_ref:
        return ref_transformer(x, p, num_heads)
    return run_transformer(x, p, num_heads)


if __name__ == "__main__":
    embed_dim, num_heads, num_layers = 32, 4, 2
    input_shape = (4, 4)           # seq_length = 16, total T = 32
    dim_gray, vocab_color = 8, 16
    B = 2

    key = jax.random.PRNGKey(0)
    kp, kc, kg, kq = jax.random.split(key, 4)
    p = init_params(kp, embed_dim, num_heads, num_layers, input_shape, dim_gray, vocab_color)

    S = input_shape[0] * input_shape[1]
    color = jax.random.randint(kc, (B, input_shape[0], input_shape[1]), 0, vocab_color + 1)
    gray = jax.random.normal(kg, (B, S, dim_gray), jnp.float32)
    cond = jax.random.normal(kq, (2, 3), jnp.float32)
    cond_indices = [(0, 1, 2), (1, 3, 0)]

    logits = hybrid_tran_forward(p, color, gray, cond, cond_indices, num_heads=num_heads)
    logits = jax.block_until_ready(logits)

    ref = hybrid_tran_forward(p, color, gray, cond, cond_indices,
                              num_heads=num_heads, use_ref=True)
    assert logits.shape == (B, S, vocab_color)
    err = float(jnp.max(jnp.abs(logits - ref)))
    assert jnp.allclose(logits, ref, atol=1e-2, rtol=1e-2), f"max abs err {err}"
    print("KERNEL_OK")
</pallas_src>

<mosaic_0001>
module attributes {stable_mosaic.version = 11 : i64} {
  func.func @transformer_kernel(%arg0: memref<64x32xf32, #tpu.memory_space<vmem>>, %arg1: memref<2x1x32xf32, #tpu.memory_space<vmem>>, %arg2: memref<2x1x32xf32, #tpu.memory_space<vmem>>, %arg3: memref<2x32x96xbf16, #tpu.memory_space<vmem>>, %arg4: memref<2x1x96xf32, #tpu.memory_space<vmem>>, %arg5: memref<2x4x8x32xbf16, #tpu.memory_space<vmem>>, %arg6: memref<2x1x32xf32, #tpu.memory_space<vmem>>, %arg7: memref<2x1x32xf32, #tpu.memory_space<vmem>>, %arg8: memref<2x1x32xf32, #tpu.memory_space<vmem>>, %arg9: memref<2x32x128xbf16, #tpu.memory_space<vmem>>, %arg10: memref<2x1x128xf32, #tpu.memory_space<vmem>>, %arg11: memref<2x128x32xbf16, #tpu.memory_space<vmem>>, %arg12: memref<2x1x32xf32, #tpu.memory_space<vmem>>, %arg13: memref<1x32xf32, #tpu.memory_space<vmem>>, %arg14: memref<1x32xf32, #tpu.memory_space<vmem>>, %arg15: memref<32x128xbf16, #tpu.memory_space<vmem>>, %arg16: memref<32x128xf32, #tpu.memory_space<vmem>>) attributes {dimension_semantics = [], scalar_prefetch = 0 : i64, scratch_operands = 0 : i64, tpu.core_type = #tpu.core_type<tc>} {
    %c0 = arith.constant 0 : index
    %c0_0 = arith.constant 0 : index
    %0 = vector.load %arg0[%c0, %c0_0] : memref<64x32xf32, #tpu.memory_space<vmem>>, vector<64x32xf32>
    %c0_1 = arith.constant 0 : index
    %c0_2 = arith.constant 0 : index
    %c0_3 = arith.constant 0 : index
    %1 = vector.load %arg1[%c0_1, %c0_2, %c0_3] : memref<2x1x32xf32, #tpu.memory_space<vmem>>, vector<1x1x32xf32>
    %2 = vector.shape_cast %1 : vector<1x1x32xf32> to vector<1x32xf32>
    %c0_4 = arith.constant 0 : index
    %c0_5 = arith.constant 0 : index
    %c0_6 = arith.constant 0 : index
    %3 = vector.load %arg2[%c0_4, %c0_5, %c0_6] : memref<2x1x32xf32, #tpu.memory_space<vmem>>, vector<1x1x32xf32>
    %4 = vector.shape_cast %3 : vector<1x1x32xf32> to vector<1x32xf32>
    %cst = arith.constant dense<0.000000e+00> : vector<64xf32>
    %5 = vector.multi_reduction <add>, %0, %cst [1] : vector<64x32xf32> to vector<64xf32>
    %6 = vector.shape_cast %5 : vector<64xf32> to vector<64x1xf32>
    %cst_7 = arith.constant 3.200000e+01 : f32
    %7 = vector.broadcast %cst_7 : f32 to vector<64x1xf32>
    %8 = arith.divf %6, %7 : vector<64x1xf32>
    %9 = vector.broadcast %8 : vector<64x1xf32> to vector<64x32xf32>
    %10 = arith.subf %0, %9 : vector<64x32xf32>
    %11 = arith.mulf %10, %10 : vector<64x32xf32>
    %cst_8 = arith.constant dense<0.000000e+00> : vector<64xf32>
    %12 = vector.multi_reduction <add>, %11, %cst_8 [1] : vector<64x32xf32> to vector<64xf32>
    %13 = vector.shape_cast %12 : vector<64xf32> to vector<64x1xf32>
    %cst_9 = arith.constant 3.200000e+01 : f32
    %14 = vector.broadcast %cst_9 : f32 to vector<64x1xf32>
    %15 = arith.divf %13, %14 : vector<64x1xf32>
    %16 = vector.broadcast %8 : vector<64x1xf32> to vector<64x32xf32>
    %17 = arith.subf %0, %16 : vector<64x32xf32>
    %cst_10 = arith.constant 9.99999974E-6 : f32
    %18 = vector.broadcast %cst_10 : f32 to vector<64x1xf32>
    %19 = arith.addf %15, %18 : vector<64x1xf32>
    %20 = math.rsqrt %19 : vector<64x1xf32>
    %21 = vector.broadcast %20 : vector<64x1xf32> to vector<64x32xf32>
    %22 = arith.mulf %17, %21 : vector<64x32xf32>
    %23 = vector.broadcast %2 : vector<1x32xf32> to vector<64x32xf32>
    %24 = arith.mulf %22, %23 : vector<64x32xf32>
    %25 = vector.broadcast %4 : vector<1x32xf32> to vector<64x32xf32>
    %26 = arith.addf %24, %25 : vector<64x32xf32>
    %27 = arith.truncf %26 : vector<64x32xf32> to vector<64x32xbf16>
    %c0_11 = arith.constant 0 : index
    %c0_12 = arith.constant 0 : index
    %c0_13 = arith.constant 0 : index
    %28 = vector.load %arg3[%c0_11, %c0_12, %c0_13] : memref<2x32x96xbf16, #tpu.memory_space<vmem>>, vector<1x32x96xbf16>
    %29 = vector.shape_cast %28 : vector<1x32x96xbf16> to vector<32x96xbf16>
    %cst_14 = arith.constant dense<0.000000e+00> : vector<64x96xf32>
    %30 = tpu.matmul %27, %29, %cst_14 {dimension_numbers = #tpu.dot_dimension_numbers<[1], [0], [0], [1], [0, 0, 1, 1], [], []>} : vector<64x32xbf16>, vector<32x96xbf16>, vector<64x96xf32> -> vector<64x96xf32>
    %c0_15 = arith.constant 0 : index
    %c0_16 = arith.constant 0 : index
    %c0_17 = arith.constant 0 : index
    %31 = vector.load %arg4[%c0_15, %c0_16, %c0_17] : memref<2x1x96xf32, #tpu.memory_space<vmem>>, vector<1x1x96xf32>
    %32 = vector.shape_cast %31 : vector<1x1x96xf32> to vector<1x96xf32>
    %33 = vector.broadcast %32 : vector<1x96xf32> to vector<64x96xf32>
    %34 = arith.addf %30, %33 : vector<64x96xf32>
    %35 = vector.extract_strided_slice %34 {offsets = [0, 0], sizes = [64, 32], strides = [1, 1]} : vector<64x96xf32> to vector<64x32xf32>
    %36 = vector.extract_strided_slice %34 {offsets = [0, 32], sizes = [64, 32], strides = [1, 1]} : vector<64x96xf32> to vector<64x32xf32>
    %37 = vector.extract_strided_slice %34 {offsets = [0, 64], sizes = [64, 32], strides = [1, 1]} : vector<64x96xf32> to vector<64x32xf32>
    %38 = vector.extract_strided_slice %35 {offsets = [0, 0], sizes = [32, 8], strides = [1, 1]} : vector<64x32xf32> to vector<32x8xf32>
    %39 = arith.truncf %38 : vector<32x8xf32> to vector<32x8xbf16>
    %40 = vector.extract_strided_slice %36 {offsets = [0, 0], sizes = [32, 8], strides = [1, 1]} : vector<64x32xf32> to vector<32x8xf32>
    %41 = arith.truncf %40 : vector<32x8xf32> to vector<32x8xbf16>
    %42 = vector.extract_strided_slice %37 {offsets = [0, 0], sizes = [32, 8], strides = [1, 1]} : vector<64x32xf32> to vector<32x8xf32>
    %43 = arith.truncf %42 : vector<32x8xf32> to vector<32x8xbf16>
    %cst_18 = arith.constant dense<0.000000e+00> : vector<32x32xf32>
    %44 = tpu.matmul %39, %41, %cst_18 {dimension_numbers = #tpu.dot_dimension_numbers<[1], [1], [0], [0], [0, 0, 1, 0], [], []>} : vector<32x8xbf16>, vector<32x8xbf16>, vector<32x32xf32> -> vector<32x32xf32>
    %cst_19 = arith.constant 0.353553385 : f32
    %45 = vector.broadcast %cst_19 : f32 to vector<32x32xf32>
    %46 = arith.mulf %44, %45 : vector<32x32xf32>
    %cst_20 = arith.constant dense<0xFF800000> : vector<32xf32>
    %47 = vector.multi_reduction <maximumf>, %46, %cst_20 [1] : vector<32x32xf32> to vector<32xf32>
    %48 = vector.shape_cast %47 : vector<32xf32> to vector<32x1xf32>
    %49 = vector.broadcast %48 : vector<32x1xf32> to vector<32x32xf32>
    %50 = arith.subf %46, %49 : vector<32x32xf32>
    %51 = math.exp %50 : vector<32x32xf32>
    %cst_21 = arith.constant dense<0.000000e+00> : vector<32xf32>
    %52 = vector.multi_reduction <add>, %51, %cst_21 [1] : vector<32x32xf32> to vector<32xf32>
    %53 = vector.shape_cast %52 : vector<32xf32> to vector<32x1xf32>
    %54 = tpu.reciprocal %53 {approx = true} : vector<32x1xf32> -> vector<32x1xf32>
    %55 = vector.broadcast %54 : vector<32x1xf32> to vector<32x32xf32>
    %56 = arith.mulf %51, %55 : vector<32x32xf32>
    %57 = arith.truncf %56 : vector<32x32xf32> to vector<32x32xbf16>
    %cst_22 = arith.constant dense<0.000000e+00> : vector<32x8xf32>
    %58 = tpu.matmul %57, %43, %cst_22 {dimension_numbers = #tpu.dot_dimension_numbers<[1], [0], [0], [1], [0, 0, 1, 1], [], []>} : vector<32x32xbf16>, vector<32x8xbf16>, vector<32x8xf32> -> vector<32x8xf32>
    %59 = arith.truncf %58 : vector<32x8xf32> to vector<32x8xbf16>
    %c0_23 = arith.constant 0 : index
    %c0_24 = arith.constant 0 : index
    %c0_25 = arith.constant 0 : index
    %c0_26 = arith.constant 0 : index
    %60 = vector.load %arg5[%c0_23, %c0_24, %c0_25, %c0_26] : memref<2x4x8x32xbf16, #tpu.memory_space<vmem>>, vector<1x1x8x32xbf16>
    %61 = vector.shape_cast %60 : vector<1x1x8x32xbf16> to vector<8x32xbf16>
    %cst_27 = arith.constant dense<0.000000e+00> : vector<32x32xf32>
    %62 = tpu.matmul %59, %61, %cst_27 {dimension_numbers = #tpu.dot_dimension_numbers<[1], [0], [0], [1], [0, 0, 1, 1], [], []>} : vector<32x8xbf16>, vector<8x32xbf16>, vector<32x32xf32> -> vector<32x32xf32>
    %63 = vector.extract_strided_slice %35 {offsets = [0, 8], sizes = [32, 8], strides = [1, 1]} : vector<64x32xf32> to vector<32x8xf32>
    %64 = arith.truncf %63 : vector<32x8xf32> to vector<32x8xbf16>
    %65 = vector.extract_strided_slice %36 {offsets = [0, 8], sizes = [32, 8], strides = [1, 1]} : vector<64x32xf32> to vector<32x8xf32>
    %66 = arith.truncf %65 : vector<32x8xf32> to vector<32x8xbf16>
    %67 = vector.extract_strided_slice %37 {offsets = [0, 8], sizes = [32, 8], strides = [1, 1]} : vector<64x32xf32> to vector<32x8xf32>
    %68 = arith.truncf %67 : vector<32x8xf32> to vector<32x8xbf16>
    %cst_28 = arith.constant dense<0.000000e+00> : vector<32x32xf32>
    %69 = tpu.matmul %64, %66, %cst_28 {dimension_numbers = #tpu.dot_dimension_numbers<[1], [1], [0], [0], [0, 0, 1, 0], [], []>} : vector<32x8xbf16>, vector<32x8xbf16>, vector<32x32xf32> -> vector<32x32xf32>
    %cst_29 = arith.constant 0.353553385 : f32
    %70 = vector.broadcast %cst_29 : f32 to vector<32x32xf32>
    %71 = arith.mulf %69, %70 : vector<32x32xf32>
    %cst_30 = arith.constant dense<0xFF800000> : vector<32xf32>
    %72 = vector.multi_reduction <maximumf>, %71, %cst_30 [1] : vector<32x32xf32> to vector<32xf32>
    %73 = vector.shape_cast %72 : vector<32xf32> to vector<32x1xf32>
    %74 = vector.broadcast %73 : vector<32x1xf32> to vector<32x32xf32>
    %75 = arith.subf %71, %74 : vector<32x32xf32>
    %76 = math.exp %75 : vector<32x32xf32>
    %cst_31 = arith.constant dense<0.000000e+00> : vector<32xf32>
    %77 = vector.multi_reduction <add>, %76, %cst_31 [1] : vector<32x32xf32> to vector<32xf32>
    %78 = vector.shape_cast %77 : vector<32xf32> to vector<32x1xf32>
    %79 = tpu.reciprocal %78 {approx = true} : vector<32x1xf32> -> vector<32x1xf32>
    %80 = vector.broadcast %79 : vector<32x1xf32> to vector<32x32xf32>
    %81 = arith.mulf %76, %80 : vector<32x32xf32>
    %82 = arith.truncf %81 : vector<32x32xf32> to vector<32x32xbf16>
    %cst_32 = arith.constant dense<0.000000e+00> : vector<32x8xf32>
    %83 = tpu.matmul %82, %68, %cst_32 {dimension_numbers = #tpu.dot_dimension_numbers<[1], [0], [0], [1], [0, 0, 1, 1], [], []>} : vector<32x32xbf16>, vector<32x8xbf16>, vector<32x8xf32> -> vector<32x8xf32>
    %84 = arith.truncf %83 : vector<32x8xf32> to vector<32x8xbf16>
    %c0_33 = arith.constant 0 : index
    %c1 = arith.constant 1 : index
    %c0_34 = arith.constant 0 : index
    %c0_35 = arith.constant 0 : index
    %85 = vector.load %arg5[%c0_33, %c1, %c0_34, %c0_35] : memref<2x4x8x32xbf16, #tpu.memory_space<vmem>>, vector<1x1x8x32xbf16>
    %86 = vector.shape_cast %85 : vector<1x1x8x32xbf16> to vector<8x32xbf16>
    %cst_36 = arith.constant dense<0.000000e+00> : vector<32x32xf32>
    %87 = tpu.matmul %84, %86, %cst_36 {dimension_numbers = #tpu.dot_dimension_numbers<[1], [0], [0], [1], [0, 0, 1, 1], [], []>} : vector<32x8xbf16>, vector<8x32xbf16>, vector<32x32xf32> -> vector<32x32xf32>
    %88 = arith.addf %62, %87 : vector<32x32xf32>
    %89 = vector.extract_strided_slice %35 {offsets = [0, 16], sizes = [32, 8], strides = [1, 1]} : vector<64x32xf32> to vector<32x8xf32>
    %90 = arith.truncf %89 : vector<32x8xf32> to vector<32x8xbf16>
    %91 = vector.extract_strided_slice %36 {offsets = [0, 16], sizes = [32, 8], strides = [1, 1]} : vector<64x32xf32> to vector<32x8xf32>
    %92 = arith.truncf %91 : vector<32x8xf32> to vector<32x8xbf16>
    %93 = vector.extract_strided_slice %37 {offsets = [0, 16], sizes = [32, 8], strides = [1, 1]} : vector<64x32xf32> to vector<32x8xf32>
    %94 = arith.truncf %93 : vector<32x8xf32> to vector<32x8xbf16>
    %cst_37 = arith.constant dense<0.000000e+00> : vector<32x32xf32>
    %95 = tpu.matmul %90, %92, %cst_37 {dimension_numbers = #tpu.dot_dimension_numbers<[1], [1], [0], [0], [0, 0, 1, 0], [], []>} : vector<32x8xbf16>, vector<32x8xbf16>, vector<32x32xf32> -> vector<32x32xf32>
    %cst_38 = arith.constant 0.353553385 : f32
    %96 = vector.broadcast %cst_38 : f32 to vector<32x32xf32>
    %97 = arith.mulf %95, %96 : vector<32x32xf32>
    %cst_39 = arith.constant dense<0xFF800000> : vector<32xf32>
    %98 = vector.multi_reduction <maximumf>, %97, %cst_39 [1] : vector<32x32xf32> to vector<32xf32>
    %99 = vector.shape_cast %98 : vector<32xf32> to vector<32x1xf32>
    %100 = vector.broadcast %99 : vector<32x1xf32> to vector<32x32xf32>
    %101 = arith.subf %97, %100 : vector<32x32xf32>
    %102 = math.exp %101 : vector<32x32xf32>
    %cst_40 = arith.constant dense<0.000000e+00> : vector<32xf32>
    %103 = vector.multi_reduction <add>, %102, %cst_40 [1] : vector<32x32xf32> to vector<32xf32>
    %104 = vector.shape_cast %103 : vector<32xf32> to vector<32x1xf32>
    %105 = tpu.reciprocal %104 {approx = true} : vector<32x1xf32> -> vector<32x1xf32>
    %106 = vector.broadcast %105 : vector<32x1xf32> to vector<32x32xf32>
    %107 = arith.mulf %102, %106 : vector<32x32xf32>
    %108 = arith.truncf %107 : vector<32x32xf32> to vector<32x32xbf16>
    %cst_41 = arith.constant dense<0.000000e+00> : vector<32x8xf32>
    %109 = tpu.matmul %108, %94, %cst_41 {dimension_numbers = #tpu.dot_dimension_numbers<[1], [0], [0], [1], [0, 0, 1, 1], [], []>} : vector<32x32xbf16>, vector<32x8xbf16>, vector<32x8xf32> -> vector<32x8xf32>
    %110 = arith.truncf %109 : vector<32x8xf32> to vector<32x8xbf16>
    %c0_42 = arith.constant 0 : index
    %c2 = arith.constant 2 : index
    %c0_43 = arith.constant 0 : index
    %c0_44 = arith.constant 0 : index
    %111 = vector.load %arg5[%c0_42, %c2, %c0_43, %c0_44] : memref<2x4x8x32xbf16, #tpu.memory_space<vmem>>, vector<1x1x8x32xbf16>
    %112 = vector.shape_cast %111 : vector<1x1x8x32xbf16> to vector<8x32xbf16>
    %cst_45 = arith.constant dense<0.000000e+00> : vector<32x32xf32>
    %113 = tpu.matmul %110, %112, %cst_45 {dimension_numbers = #tpu.dot_dimension_numbers<[1], [0], [0], [1], [0, 0, 1, 1], [], []>} : vector<32x8xbf16>, vector<8x32xbf16>, vector<32x32xf32> -> vector<32x32xf32>
    %114 = arith.addf %88, %113 : vector<32x32xf32>
    %115 = vector.extract_strided_slice %35 {offsets = [0, 24], sizes = [32, 8], strides = [1, 1]} : vector<64x32xf32> to vector<32x8xf32>
    %116 = arith.truncf %115 : vector<32x8xf32> to vector<32x8xbf16>
    %117 = vector.extract_strided_slice %36 {offsets = [0, 24], sizes = [32, 8], strides = [1, 1]} : vector<64x32xf32> to vector<32x8xf32>
    %118 = arith.truncf %117 : vector<32x8xf32> to vector<32x8xbf16>
    %119 = vector.extract_strided_slice %37 {offsets = [0, 24], sizes = [32, 8], strides = [1, 1]} : vector<64x32xf32> to vector<32x8xf32>
    %120 = arith.truncf %119 : vector<32x8xf32> to vector<32x8xbf16>
    %cst_46 = arith.constant dense<0.000000e+00> : vector<32x32xf32>
    %121 = tpu.matmul %116, %118, %cst_46 {dimension_numbers = #tpu.dot_dimension_numbers<[1], [1], [0], [0], [0, 0, 1, 0], [], []>} : vector<32x8xbf16>, vector<32x8xbf16>, vector<32x32xf32> -> vector<32x32xf32>
    %cst_47 = arith.constant 0.353553385 : f32
    %122 = vector.broadcast %cst_47 : f32 to vector<32x32xf32>
    %123 = arith.mulf %121, %122 : vector<32x32xf32>
    %cst_48 = arith.constant dense<0xFF800000> : vector<32xf32>
    %124 = vector.multi_reduction <maximumf>, %123, %cst_48 [1] : vector<32x32xf32> to vector<32xf32>
    %125 = vector.shape_cast %124 : vector<32xf32> to vector<32x1xf32>
    %126 = vector.broadcast %125 : vector<32x1xf32> to vector<32x32xf32>
    %127 = arith.subf %123, %126 : vector<32x32xf32>
    %128 = math.exp %127 : vector<32x32xf32>
    %cst_49 = arith.constant dense<0.000000e+00> : vector<32xf32>
    %129 = vector.multi_reduction <add>, %128, %cst_49 [1] : vector<32x32xf32> to vector<32xf32>
    %130 = vector.shape_cast %129 : vector<32xf32> to vector<32x1xf32>
    %131 = tpu.reciprocal %130 {approx = true} : vector<32x1xf32> -> vector<32x1xf32>
    %132 = vector.broadcast %131 : vector<32x1xf32> to vector<32x32xf32>
    %133 = arith.mulf %128, %132 : vector<32x32xf32>
    %134 = arith.truncf %133 : vector<32x32xf32> to vector<32x32xbf16>
    %cst_50 = arith.constant dense<0.000000e+00> : vector<32x8xf32>
    %135 = tpu.matmul %134, %120, %cst_50 {dimension_numbers = #tpu.dot_dimension_numbers<[1], [0], [0], [1], [0, 0, 1, 1], [], []>} : vector<32x32xbf16>, vector<32x8xbf16>, vector<32x8xf32> -> vector<32x8xf32>
    %136 = arith.truncf %135 : vector<32x8xf32> to vector<32x8xbf16>
    %c0_51 = arith.constant 0 : index
    %c3 = arith.constant 3 : index
    %c0_52 = arith.constant 0 : index
    %c0_53 = arith.constant 0 : index
    %137 = vector.load %arg5[%c0_51, %c3, %c0_52, %c0_53] : memref<2x4x8x32xbf16, #tpu.memory_space<vmem>>, vector<1x1x8x32xbf16>
    %138 = vector.shape_cast %137 : vector<1x1x8x32xbf16> to vector<8x32xbf16>
    %cst_54 = arith.constant dense<0.000000e+00> : vector<32x32xf32>
    %139 = tpu.matmul %136, %138, %cst_54 {dimension_numbers = #tpu.dot_dimension_numbers<[1], [0], [0], [1], [0, 0, 1, 1], [], []>} : vector<32x8xbf16>, vector<8x32xbf16>, vector<32x32xf32> -> vector<32x32xf32>
    %140 = arith.addf %114, %139 : vector<32x32xf32>
    %141 = vector.extract_strided_slice %35 {offsets = [32, 0], sizes = [32, 8], strides = [1, 1]} : vector<64x32xf32> to vector<32x8xf32>
    %142 = arith.truncf %141 : vector<32x8xf32> to vector<32x8xbf16>
    %143 = vector.extract_strided_slice %36 {offsets = [32, 0], sizes = [32, 8], strides = [1, 1]} : vector<64x32xf32> to vector<32x8xf32>
    %144 = arith.truncf %143 : vector<32x8xf32> to vector<32x8xbf16>
    %145 = vector.extract_strided_slice %37 {offsets = [32, 0], sizes = [32, 8], strides = [1, 1]} : vector<64x32xf32> to vector<32x8xf32>
    %146 = arith.truncf %145 : vector<32x8xf32> to vector<32x8xbf16>
    %cst_55 = arith.constant dense<0.000000e+00> : vector<32x32xf32>
    %147 = tpu.matmul %142, %144, %cst_55 {dimension_numbers = #tpu.dot_dimension_numbers<[1], [1], [0], [0], [0, 0, 1, 0], [], []>} : vector<32x8xbf16>, vector<32x8xbf16>, vector<32x32xf32> -> vector<32x32xf32>
    %cst_56 = arith.constant 0.353553385 : f32
    %148 = vector.broadcast %cst_56 : f32 to vector<32x32xf32>
    %149 = arith.mulf %147, %148 : vector<32x32xf32>
    %cst_57 = arith.constant dense<0xFF800000> : vector<32xf32>
    %150 = vector.multi_reduction <maximumf>, %149, %cst_57 [1] : vector<32x32xf32> to vector<32xf32>
    %151 = vector.shape_cast %150 : vector<32xf32> to vector<32x1xf32>
    %152 = vector.broadcast %151 : vector<32x1xf32> to vector<32x32xf32>
    %153 = arith.subf %149, %152 : vector<32x32xf32>
    %154 = math.exp %153 : vector<32x32xf32>
    %cst_58 = arith.constant dense<0.000000e+00> : vector<32xf32>
    %155 = vector.multi_reduction <add>, %154, %cst_58 [1] : vector<32x32xf32> to vector<32xf32>
    %156 = vector.shape_cast %155 : vector<32xf32> to vector<32x1xf32>
    %157 = tpu.reciprocal %156 {approx = true} : vector<32x1xf32> -> vector<32x1xf32>
    %158 = vector.broadcast %157 : vector<32x1xf32> to vector<32x32xf32>
    %159 = arith.mulf %154, %158 : vector<32x32xf32>
    %160 = arith.truncf %159 : vector<32x32xf32> to vector<32x32xbf16>
    %cst_59 = arith.constant dense<0.000000e+00> : vector<32x8xf32>
    %161 = tpu.matmul %160, %146, %cst_59 {dimension_numbers = #tpu.dot_dimension_numbers<[1], [0], [0], [1], [0, 0, 1, 1], [], []>} : vector<32x32xbf16>, vector<32x8xbf16>, vector<32x8xf32> -> vector<32x8xf32>
    %162 = arith.truncf %161 : vector<32x8xf32> to vector<32x8xbf16>
    %c0_60 = arith.constant 0 : index
    %c0_61 = arith.constant 0 : index
    %c0_62 = arith.constant 0 : index
    %c0_63 = arith.constant 0 : index
    %163 = vector.load %arg5[%c0_60, %c0_61, %c0_62, %c0_63] : memref<2x4x8x32xbf16, #tpu.memory_space<vmem>>, vector<1x1x8x32xbf16>
    %164 = vector.shape_cast %163 : vector<1x1x8x32xbf16> to vector<8x32xbf16>
    %cst_64 = arith.constant dense<0.000000e+00> : vector<32x32xf32>
    %165 = tpu.matmul %162, %164, %cst_64 {dimension_numbers = #tpu.dot_dimension_numbers<[1], [0], [0], [1], [0, 0, 1, 1], [], []>} : vector<32x8xbf16>, vector<8x32xbf16>, vector<32x32xf32> -> vector<32x32xf32>
    %166 = vector.extract_strided_slice %35 {offsets = [32, 8], sizes = [32, 8], strides = [1, 1]} : vector<64x32xf32> to vector<32x8xf32>
    %167 = arith.truncf %166 : vector<32x8xf32> to vector<32x8xbf16>
    %168 = vector.extract_strided_slice %36 {offsets = [32, 8], sizes = [32, 8], strides = [1, 1]} : vector<64x32xf32> to vector<32x8xf32>
    %169 = arith.truncf %168 : vector<32x8xf32> to vector<32x8xbf16>
    %170 = vector.extract_strided_slice %37 {offsets = [32, 8], sizes = [32, 8], strides = [1, 1]} : vector<64x32xf32> to vector<32x8xf32>
    %171 = arith.truncf %170 : vector<32x8xf32> to vector<32x8xbf16>
    %cst_65 = arith.constant dense<0.000000e+00> : vector<32x32xf32>
    %172 = tpu.matmul %167, %169, %cst_65 {dimension_numbers = #tpu.dot_dimension_numbers<[1], [1], [0], [0], [0, 0, 1, 0], [], []>} : vector<32x8xbf16>, vector<32x8xbf16>, vector<32x32xf32> -> vector<32x32xf32>
    %cst_66 = arith.constant 0.353553385 : f32
    %173 = vector.broadcast %cst_66 : f32 to vector<32x32xf32>
    %174 = arith.mulf %172, %173 : vector<32x32xf32>
    %cst_67 = arith.constant dense<0xFF800000> : vector<32xf32>
    %175 = vector.multi_reduction <maximumf>, %174, %cst_67 [1] : vector<32x32xf32> to vector<32xf32>
    %176 = vector.shape_cast %175 : vector<32xf32> to vector<32x1xf32>
    %177 = vector.broadcast %176 : vector<32x1xf32> to vector<32x32xf32>
    %178 = arith.subf %174, %177 : vector<32x32xf32>
    %179 = math.exp %178 : vector<32x32xf32>
    %cst_68 = arith.constant dense<0.000000e+00> : vector<32xf32>
    %180 = vector.multi_reduction <add>, %179, %cst_68 [1] : vector<32x32xf32> to vector<32xf32>
    %181 = vector.shape_cast %180 : vector<32xf32> to vector<32x1xf32>
    %182 = tpu.reciprocal %181 {approx = true} : vector<32x1xf32> -> vector<32x1xf32>
    %183 = vector.broadcast %182 : vector<32x1xf32> to vector<32x32xf32>
    %184 = arith.mulf %179, %183 : vector<32x32xf32>
    %185 = arith.truncf %184 : vector<32x32xf32> to vector<32x32xbf16>
    %cst_69 = arith.constant dense<0.000000e+00> : vector<32x8xf32>
    %186 = tpu.matmul %185, %171, %cst_69 {dimension_numbers = #tpu.dot_dimension_numbers<[1], [0], [0], [1], [0, 0, 1, 1], [], []>} : vector<32x32xbf16>, vector<32x8xbf16>, vector<32x8xf32> -> vector<32x8xf32>
    %187 = arith.truncf %186 : vector<32x8xf32> to vector<32x8xbf16>
    %c0_70 = arith.constant 0 : index
    %c1_71 = arith.constant 1 : index
    %c0_72 = arith.constant 0 : index
    %c0_73 = arith.constant 0 : index
    %188 = vector.load %arg5[%c0_70, %c1_71, %c0_72, %c0_73] : memref<2x4x8x32xbf16, #tpu.memory_space<vmem>>, vector<1x1x8x32xbf16>
    %189 = vector.shape_cast %188 : vector<1x1x8x32xbf16> to vector<8x32xbf16>
    %cst_74 = arith.constant dense<0.000000e+00> : vector<32x32xf32>
    %190 = tpu.matmul %187, %189, %cst_74 {dimension_numbers = #tpu.dot_dimension_numbers<[1], [0], [0], [1], [0, 0, 1, 1], [], []>} : vector<32x8xbf16>, vector<8x32xbf16>, vector<32x32xf32> -> vector<32x32xf32>
    %191 = arith.addf %165, %190 : vector<32x32xf32>
    %192 = vector.extract_strided_slice %35 {offsets = [32, 16], sizes = [32, 8], strides = [1, 1]} : vector<64x32xf32> to vector<32x8xf32>
    %193 = arith.truncf %192 : vector<32x8xf32> to vector<32x8xbf16>
    %194 = vector.extract_strided_slice %36 {offsets = [32, 16], sizes = [32, 8], strides = [1, 1]} : vector<64x32xf32> to vector<32x8xf32>
    %195 = arith.truncf %194 : vector<32x8xf32> to vector<32x8xbf16>
    %196 = vector.extract_strided_slice %37 {offsets = [32, 16], sizes = [32, 8], strides = [1, 1]} : vector<64x32xf32> to vector<32x8xf32>
    %197 = arith.truncf %196 : vector<32x8xf32> to vector<32x8xbf16>
    %cst_75 = arith.constant dense<0.000000e+00> : vector<32x32xf32>
    %198 = tpu.matmul %193, %195, %cst_75 {dimension_numbers = #tpu.dot_dimension_numbers<[1], [1], [0], [0], [0, 0, 1, 0], [], []>} : vector<32x8xbf16>, vector<32x8xbf16>, vector<32x32xf32> -> vector<32x32xf32>
    %cst_76 = arith.constant 0.353553385 : f32
    %199 = vector.broadcast %cst_76 : f32 to vector<32x32xf32>
    %200 = arith.mulf %198, %199 : vector<32x32xf32>
    %cst_77 = arith.constant dense<0xFF800000> : vector<32xf32>
    %201 = vector.multi_reduction <maximumf>, %200, %cst_77 [1] : vector<32x32xf32> to vector<32xf32>
    %202 = vector.shape_cast %201 : vector<32xf32> to vector<32x1xf32>
    %203 = vector.broadcast %202 : vector<32x1xf32> to vector<32x32xf32>
    %204 = arith.subf %200, %203 : vector<32x32xf32>
    %205 = math.exp %204 : vector<32x32xf32>
    %cst_78 = arith.constant dense<0.000000e+00> : vector<32xf32>
    %206 = vector.multi_reduction <add>, %205, %cst_78 [1] : vector<32x32xf32> to vector<32xf32>
    %207 = vector.shape_cast %206 : vector<32xf32> to vector<32x1xf32>
    %208 = tpu.reciprocal %207 {approx = true} : vector<32x1xf32> -> vector<32x1xf32>
    %209 = vector.broadcast %208 : vector<32x1xf32> to vector<32x32xf32>
    %210 = arith.mulf %205, %209 : vector<32x32xf32>
    %211 = arith.truncf %210 : vector<32x32xf32> to vector<32x32xbf16>
    %cst_79 = arith.constant dense<0.000000e+00> : vector<32x8xf32>
    %212 = tpu.matmul %211, %197, %cst_79 {dimension_numbers = #tpu.dot_dimension_numbers<[1], [0], [0], [1], [0, 0, 1, 1], [], []>} : vector<32x32xbf16>, vector<32x8xbf16>, vector<32x8xf32> -> vector<32x8xf32>
    %213 = arith.truncf %212 : vector<32x8xf32> to vector<32x8xbf16>
    %c0_80 = arith.constant 0 : index
    %c2_81 = arith.constant 2 : index
    %c0_82 = arith.constant 0 : index
    %c0_83 = arith.constant 0 : index
    %214 = vector.load %arg5[%c0_80, %c2_81, %c0_82, %c0_83] : memref<2x4x8x32xbf16, #tpu.memory_space<vmem>>, vector<1x1x8x32xbf16>
    %215 = vector.shape_cast %214 : vector<1x1x8x32xbf16> to vector<8x32xbf16>
    %cst_84 = arith.constant dense<0.000000e+00> : vector<32x32xf32>
    %216 = tpu.matmul %213, %215, %cst_84 {dimension_numbers = #tpu.dot_dimension_numbers<[1], [0], [0], [1], [0, 0, 1, 1], [], []>} : vector<32x8xbf16>, vector<8x32xbf16>, vector<32x32xf32> -> vector<32x32xf32>
    %217 = arith.addf %191, %216 : vector<32x32xf32>
    %218 = vector.extract_strided_slice %35 {offsets = [32, 24], sizes = [32, 8], strides = [1, 1]} : vector<64x32xf32> to vector<32x8xf32>
    %219 = arith.truncf %218 : vector<32x8xf32> to vector<32x8xbf16>
    %220 = vector.extract_strided_slice %36 {offsets = [32, 24], sizes = [32, 8], strides = [1, 1]} : vector<64x32xf32> to vector<32x8xf32>
    %221 = arith.truncf %220 : vector<32x8xf32> to vector<32x8xbf16>
    %222 = vector.extract_strided_slice %37 {offsets = [32, 24], sizes = [32, 8], strides = [1, 1]} : vector<64x32xf32> to vector<32x8xf32>
    %223 = arith.truncf %222 : vector<32x8xf32> to vector<32x8xbf16>
    %cst_85 = arith.constant dense<0.000000e+00> : vector<32x32xf32>
    %224 = tpu.matmul %219, %221, %cst_85 {dimension_numbers = #tpu.dot_dimension_numbers<[1], [1], [0], [0], [0, 0, 1, 0], [], []>} : vector<32x8xbf16>, vector<32x8xbf16>, vector<32x32xf32> -> vector<32x32xf32>
    %cst_86 = arith.constant 0.353553385 : f32
    %225 = vector.broadcast %cst_86 : f32 to vector<32x32xf32>
    %226 = arith.mulf %224, %225 : vector<32x32xf32>
    %cst_87 = arith.constant dense<0xFF800000> : vector<32xf32>
    %227 = vector.multi_reduction <maximumf>, %226, %cst_87 [1] : vector<32x32xf32> to vector<32xf32>
    %228 = vector.shape_cast %227 : vector<32xf32> to vector<32x1xf32>
    %229 = vector.broadcast %228 : vector<32x1xf32> to vector<32x32xf32>
    %230 = arith.subf %226, %229 : vector<32x32xf32>
    %231 = math.exp %230 : vector<32x32xf32>
    %cst_88 = arith.constant dense<0.000000e+00> : vector<32xf32>
    %232 = vector.multi_reduction <add>, %231, %cst_88 [1] : vector<32x32xf32> to vector<32xf32>
    %233 = vector.shape_cast %232 : vector<32xf32> to vector<32x1xf32>
    %234 = tpu.reciprocal %233 {approx = true} : vector<32x1xf32> -> vector<32x1xf32>
    %235 = vector.broadcast %234 : vector<32x1xf32> to vector<32x32xf32>
    %236 = arith.mulf %231, %235 : vector<32x32xf32>
    %237 = arith.truncf %236 : vector<32x32xf32> to vector<32x32xbf16>
    %cst_89 = arith.constant dense<0.000000e+00> : vector<32x8xf32>
    %238 = tpu.matmul %237, %223, %cst_89 {dimension_numbers = #tpu.dot_dimension_numbers<[1], [0], [0], [1], [0, 0, 1, 1], [], []>} : vector<32x32xbf16>, vector<32x8xbf16>, vector<32x8xf32> -> vector<32x8xf32>
    %239 = arith.truncf %238 : vector<32x8xf32> to vector<32x8xbf16>
    %c0_90 = arith.constant 0 : index
    %c3_91 = arith.constant 3 : index
    %c0_92 = arith.constant 0 : index
    %c0_93 = arith.constant 0 : index
    %240 = vector.load %arg5[%c0_90, %c3_91, %c0_92, %c0_93] : memref<2x4x8x32xbf16, #tpu.memory_space<vmem>>, vector<1x1x8x32xbf16>
    %241 = vector.shape_cast %240 : vector<1x1x8x32xbf16> to vector<8x32xbf16>
    %cst_94 = arith.constant dense<0.000000e+00> : vector<32x32xf32>
    %242 = tpu.matmul %239, %241, %cst_94 {dimension_numbers = #tpu.dot_dimension_numbers<[1], [0], [0], [1], [0, 0, 1, 1], [], []>} : vector<32x8xbf16>, vector<8x32xbf16>, vector<32x32xf32> -> vector<32x32xf32>
    %243 = arith.addf %217, %242 : vector<32x32xf32>
    %244 = tpu.concatenate %140, %243 in 0 : vector<32x32xf32>, vector<32x32xf32> -> vector<64x32xf32>
    %c0_95 = arith.constant 0 : index
    %c0_96 = arith.constant 0 : index
    %c0_97 = arith.constant 0 : index
    %245 = vector.load %arg6[%c0_95, %c0_96, %c0_97] : memref<2x1x32xf32, #tpu.memory_space<vmem>>, vector<1x1x32xf32>
    %246 = vector.shape_cast %245 : vector<1x1x32xf32> to vector<1x32xf32>
    %247 = vector.broadcast %246 : vector<1x32xf32> to vector<64x32xf32>
    %248 = arith.addf %244, %247 : vector<64x32xf32>
    %249 = arith.addf %0, %248 : vector<64x32xf32>
    %c0_98 = arith.constant 0 : index
    %c0_99 = arith.constant 0 : index
    %c0_100 = arith.constant 0 : index
    %250 = vector.load %arg7[%c0_98, %c0_99, %c0_100] : memref<2x1x32xf32, #tpu.memory_space<vmem>>, vector<1x1x32xf32>
    %251 = vector.shape_cast %250 : vector<1x1x32xf32> to vector<1x32xf32>
    %c0_101 = arith.constant 0 : index
    %c0_102 = arith.constant 0 : index
    %c0_103 = arith.constant 0 : index
    %252 = vector.load %arg8[%c0_101, %c0_102, %c0_103] : memref<2x1x32xf32, #tpu.memory_space<vmem>>, vector<1x1x32xf32>
    %253 = vector.shape_cast %252 : vector<1x1x32xf32> to vector<1x32xf32>
    %cst_104 = arith.constant dense<0.000000e+00> : vector<64xf32>
    %254 = vector.multi_reduction <add>, %249, %cst_104 [1] : vector<64x32xf32> to vector<64xf32>
    %255 = vector.shape_cast %254 : vector<64xf32> to vector<64x1xf32>
    %cst_105 = arith.constant 3.200000e+01 : f32
    %256 = vector.broadcast %cst_105 : f32 to vector<64x1xf32>
    %257 = arith.divf %255, %256 : vector<64x1xf32>
    %258 = vector.broadcast %257 : vector<64x1xf32> to vector<64x32xf32>
    %259 = arith.subf %249, %258 : vector<64x32xf32>
    %260 = arith.mulf %259, %259 : vector<64x32xf32>
    %cst_106 = arith.constant dense<0.000000e+00> : vector<64xf32>
    %261 = vector.multi_reduction <add>, %260, %cst_106 [1] : vector<64x32xf32> to vector<64xf32>
    %262 = vector.shape_cast %261 : vector<64xf32> to vector<64x1xf32>
    %cst_107 = arith.constant 3.200000e+01 : f32
    %263 = vector.broadcast %cst_107 : f32 to vector<64x1xf32>
    %264 = arith.divf %262, %263 : vector<64x1xf32>
    %265 = vector.broadcast %257 : vector<64x1xf32> to vector<64x32xf32>
    %266 = arith.subf %249, %265 : vector<64x32xf32>
    %cst_108 = arith.constant 9.99999974E-6 : f32
    %267 = vector.broadcast %cst_108 : f32 to vector<64x1xf32>
    %268 = arith.addf %264, %267 : vector<64x1xf32>
    %269 = math.rsqrt %268 : vector<64x1xf32>
    %270 = vector.broadcast %269 : vector<64x1xf32> to vector<64x32xf32>
    %271 = arith.mulf %266, %270 : vector<64x32xf32>
    %272 = vector.broadcast %251 : vector<1x32xf32> to vector<64x32xf32>
    %273 = arith.mulf %271, %272 : vector<64x32xf32>
    %274 = vector.broadcast %253 : vector<1x32xf32> to vector<64x32xf32>
    %275 = arith.addf %273, %274 : vector<64x32xf32>
    %276 = arith.truncf %275 : vector<64x32xf32> to vector<64x32xbf16>
    %c0_109 = arith.constant 0 : index
    %c0_110 = arith.constant 0 : index
    %c0_111 = arith.constant 0 : index
    %277 = vector.load %arg9[%c0_109, %c0_110, %c0_111] : memref<2x32x128xbf16, #tpu.memory_space<vmem>>, vector<1x32x128xbf16>
    %278 = vector.shape_cast %277 : vector<1x32x128xbf16> to vector<32x128xbf16>
    %cst_112 = arith.constant dense<0.000000e+00> : vector<64x128xf32>
    %279 = tpu.matmul %276, %278, %cst_112 {dimension_numbers = #tpu.dot_dimension_numbers<[1], [0], [0], [1], [0, 0, 1, 1], [], []>} : vector<64x32xbf16>, vector<32x128xbf16>, vector<64x128xf32> -> vector<64x128xf32>
    %c0_113 = arith.constant 0 : index
    %c0_114 = arith.constant 0 : index
    %c0_115 = arith.constant 0 : index
    %280 = vector.load %arg10[%c0_113, %c0_114, %c0_115] : memref<2x1x128xf32, #tpu.memory_space<vmem>>, vector<1x1x128xf32>
    %281 = vector.shape_cast %280 : vector<1x1x128xf32> to vector<1x128xf32>
    %282 = vector.broadcast %281 : vector<1x128xf32> to vector<64x128xf32>
    %283 = arith.addf %279, %282 : vector<64x128xf32>
    %cst_116 = arith.constant 5.000000e-01 : f32
    %284 = vector.broadcast %cst_116 : f32 to vector<64x128xf32>
    %285 = arith.mulf %284, %283 : vector<64x128xf32>
    %cst_117 = arith.constant 4.471500e-02 : f32
    %286 = vector.broadcast %cst_117 : f32 to vector<64x128xf32>
    %287 = arith.mulf %286, %283 : vector<64x128xf32>
    %288 = arith.mulf %287, %283 : vector<64x128xf32>
    %289 = arith.mulf %288, %283 : vector<64x128xf32>
    %290 = arith.addf %283, %289 : vector<64x128xf32>
    %cst_118 = arith.constant 0.797884583 : f32
    %291 = vector.broadcast %cst_118 : f32 to vector<64x128xf32>
    %292 = arith.mulf %291, %290 : vector<64x128xf32>
    %293 = math.tanh %292 : vector<64x128xf32>
    %cst_119 = arith.constant 1.000000e+00 : f32
    %294 = vector.broadcast %cst_119 : f32 to vector<64x128xf32>
    %295 = arith.addf %294, %293 : vector<64x128xf32>
    %296 = arith.mulf %285, %295 : vector<64x128xf32>
    %297 = arith.truncf %296 : vector<64x128xf32> to vector<64x128xbf16>
    %c0_120 = arith.constant 0 : index
    %c0_121 = arith.constant 0 : index
    %c0_122 = arith.constant 0 : index
    %298 = vector.load %arg11[%c0_120, %c0_121, %c0_122] : memref<2x128x32xbf16, #tpu.memory_space<vmem>>, vector<1x128x32xbf16>
    %299 = vector.shape_cast %298 : vector<1x128x32xbf16> to vector<128x32xbf16>
    %cst_123 = arith.constant dense<0.000000e+00> : vector<64x32xf32>
    %300 = tpu.matmul %297, %299, %cst_123 {dimension_numbers = #tpu.dot_dimension_numbers<[1], [0], [0], [1], [0, 0, 1, 1], [], []>} : vector<64x128xbf16>, vector<128x32xbf16>, vector<64x32xf32> -> vector<64x32xf32>
    %c0_124 = arith.constant 0 : index
    %c0_125 = arith.constant 0 : index
    %c0_126 = arith.constant 0 : index
    %301 = vector.load %arg12[%c0_124, %c0_125, %c0_126] : memref<2x1x32xf32, #tpu.memory_space<vmem>>, vector<1x1x32xf32>
    %302 = vector.shape_cast %301 : vector<1x1x32xf32> to vector<1x32xf32>
    %303 = vector.broadcast %302 : vector<1x32xf32> to vector<64x32xf32>
    %304 = arith.addf %300, %303 : vector<64x32xf32>
    %305 = arith.addf %249, %304 : vector<64x32xf32>
    %c1_127 = arith.constant 1 : index
    %c0_128 = arith.constant 0 : index
    %c0_129 = arith.constant 0 : index
    %306 = vector.load %arg1[%c1_127, %c0_128, %c0_129] : memref<2x1x32xf32, #tpu.memory_space<vmem>>, vector<1x1x32xf32>
    %307 = vector.shape_cast %306 : vector<1x1x32xf32> to vector<1x32xf32>
    %c1_130 = arith.constant 1 : index
    %c0_131 = arith.constant 0 : index
    %c0_132 = arith.constant 0 : index
    %308 = vector.load %arg2[%c1_130, %c0_131, %c0_132] : memref<2x1x32xf32, #tpu.memory_space<vmem>>, vector<1x1x32xf32>
    %309 = vector.shape_cast %308 : vector<1x1x32xf32> to vector<1x32xf32>
    %cst_133 = arith.constant dense<0.000000e+00> : vector<64xf32>
    %310 = vector.multi_reduction <add>, %305, %cst_133 [1] : vector<64x32xf32> to vector<64xf32>
    %311 = vector.shape_cast %310 : vector<64xf32> to vector<64x1xf32>
    %cst_134 = arith.constant 3.200000e+01 : f32
    %312 = vector.broadcast %cst_134 : f32 to vector<64x1xf32>
    %313 = arith.divf %311, %312 : vector<64x1xf32>
    %314 = vector.broadcast %313 : vector<64x1xf32> to vector<64x32xf32>
    %315 = arith.subf %305, %314 : vector<64x32xf32>
    %316 = arith.mulf %315, %315 : vector<64x32xf32>
    %cst_135 = arith.constant dense<0.000000e+00> : vector<64xf32>
    %317 = vector.multi_reduction <add>, %316, %cst_135 [1] : vector<64x32xf32> to vector<64xf32>
    %318 = vector.shape_cast %317 : vector<64xf32> to vector<64x1xf32>
    %cst_136 = arith.constant 3.200000e+01 : f32
    %319 = vector.broadcast %cst_136 : f32 to vector<64x1xf32>
    %320 = arith.divf %318, %319 : vector<64x1xf32>
    %321 = vector.broadcast %313 : vector<64x1xf32> to vector<64x32xf32>
    %322 = arith.subf %305, %321 : vector<64x32xf32>
    %cst_137 = arith.constant 9.99999974E-6 : f32
    %323 = vector.broadcast %cst_137 : f32 to vector<64x1xf32>
    %324 = arith.addf %320, %323 : vector<64x1xf32>
    %325 = math.rsqrt %324 : vector<64x1xf32>
    %326 = vector.broadcast %325 : vector<64x1xf32> to vector<64x32xf32>
    %327 = arith.mulf %322, %326 : vector<64x32xf32>
    %328 = vector.broadcast %307 : vector<1x32xf32> to vector<64x32xf32>
    %329 = arith.mulf %327, %328 : vector<64x32xf32>
    %330 = vector.broadcast %309 : vector<1x32xf32> to vector<64x32xf32>
    %331 = arith.addf %329, %330 : vector<64x32xf32>
    %332 = arith.truncf %331 : vector<64x32xf32> to vector<64x32xbf16>
    %c1_138 = arith.constant 1 : index
    %c0_139 = arith.constant 0 : index
    %c0_140 = arith.constant 0 : index
    %333 = vector.load %arg3[%c1_138, %c0_139, %c0_140] : memref<2x32x96xbf16, #tpu.memory_space<vmem>>, vector<1x32x96xbf16>
    %334 = vector.shape_cast %333 : vector<1x32x96xbf16> to vector<32x96xbf16>
    %cst_141 = arith.constant dense<0.000000e+00> : vector<64x96xf32>
    %335 = tpu.matmul %332, %334, %cst_141 {dimension_numbers = #tpu.dot_dimension_numbers<[1], [0], [0], [1], [0, 0, 1, 1], [], []>} : vector<64x32xbf16>, vector<32x96xbf16>, vector<64x96xf32> -> vector<64x96xf32>
    %c1_142 = arith.constant 1 : index
    %c0_143 = arith.constant 0 : index
    %c0_144 = arith.constant 0 : index
    %336 = vector.load %arg4[%c1_142, %c0_143, %c0_144] : memref<2x1x96xf32, #tpu.memory_space<vmem>>, vector<1x1x96xf32>
    %337 = vector.shape_cast %336 : vector<1x1x96xf32> to vector<1x96xf32>
    %338 = vector.broadcast %337 : vector<1x96xf32> to vector<64x96xf32>
    %339 = arith.addf %335, %338 : vector<64x96xf32>
    %340 = vector.extract_strided_slice %339 {offsets = [0, 0], sizes = [64, 32], strides = [1, 1]} : vector<64x96xf32> to vector<64x32xf32>
    %341 = vector.extract_strided_slice %339 {offsets = [0, 32], sizes = [64, 32], strides = [1, 1]} : vector<64x96xf32> to vector<64x32xf32>
    %342 = vector.extract_strided_slice %339 {offsets = [0, 64], sizes = [64, 32], strides = [1, 1]} : vector<64x96xf32> to vector<64x32xf32>
    %343 = vector.extract_strided_slice %340 {offsets = [0, 0], sizes = [32, 8], strides = [1, 1]} : vector<64x32xf32> to vector<32x8xf32>
    %344 = arith.truncf %343 : vector<32x8xf32> to vector<32x8xbf16>
    %345 = vector.extract_strided_slice %341 {offsets = [0, 0], sizes = [32, 8], strides = [1, 1]} : vector<64x32xf32> to vector<32x8xf32>
    %346 = arith.truncf %345 : vector<32x8xf32> to vector<32x8xbf16>
    %347 = vector.extract_strided_slice %342 {offsets = [0, 0], sizes = [32, 8], strides = [1, 1]} : vector<64x32xf32> to vector<32x8xf32>
    %348 = arith.truncf %347 : vector<32x8xf32> to vector<32x8xbf16>
    %cst_145 = arith.constant dense<0.000000e+00> : vector<32x32xf32>
    %349 = tpu.matmul %344, %346, %cst_145 {dimension_numbers = #tpu.dot_dimension_numbers<[1], [1], [0], [0], [0, 0, 1, 0], [], []>} : vector<32x8xbf16>, vector<32x8xbf16>, vector<32x32xf32> -> vector<32x32xf32>
    %cst_146 = arith.constant 0.353553385 : f32
    %350 = vector.broadcast %cst_146 : f32 to vector<32x32xf32>
    %351 = arith.mulf %349, %350 : vector<32x32xf32>
    %cst_147 = arith.constant dense<0xFF800000> : vector<32xf32>
    %352 = vector.multi_reduction <maximumf>, %351, %cst_147 [1] : vector<32x32xf32> to vector<32xf32>
    %353 = vector.shape_cast %352 : vector<32xf32> to vector<32x1xf32>
    %354 = vector.broadcast %353 : vector<32x1xf32> to vector<32x32xf32>
    %355 = arith.subf %351, %354 : vector<32x32xf32>
    %356 = math.exp %355 : vector<32x32xf32>
    %cst_148 = arith.constant dense<0.000000e+00> : vector<32xf32>
    %357 = vector.multi_reduction <add>, %356, %cst_148 [1] : vector<32x32xf32> to vector<32xf32>
    %358 = vector.shape_cast %357 : vector<32xf32> to vector<32x1xf32>
    %359 = tpu.reciprocal %358 {approx = true} : vector<32x1xf32> -> vector<32x1xf32>
    %360 = vector.broadcast %359 : vector<32x1xf32> to vector<32x32xf32>
    %361 = arith.mulf %356, %360 : vector<32x32xf32>
    %362 = arith.truncf %361 : vector<32x32xf32> to vector<32x32xbf16>
    %cst_149 = arith.constant dense<0.000000e+00> : vector<32x8xf32>
    %363 = tpu.matmul %362, %348, %cst_149 {dimension_numbers = #tpu.dot_dimension_numbers<[1], [0], [0], [1], [0, 0, 1, 1], [], []>} : vector<32x32xbf16>, vector<32x8xbf16>, vector<32x8xf32> -> vector<32x8xf32>
    %364 = arith.truncf %363 : vector<32x8xf32> to vector<32x8xbf16>
    %c1_150 = arith.constant 1 : index
    %c0_151 = arith.constant 0 : index
    %c0_152 = arith.constant 0 : index
    %c0_153 = arith.constant 0 : index
    %365 = vector.load %arg5[%c1_150, %c0_151, %c0_152, %c0_153] : memref<2x4x8x32xbf16, #tpu.memory_space<vmem>>, vector<1x1x8x32xbf16>
    %366 = vector.shape_cast %365 : vector<1x1x8x32xbf16> to vector<8x32xbf16>
    %cst_154 = arith.constant dense<0.000000e+00> : vector<32x32xf32>
    %367 = tpu.matmul %364, %366, %cst_154 {dimension_numbers = #tpu.dot_dimension_numbers<[1], [0], [0], [1], [0, 0, 1, 1], [], []>} : vector<32x8xbf16>, vector<8x32xbf16>, vector<32x32xf32> -> vector<32x32xf32>
    %368 = vector.extract_strided_slice %340 {offsets = [0, 8], sizes = [32, 8], strides = [1, 1]} : vector<64x32xf32> to vector<32x8xf32>
    %369 = arith.truncf %368 : vector<32x8xf32> to vector<32x8xbf16>
    %370 = vector.extract_strided_slice %341 {offsets = [0, 8], sizes = [32, 8], strides = [1, 1]} : vector<64x32xf32> to vector<32x8xf32>
    %371 = arith.truncf %370 : vector<32x8xf32> to vector<32x8xbf16>
    %372 = vector.extract_strided_slice %342 {offsets = [0, 8], sizes = [32, 8], strides = [1, 1]} : vector<64x32xf32> to vector<32x8xf32>
    %373 = arith.truncf %372 : vector<32x8xf32> to vector<32x8xbf16>
    %cst_155 = arith.constant dense<0.000000e+00> : vector<32x32xf32>
    %374 = tpu.matmul %369, %371, %cst_155 {dimension_numbers = #tpu.dot_dimension_numbers<[1], [1], [0], [0], [0, 0, 1, 0], [], []>} : vector<32x8xbf16>, vector<32x8xbf16>, vector<32x32xf32> -> vector<32x32xf32>
    %cst_156 = arith.constant 0.353553385 : f32
    %375 = vector.broadcast %cst_156 : f32 to vector<32x32xf32>
    %376 = arith.mulf %374, %375 : vector<32x32xf32>
    %cst_157 = arith.constant dense<0xFF800000> : vector<32xf32>
    %377 = vector.multi_reduction <maximumf>, %376, %cst_157 [1] : vector<32x32xf32> to vector<32xf32>
    %378 = vector.shape_cast %377 : vector<32xf32> to vector<32x1xf32>
    %379 = vector.broadcast %378 : vector<32x1xf32> to vector<32x32xf32>
    %380 = arith.subf %376, %379 : vector<32x32xf32>
    %381 = math.exp %380 : vector<32x32xf32>
    %cst_158 = arith.constant dense<0.000000e+00> : vector<32xf32>
    %382 = vector.multi_reduction <add>, %381, %cst_158 [1] : vector<32x32xf32> to vector<32xf32>
    %383 = vector.shape_cast %382 : vector<32xf32> to vector<32x1xf32>
    %384 = tpu.reciprocal %383 {approx = true} : vector<32x1xf32> -> vector<32x1xf32>
    %385 = vector.broadcast %384 : vector<32x1xf32> to vector<32x32xf32>
    %386 = arith.mulf %381, %385 : vector<32x32xf32>
    %387 = arith.truncf %386 : vector<32x32xf32> to vector<32x32xbf16>
    %cst_159 = arith.constant dense<0.000000e+00> : vector<32x8xf32>
    %388 = tpu.matmul %387, %373, %cst_159 {dimension_numbers = #tpu.dot_dimension_numbers<[1], [0], [0], [1], [0, 0, 1, 1], [], []>} : vector<32x32xbf16>, vector<32x8xbf16>, vector<32x8xf32> -> vector<32x8xf32>
    %389 = arith.truncf %388 : vector<32x8xf32> to vector<32x8xbf16>
    %c1_160 = arith.constant 1 : index
    %c1_161 = arith.constant 1 : index
    %c0_162 = arith.constant 0 : index
    %c0_163 = arith.constant 0 : index
    %390 = vector.load %arg5[%c1_160, %c1_161, %c0_162, %c0_163] : memref<2x4x8x32xbf16, #tpu.memory_space<vmem>>, vector<1x1x8x32xbf16>
    %391 = vector.shape_cast %390 : vector<1x1x8x32xbf16> to vector<8x32xbf16>
    %cst_164 = arith.constant dense<0.000000e+00> : vector<32x32xf32>
    %392 = tpu.matmul %389, %391, %cst_164 {dimension_numbers = #tpu.dot_dimension_numbers<[1], [0], [0], [1], [0, 0, 1, 1], [], []>} : vector<32x8xbf16>, vector<8x32xbf16>, vector<32x32xf32> -> vector<32x32xf32>
    %393 = arith.addf %367, %392 : vector<32x32xf32>
    %394 = vector.extract_strided_slice %340 {offsets = [0, 16], sizes = [32, 8], strides = [1, 1]} : vector<64x32xf32> to vector<32x8xf32>
    %395 = arith.truncf %394 : vector<32x8xf32> to vector<32x8xbf16>
    %396 = vector.extract_strided_slice %341 {offsets = [0, 16], sizes = [32, 8], strides = [1, 1]} : vector<64x32xf32> to vector<32x8xf32>
    %397 = arith.truncf %396 : vector<32x8xf32> to vector<32x8xbf16>
    %398 = vector.extract_strided_slice %342 {offsets = [0, 16], sizes = [32, 8], strides = [1, 1]} : vector<64x32xf32> to vector<32x8xf32>
    %399 = arith.truncf %398 : vector<32x8xf32> to vector<32x8xbf16>
    %cst_165 = arith.constant dense<0.000000e+00> : vector<32x32xf32>
    %400 = tpu.matmul %395, %397, %cst_165 {dimension_numbers = #tpu.dot_dimension_numbers<[1], [1], [0], [0], [0, 0, 1, 0], [], []>} : vector<32x8xbf16>, vector<32x8xbf16>, vector<32x32xf32> -> vector<32x32xf32>
    %cst_166 = arith.constant 0.353553385 : f32
    %401 = vector.broadcast %cst_166 : f32 to vector<32x32xf32>
    %402 = arith.mulf %400, %401 : vector<32x32xf32>
    %cst_167 = arith.constant dense<0xFF800000> : vector<32xf32>
    %403 = vector.multi_reduction <maximumf>, %402, %cst_167 [1] : vector<32x32xf32> to vector<32xf32>
    %404 = vector.shape_cast %403 : vector<32xf32> to vector<32x1xf32>
    %405 = vector.broadcast %404 : vector<32x1xf32> to vector<32x32xf32>
    %406 = arith.subf %402, %405 : vector<32x32xf32>
    %407 = math.exp %406 : vector<32x32xf32>
    %cst_168 = arith.constant dense<0.000000e+00> : vector<32xf32>
    %408 = vector.multi_reduction <add>, %407, %cst_168 [1] : vector<32x32xf32> to vector<32xf32>
    %409 = vector.shape_cast %408 : vector<32xf32> to vector<32x1xf32>
    %410 = tpu.reciprocal %409 {approx = true} : vector<32x1xf32> -> vector<32x1xf32>
    %411 = vector.broadcast %410 : vector<32x1xf32> to vector<32x32xf32>
    %412 = arith.mulf %407, %411 : vector<32x32xf32>
    %413 = arith.truncf %412 : vector<32x32xf32> to vector<32x32xbf16>
    %cst_169 = arith.constant dense<0.000000e+00> : vector<32x8xf32>
    %414 = tpu.matmul %413, %399, %cst_169 {dimension_numbers = #tpu.dot_dimension_numbers<[1], [0], [0], [1], [0, 0, 1, 1], [], []>} : vector<32x32xbf16>, vector<32x8xbf16>, vector<32x8xf32> -> vector<32x8xf32>
    %415 = arith.truncf %414 : vector<32x8xf32> to vector<32x8xbf16>
    %c1_170 = arith.constant 1 : index
    %c2_171 = arith.constant 2 : index
    %c0_172 = arith.constant 0 : index
    %c0_173 = arith.constant 0 : index
    %416 = vector.load %arg5[%c1_170, %c2_171, %c0_172, %c0_173] : memref<2x4x8x32xbf16, #tpu.memory_space<vmem>>, vector<1x1x8x32xbf16>
    %417 = vector.shape_cast %416 : vector<1x1x8x32xbf16> to vector<8x32xbf16>
    %cst_174 = arith.constant dense<0.000000e+00> : vector<32x32xf32>
    %418 = tpu.matmul %415, %417, %cst_174 {dimension_numbers = #tpu.dot_dimension_numbers<[1], [0], [0], [1], [0, 0, 1, 1], [], []>} : vector<32x8xbf16>, vector<8x32xbf16>, vector<32x32xf32> -> vector<32x32xf32>
    %419 = arith.addf %393, %418 : vector<32x32xf32>
    %420 = vector.extract_strided_slice %340 {offsets = [0, 24], sizes = [32, 8], strides = [1, 1]} : vector<64x32xf32> to vector<32x8xf32>
    %421 = arith.truncf %420 : vector<32x8xf32> to vector<32x8xbf16>
    %422 = vector.extract_strided_slice %341 {offsets = [0, 24], sizes = [32, 8], strides = [1, 1]} : vector<64x32xf32> to vector<32x8xf32>
    %423 = arith.truncf %422 : vector<32x8xf32> to vector<32x8xbf16>
    %424 = vector.extract_strided_slice %342 {offsets = [0, 24], sizes = [32, 8], strides = [1, 1]} : vector<64x32xf32> to vector<32x8xf32>
    %425 = arith.truncf %424 : vector<32x8xf32> to vector<32x8xbf16>
    %cst_175 = arith.constant dense<0.000000e+00> : vector<32x32xf32>
    %426 = tpu.matmul %421, %423, %cst_175 {dimension_numbers = #tpu.dot_dimension_numbers<[1], [1], [0], [0], [0, 0, 1, 0], [], []>} : vector<32x8xbf16>, vector<32x8xbf16>, vector<32x32xf32> -> vector<32x32xf32>
    %cst_176 = arith.constant 0.353553385 : f32
    %427 = vector.broadcast %cst_176 : f32 to vector<32x32xf32>
    %428 = arith.mulf %426, %427 : vector<32x32xf32>
    %cst_177 = arith.constant dense<0xFF800000> : vector<32xf32>
    %429 = vector.multi_reduction <maximumf>, %428, %cst_177 [1] : vector<32x32xf32> to vector<32xf32>
    %430 = vector.shape_cast %429 : vector<32xf32> to vector<32x1xf32>
    %431 = vector.broadcast %430 : vector<32x1xf32> to vector<32x32xf32>
    %432 = arith.subf %428, %431 : vector<32x32xf32>
    %433 = math.exp %432 : vector<32x32xf32>
    %cst_178 = arith.constant dense<0.000000e+00> : vector<32xf32>
    %434 = vector.multi_reduction <add>, %433, %cst_178 [1] : vector<32x32xf32> to vector<32xf32>
    %435 = vector.shape_cast %434 : vector<32xf32> to vector<32x1xf32>
    %436 = tpu.reciprocal %435 {approx = true} : vector<32x1xf32> -> vector<32x1xf32>
    %437 = vector.broadcast %436 : vector<32x1xf32> to vector<32x32xf32>
    %438 = arith.mulf %433, %437 : vector<32x32xf32>
    %439 = arith.truncf %438 : vector<32x32xf32> to vector<32x32xbf16>
    %cst_179 = arith.constant dense<0.000000e+00> : vector<32x8xf32>
    %440 = tpu.matmul %439, %425, %cst_179 {dimension_numbers = #tpu.dot_dimension_numbers<[1], [0], [0], [1], [0, 0, 1, 1], [], []>} : vector<32x32xbf16>, vector<32x8xbf16>, vector<32x8xf32> -> vector<32x8xf32>
    %441 = arith.truncf %440 : vector<32x8xf32> to vector<32x8xbf16>
    %c1_180 = arith.constant 1 : index
    %c3_181 = arith.constant 3 : index
    %c0_182 = arith.constant 0 : index
    %c0_183 = arith.constant 0 : index
    %442 = vector.load %arg5[%c1_180, %c3_181, %c0_182, %c0_183] : memref<2x4x8x32xbf16, #tpu.memory_space<vmem>>, vector<1x1x8x32xbf16>
    %443 = vector.shape_cast %442 : vector<1x1x8x32xbf16> to vector<8x32xbf16>
    %cst_184 = arith.constant dense<0.000000e+00> : vector<32x32xf32>
    %444 = tpu.matmul %441, %443, %cst_184 {dimension_numbers = #tpu.dot_dimension_numbers<[1], [0], [0], [1], [0, 0, 1, 1], [], []>} : vector<32x8xbf16>, vector<8x32xbf16>, vector<32x32xf32> -> vector<32x32xf32>
    %445 = arith.addf %419, %444 : vector<32x32xf32>
    %446 = vector.extract_strided_slice %340 {offsets = [32, 0], sizes = [32, 8], strides = [1, 1]} : vector<64x32xf32> to vector<32x8xf32>
    %447 = arith.truncf %446 : vector<32x8xf32> to vector<32x8xbf16>
    %448 = vector.extract_strided_slice %341 {offsets = [32, 0], sizes = [32, 8], strides = [1, 1]} : vector<64x32xf32> to vector<32x8xf32>
    %449 = arith.truncf %448 : vector<32x8xf32> to vector<32x8xbf16>
    %450 = vector.extract_strided_slice %342 {offsets = [32, 0], sizes = [32, 8], strides = [1, 1]} : vector<64x32xf32> to vector<32x8xf32>
    %451 = arith.truncf %450 : vector<32x8xf32> to vector<32x8xbf16>
    %cst_185 = arith.constant dense<0.000000e+00> : vector<32x32xf32>
    %452 = tpu.matmul %447, %449, %cst_185 {dimension_numbers = #tpu.dot_dimension_numbers<[1], [1], [0], [0], [0, 0, 1, 0], [], []>} : vector<32x8xbf16>, vector<32x8xbf16>, vector<32x32xf32> -> vector<32x32xf32>
    %cst_186 = arith.constant 0.353553385 : f32
    %453 = vector.broadcast %cst_186 : f32 to vector<32x32xf32>
    %454 = arith.mulf %452, %453 : vector<32x32xf32>
    %cst_187 = arith.constant dense<0xFF800000> : vector<32xf32>
    %455 = vector.multi_reduction <maximumf>, %454, %cst_187 [1] : vector<32x32xf32> to vector<32xf32>
    %456 = vector.shape_cast %455 : vector<32xf32> to vector<32x1xf32>
    %457 = vector.broadcast %456 : vector<32x1xf32> to vector<32x32xf32>
    %458 = arith.subf %454, %457 : vector<32x32xf32>
    %459 = math.exp %458 : vector<32x32xf32>
    %cst_188 = arith.constant dense<0.000000e+00> : vector<32xf32>
    %460 = vector.multi_reduction <add>, %459, %cst_188 [1] : vector<32x32xf32> to vector<32xf32>
    %461 = vector.shape_cast %460 : vector<32xf32> to vector<32x1xf32>
    %462 = tpu.reciprocal %461 {approx = true} : vector<32x1xf32> -> vector<32x1xf32>
    %463 = vector.broadcast %462 : vector<32x1xf32> to vector<32x32xf32>
    %464 = arith.mulf %459, %463 : vector<32x32xf32>
    %465 = arith.truncf %464 : vector<32x32xf32> to vector<32x32xbf16>
    %cst_189 = arith.constant dense<0.000000e+00> : vector<32x8xf32>
    %466 = tpu.matmul %465, %451, %cst_189 {dimension_numbers = #tpu.dot_dimension_numbers<[1], [0], [0], [1], [0, 0, 1, 1], [], []>} : vector<32x32xbf16>, vector<32x8xbf16>, vector<32x8xf32> -> vector<32x8xf32>
    %467 = arith.truncf %466 : vector<32x8xf32> to vector<32x8xbf16>
    %c1_190 = arith.constant 1 : index
    %c0_191 = arith.constant 0 : index
    %c0_192 = arith.constant 0 : index
    %c0_193 = arith.constant 0 : index
    %468 = vector.load %arg5[%c1_190, %c0_191, %c0_192, %c0_193] : memref<2x4x8x32xbf16, #tpu.memory_space<vmem>>, vector<1x1x8x32xbf16>
    %469 = vector.shape_cast %468 : vector<1x1x8x32xbf16> to vector<8x32xbf16>
    %cst_194 = arith.constant dense<0.000000e+00> : vector<32x32xf32>
    %470 = tpu.matmul %467, %469, %cst_194 {dimension_numbers = #tpu.dot_dimension_numbers<[1], [0], [0], [1], [0, 0, 1, 1], [], []>} : vector<32x8xbf16>, vector<8x32xbf16>, vector<32x32xf32> -> vector<32x32xf32>
    %471 = vector.extract_strided_slice %340 {offsets = [32, 8], sizes = [32, 8], strides = [1, 1]} : vector<64x32xf32> to vector<32x8xf32>
    %472 = arith.truncf %471 : vector<32x8xf32> to vector<32x8xbf16>
    %473 = vector.extract_strided_slice %341 {offsets = [32, 8], sizes = [32, 8], strides = [1, 1]} : vector<64x32xf32> to vector<32x8xf32>
    %474 = arith.truncf %473 : vector<32x8xf32> to vector<32x8xbf16>
    %475 = vector.extract_strided_slice %342 {offsets = [32, 8], sizes = [32, 8], strides = [1, 1]} : vector<64x32xf32> to vector<32x8xf32>
    %476 = arith.truncf %475 : vector<32x8xf32> to vector<32x8xbf16>
    %cst_195 = arith.constant dense<0.000000e+00> : vector<32x32xf32>
    %477 = tpu.matmul %472, %474, %cst_195 {dimension_numbers = #tpu.dot_dimension_numbers<[1], [1], [0], [0], [0, 0, 1, 0], [], []>} : vector<32x8xbf16>, vector<32x8xbf16>, vector<32x32xf32> -> vector<32x32xf32>
    %cst_196 = arith.constant 0.353553385 : f32
    %478 = vector.broadcast %cst_196 : f32 to vector<32x32xf32>
    %479 = arith.mulf %477, %478 : vector<32x32xf32>
    %cst_197 = arith.constant dense<0xFF800000> : vector<32xf32>
    %480 = vector.multi_reduction <maximumf>, %479, %cst_197 [1] : vector<32x32xf32> to vector<32xf32>
    %481 = vector.shape_cast %480 : vector<32xf32> to vector<32x1xf32>
    %482 = vector.broadcast %481 : vector<32x1xf32> to vector<32x32xf32>
    %483 = arith.subf %479, %482 : vector<32x32xf32>
    %484 = math.exp %483 : vector<32x32xf32>
    %cst_198 = arith.constant dense<0.000000e+00> : vector<32xf32>
    %485 = vector.multi_reduction <add>, %484, %cst_198 [1] : vector<32x32xf32> to vector<32xf32>
    %486 = vector.shape_cast %485 : vector<32xf32> to vector<32x1xf32>
    %487 = tpu.reciprocal %486 {approx = true} : vector<32x1xf32> -> vector<32x1xf32>
    %488 = vector.broadcast %487 : vector<32x1xf32> to vector<32x32xf32>
    %489 = arith.mulf %484, %488 : vector<32x32xf32>
    %490 = arith.truncf %489 : vector<32x32xf32> to vector<32x32xbf16>
    %cst_199 = arith.constant dense<0.000000e+00> : vector<32x8xf32>
    %491 = tpu.matmul %490, %476, %cst_199 {dimension_numbers = #tpu.dot_dimension_numbers<[1], [0], [0], [1], [0, 0, 1, 1], [], []>} : vector<32x32xbf16>, vector<32x8xbf16>, vector<32x8xf32> -> vector<32x8xf32>
    %492 = arith.truncf %491 : vector<32x8xf32> to vector<32x8xbf16>
    %c1_200 = arith.constant 1 : index
    %c1_201 = arith.constant 1 : index
    %c0_202 = arith.constant 0 : index
    %c0_203 = arith.constant 0 : index
    %493 = vector.load %arg5[%c1_200, %c1_201, %c0_202, %c0_203] : memref<2x4x8x32xbf16, #tpu.memory_space<vmem>>, vector<1x1x8x32xbf16>
    %494 = vector.shape_cast %493 : vector<1x1x8x32xbf16> to vector<8x32xbf16>
    %cst_204 = arith.constant dense<0.000000e+00> : vector<32x32xf32>
    %495 = tpu.matmul %492, %494, %cst_204 {dimension_numbers = #tpu.dot_dimension_numbers<[1], [0], [0], [1], [0, 0, 1, 1], [], []>} : vector<32x8xbf16>, vector<8x32xbf16>, vector<32x32xf32> -> vector<32x32xf32>
    %496 = arith.addf %470, %495 : vector<32x32xf32>
    %497 = vector.extract_strided_slice %340 {offsets = [32, 16], sizes = [32, 8], strides = [1, 1]} : vector<64x32xf32> to vector<32x8xf32>
    %498 = arith.truncf %497 : vector<32x8xf32> to vector<32x8xbf16>
    %499 = vector.extract_strided_slice %341 {offsets = [32, 16], sizes = [32, 8], strides = [1, 1]} : vector<64x32xf32> to vector<32x8xf32>
    %500 = arith.truncf %499 : vector<32x8xf32> to vector<32x8xbf16>
    %501 = vector.extract_strided_slice %342 {offsets = [32, 16], sizes = [32, 8], strides = [1, 1]} : vector<64x32xf32> to vector<32x8xf32>
    %502 = arith.truncf %501 : vector<32x8xf32> to vector<32x8xbf16>
    %cst_205 = arith.constant dense<0.000000e+00> : vector<32x32xf32>
    %503 = tpu.matmul %498, %500, %cst_205 {dimension_numbers = #tpu.dot_dimension_numbers<[1], [1], [0], [0], [0, 0, 1, 0], [], []>} : vector<32x8xbf16>, vector<32x8xbf16>, vector<32x32xf32> -> vector<32x32xf32>
    %cst_206 = arith.constant 0.353553385 : f32
    %504 = vector.broadcast %cst_206 : f32 to vector<32x32xf32>
    %505 = arith.mulf %503, %504 : vector<32x32xf32>
    %cst_207 = arith.constant dense<0xFF800000> : vector<32xf32>
    %506 = vector.multi_reduction <maximumf>, %505, %cst_207 [1] : vector<32x32xf32> to vector<32xf32>
    %507 = vector.shape_cast %506 : vector<32xf32> to vector<32x1xf32>
    %508 = vector.broadcast %507 : vector<32x1xf32> to vector<32x32xf32>
    %509 = arith.subf %505, %508 : vector<32x32xf32>
    %510 = math.exp %509 : vector<32x32xf32>
    %cst_208 = arith.constant dense<0.000000e+00> : vector<32xf32>
    %511 = vector.multi_reduction <add>, %510, %cst_208 [1] : vector<32x32xf32> to vector<32xf32>
    %512 = vector.shape_cast %511 : vector<32xf32> to vector<32x1xf32>
    %513 = tpu.reciprocal %512 {approx = true} : vector<32x1xf32> -> vector<32x1xf32>
    %514 = vector.broadcast %513 : vector<32x1xf32> to vector<32x32xf32>
    %515 = arith.mulf %510, %514 : vector<32x32xf32>
    %516 = arith.truncf %515 : vector<32x32xf32> to vector<32x32xbf16>
    %cst_209 = arith.constant dense<0.000000e+00> : vector<32x8xf32>
    %517 = tpu.matmul %516, %502, %cst_209 {dimension_numbers = #tpu.dot_dimension_numbers<[1], [0], [0], [1], [0, 0, 1, 1], [], []>} : vector<32x32xbf16>, vector<32x8xbf16>, vector<32x8xf32> -> vector<32x8xf32>
    %518 = arith.truncf %517 : vector<32x8xf32> to vector<32x8xbf16>
    %c1_210 = arith.constant 1 : index
    %c2_211 = arith.constant 2 : index
    %c0_212 = arith.constant 0 : index
    %c0_213 = arith.constant 0 : index
    %519 = vector.load %arg5[%c1_210, %c2_211, %c0_212, %c0_213] : memref<2x4x8x32xbf16, #tpu.memory_space<vmem>>, vector<1x1x8x32xbf16>
    %520 = vector.shape_cast %519 : vector<1x1x8x32xbf16> to vector<8x32xbf16>
    %cst_214 = arith.constant dense<0.000000e+00> : vector<32x32xf32>
    %521 = tpu.matmul %518, %520, %cst_214 {dimension_numbers = #tpu.dot_dimension_numbers<[1], [0], [0], [1], [0, 0, 1, 1], [], []>} : vector<32x8xbf16>, vector<8x32xbf16>, vector<32x32xf32> -> vector<32x32xf32>
    %522 = arith.addf %496, %521 : vector<32x32xf32>
    %523 = vector.extract_strided_slice %340 {offsets = [32, 24], sizes = [32, 8], strides = [1, 1]} : vector<64x32xf32> to vector<32x8xf32>
    %524 = arith.truncf %523 : vector<32x8xf32> to vector<32x8xbf16>
    %525 = vector.extract_strided_slice %341 {offsets = [32, 24], sizes = [32, 8], strides = [1, 1]} : vector<64x32xf32> to vector<32x8xf32>
    %526 = arith.truncf %525 : vector<32x8xf32> to vector<32x8xbf16>
    %527 = vector.extract_strided_slice %342 {offsets = [32, 24], sizes = [32, 8], strides = [1, 1]} : vector<64x32xf32> to vector<32x8xf32>
    %528 = arith.truncf %527 : vector<32x8xf32> to vector<32x8xbf16>
    %cst_215 = arith.constant dense<0.000000e+00> : vector<32x32xf32>
    %529 = tpu.matmul %524, %526, %cst_215 {dimension_numbers = #tpu.dot_dimension_numbers<[1], [1], [0], [0], [0, 0, 1, 0], [], []>} : vector<32x8xbf16>, vector<32x8xbf16>, vector<32x32xf32> -> vector<32x32xf32>
    %cst_216 = arith.constant 0.353553385 : f32
    %530 = vector.broadcast %cst_216 : f32 to vector<32x32xf32>
    %531 = arith.mulf %529, %530 : vector<32x32xf32>
    %cst_217 = arith.constant dense<0xFF800000> : vector<32xf32>
    %532 = vector.multi_reduction <maximumf>, %531, %cst_217 [1] : vector<32x32xf32> to vector<32xf32>
    %533 = vector.shape_cast %532 : vector<32xf32> to vector<32x1xf32>
    %534 = vector.broadcast %533 : vector<32x1xf32> to vector<32x32xf32>
    %535 = arith.subf %531, %534 : vector<32x32xf32>
    %536 = math.exp %535 : vector<32x32xf32>
    %cst_218 = arith.constant dense<0.000000e+00> : vector<32xf32>
    %537 = vector.multi_reduction <add>, %536, %cst_218 [1] : vector<32x32xf32> to vector<32xf32>
    %538 = vector.shape_cast %537 : vector<32xf32> to vector<32x1xf32>
    %539 = tpu.reciprocal %538 {approx = true} : vector<32x1xf32> -> vector<32x1xf32>
    %540 = vector.broadcast %539 : vector<32x1xf32> to vector<32x32xf32>
    %541 = arith.mulf %536, %540 : vector<32x32xf32>
    %542 = arith.truncf %541 : vector<32x32xf32> to vector<32x32xbf16>
    %cst_219 = arith.constant dense<0.000000e+00> : vector<32x8xf32>
    %543 = tpu.matmul %542, %528, %cst_219 {dimension_numbers = #tpu.dot_dimension_numbers<[1], [0], [0], [1], [0, 0, 1, 1], [], []>} : vector<32x32xbf16>, vector<32x8xbf16>, vector<32x8xf32> -> vector<32x8xf32>
    %544 = arith.truncf %543 : vector<32x8xf32> to vector<32x8xbf16>
    %c1_220 = arith.constant 1 : index
    %c3_221 = arith.constant 3 : index
    %c0_222 = arith.constant 0 : index
    %c0_223 = arith.constant 0 : index
    %545 = vector.load %arg5[%c1_220, %c3_221, %c0_222, %c0_223] : memref<2x4x8x32xbf16, #tpu.memory_space<vmem>>, vector<1x1x8x32xbf16>
    %546 = vector.shape_cast %545 : vector<1x1x8x32xbf16> to vector<8x32xbf16>
    %cst_224 = arith.constant dense<0.000000e+00> : vector<32x32xf32>
    %547 = tpu.matmul %544, %546, %cst_224 {dimension_numbers = #tpu.dot_dimension_numbers<[1], [0], [0], [1], [0, 0, 1, 1], [], []>} : vector<32x8xbf16>, vector<8x32xbf16>, vector<32x32xf32> -> vector<32x32xf32>
    %548 = arith.addf %522, %547 : vector<32x32xf32>
    %549 = tpu.concatenate %445, %548 in 0 : vector<32x32xf32>, vector<32x32xf32> -> vector<64x32xf32>
    %c1_225 = arith.constant 1 : index
    %c0_226 = arith.constant 0 : index
    %c0_227 = arith.constant 0 : index
    %550 = vector.load %arg6[%c1_225, %c0_226, %c0_227] : memref<2x1x32xf32, #tpu.memory_space<vmem>>, vector<1x1x32xf32>
    %551 = vector.shape_cast %550 : vector<1x1x32xf32> to vector<1x32xf32>
    %552 = vector.broadcast %551 : vector<1x32xf32> to vector<64x32xf32>
    %553 = arith.addf %549, %552 : vector<64x32xf32>
    %554 = arith.addf %305, %553 : vector<64x32xf32>
    %c1_228 = arith.constant 1 : index
    %c0_229 = arith.constant 0 : index
    %c0_230 = arith.constant 0 : index
    %555 = vector.load %arg7[%c1_228, %c0_229, %c0_230] : memref<2x1x32xf32, #tpu.memory_space<vmem>>, vector<1x1x32xf32>
    %556 = vector.shape_cast %555 : vector<1x1x32xf32> to vector<1x32xf32>
    %c1_231 = arith.constant 1 : index
    %c0_232 = arith.constant 0 : index
    %c0_233 = arith.constant 0 : index
    %557 = vector.load %arg8[%c1_231, %c0_232, %c0_233] : memref<2x1x32xf32, #tpu.memory_space<vmem>>, vector<1x1x32xf32>
    %558 = vector.shape_cast %557 : vector<1x1x32xf32> to vector<1x32xf32>
    %cst_234 = arith.constant dense<0.000000e+00> : vector<64xf32>
    %559 = vector.multi_reduction <add>, %554, %cst_234 [1] : vector<64x32xf32> to vector<64xf32>
    %560 = vector.shape_cast %559 : vector<64xf32> to vector<64x1xf32>
    %cst_235 = arith.constant 3.200000e+01 : f32
    %561 = vector.broadcast %cst_235 : f32 to vector<64x1xf32>
    %562 = arith.divf %560, %561 : vector<64x1xf32>
    %563 = vector.broadcast %562 : vector<64x1xf32> to vector<64x32xf32>
    %564 = arith.subf %554, %563 : vector<64x32xf32>
    %565 = arith.mulf %564, %564 : vector<64x32xf32>
    %cst_236 = arith.constant dense<0.000000e+00> : vector<64xf32>
    %566 = vector.multi_reduction <add>, %565, %cst_236 [1] : vector<64x32xf32> to vector<64xf32>
    %567 = vector.shape_cast %566 : vector<64xf32> to vector<64x1xf32>
    %cst_237 = arith.constant 3.200000e+01 : f32
    %568 = vector.broadcast %cst_237 : f32 to vector<64x1xf32>
    %569 = arith.divf %567, %568 : vector<64x1xf32>
    %570 = vector.broadcast %562 : vector<64x1xf32> to vector<64x32xf32>
    %571 = arith.subf %554, %570 : vector<64x32xf32>
    %cst_238 = arith.constant 9.99999974E-6 : f32
    %572 = vector.broadcast %cst_238 : f32 to vector<64x1xf32>
    %573 = arith.addf %569, %572 : vector<64x1xf32>
    %574 = math.rsqrt %573 : vector<64x1xf32>
    %575 = vector.broadcast %574 : vector<64x1xf32> to vector<64x32xf32>
    %576 = arith.mulf %571, %575 : vector<64x32xf32>
    %577 = vector.broadcast %556 : vector<1x32xf32> to vector<64x32xf32>
    %578 = arith.mulf %576, %577 : vector<64x32xf32>
    %579 = vector.broadcast %558 : vector<1x32xf32> to vector<64x32xf32>
    %580 = arith.addf %578, %579 : vector<64x32xf32>
    %581 = arith.truncf %580 : vector<64x32xf32> to vector<64x32xbf16>
    %c1_239 = arith.constant 1 : index
    %c0_240 = arith.constant 0 : index
    %c0_241 = arith.constant 0 : index
    %582 = vector.load %arg9[%c1_239, %c0_240, %c0_241] : memref<2x32x128xbf16, #tpu.memory_space<vmem>>, vector<1x32x128xbf16>
    %583 = vector.shape_cast %582 : vector<1x32x128xbf16> to vector<32x128xbf16>
    %cst_242 = arith.constant dense<0.000000e+00> : vector<64x128xf32>
    %584 = tpu.matmul %581, %583, %cst_242 {dimension_numbers = #tpu.dot_dimension_numbers<[1], [0], [0], [1], [0, 0, 1, 1], [], []>} : vector<64x32xbf16>, vector<32x128xbf16>, vector<64x128xf32> -> vector<64x128xf32>
    %c1_243 = arith.constant 1 : index
    %c0_244 = arith.constant 0 : index
    %c0_245 = arith.constant 0 : index
    %585 = vector.load %arg10[%c1_243, %c0_244, %c0_245] : memref<2x1x128xf32, #tpu.memory_space<vmem>>, vector<1x1x128xf32>
    %586 = vector.shape_cast %585 : vector<1x1x128xf32> to vector<1x128xf32>
    %587 = vector.broadcast %586 : vector<1x128xf32> to vector<64x128xf32>
    %588 = arith.addf %584, %587 : vector<64x128xf32>
    %cst_246 = arith.constant 5.000000e-01 : f32
    %589 = vector.broadcast %cst_246 : f32 to vector<64x128xf32>
    %590 = arith.mulf %589, %588 : vector<64x128xf32>
    %cst_247 = arith.constant 4.471500e-02 : f32
    %591 = vector.broadcast %cst_247 : f32 to vector<64x128xf32>
    %592 = arith.mulf %591, %588 : vector<64x128xf32>
    %593 = arith.mulf %592, %588 : vector<64x128xf32>
    %594 = arith.mulf %593, %588 : vector<64x128xf32>
    %595 = arith.addf %588, %594 : vector<64x128xf32>
    %cst_248 = arith.constant 0.797884583 : f32
    %596 = vector.broadcast %cst_248 : f32 to vector<64x128xf32>
    %597 = arith.mulf %596, %595 : vector<64x128xf32>
    %598 = math.tanh %597 : vector<64x128xf32>
    %cst_249 = arith.constant 1.000000e+00 : f32
    %599 = vector.broadcast %cst_249 : f32 to vector<64x128xf32>
    %600 = arith.addf %599, %598 : vector<64x128xf32>
    %601 = arith.mulf %590, %600 : vector<64x128xf32>
    %602 = arith.truncf %601 : vector<64x128xf32> to vector<64x128xbf16>
    %c1_250 = arith.constant 1 : index
    %c0_251 = arith.constant 0 : index
    %c0_252 = arith.constant 0 : index
    %603 = vector.load %arg11[%c1_250, %c0_251, %c0_252] : memref<2x128x32xbf16, #tpu.memory_space<vmem>>, vector<1x128x32xbf16>
    %604 = vector.shape_cast %603 : vector<1x128x32xbf16> to vector<128x32xbf16>
    %cst_253 = arith.constant dense<0.000000e+00> : vector<64x32xf32>
    %605 = tpu.matmul %602, %604, %cst_253 {dimension_numbers = #tpu.dot_dimension_numbers<[1], [0], [0], [1], [0, 0, 1, 1], [], []>} : vector<64x128xbf16>, vector<128x32xbf16>, vector<64x32xf32> -> vector<64x32xf32>
    %c1_254 = arith.constant 1 : index
    %c0_255 = arith.constant 0 : index
    %c0_256 = arith.constant 0 : index
    %606 = vector.load %arg12[%c1_254, %c0_255, %c0_256] : memref<2x1x32xf32, #tpu.memory_space<vmem>>, vector<1x1x32xf32>
    %607 = vector.shape_cast %606 : vector<1x1x32xf32> to vector<1x32xf32>
    %608 = vector.broadcast %607 : vector<1x32xf32> to vector<64x32xf32>
    %609 = arith.addf %605, %608 : vector<64x32xf32>
    %610 = arith.addf %554, %609 : vector<64x32xf32>
    %611 = vector.extract_strided_slice %610 {offsets = [16, 0], sizes = [16, 32], strides = [1, 1]} : vector<64x32xf32> to vector<16x32xf32>
    %612 = vector.extract_strided_slice %610 {offsets = [48, 0], sizes = [16, 32], strides = [1, 1]} : vector<64x32xf32> to vector<16x32xf32>
    %613 = tpu.concatenate %611, %612 in 0 : vector<16x32xf32>, vector<16x32xf32> -> vector<32x32xf32>
    %c0_257 = arith.constant 0 : index
    %c0_258 = arith.constant 0 : index
    %614 = vector.load %arg13[%c0_257, %c0_258] : memref<1x32xf32, #tpu.memory_space<vmem>>, vector<1x32xf32>
    %c0_259 = arith.constant 0 : index
    %c0_260 = arith.constant 0 : index
    %615 = vector.load %arg14[%c0_259, %c0_260] : memref<1x32xf32, #tpu.memory_space<vmem>>, vector<1x32xf32>
    %cst_261 = arith.constant dense<0.000000e+00> : vector<32xf32>
    %616 = vector.multi_reduction <add>, %613, %cst_261 [1] : vector<32x32xf32> to vector<32xf32>
    %617 = vector.shape_cast %616 : vector<32xf32> to vector<32x1xf32>
    %cst_262 = arith.constant 3.200000e+01 : f32
    %618 = vector.broadcast %cst_262 : f32 to vector<32x1xf32>
    %619 = arith.divf %617, %618 : vector<32x1xf32>
    %620 = vector.broadcast %619 : vector<32x1xf32> to vector<32x32xf32>
    %621 = arith.subf %613, %620 : vector<32x32xf32>
    %622 = arith.mulf %621, %621 : vector<32x32xf32>
    %cst_263 = arith.constant dense<0.000000e+00> : vector<32xf32>
    %623 = vector.multi_reduction <add>, %622, %cst_263 [1] : vector<32x32xf32> to vector<32xf32>
    %624 = vector.shape_cast %623 : vector<32xf32> to vector<32x1xf32>
    %cst_264 = arith.constant 3.200000e+01 : f32
    %625 = vector.broadcast %cst_264 : f32 to vector<32x1xf32>
    %626 = arith.divf %624, %625 : vector<32x1xf32>
    %627 = vector.broadcast %619 : vector<32x1xf32> to vector<32x32xf32>
    %628 = arith.subf %613, %627 : vector<32x32xf32>
    %cst_265 = arith.constant 9.99999974E-6 : f32
    %629 = vector.broadcast %cst_265 : f32 to vector<32x1xf32>
    %630 = arith.addf %626, %629 : vector<32x1xf32>
    %631 = math.rsqrt %630 : vector<32x1xf32>
    %632 = vector.broadcast %631 : vector<32x1xf32> to vector<32x32xf32>
    %633 = arith.mulf %628, %632 : vector<32x32xf32>
    %634 = vector.broadcast %614 : vector<1x32xf32> to vector<32x32xf32>
    %635 = arith.mulf %633, %634 : vector<32x32xf32>
    %636 = vector.broadcast %615 : vector<1x32xf32> to vector<32x32xf32>
    %637 = arith.addf %635, %636 : vector<32x32xf32>
    %638 = arith.truncf %637 : vector<32x32xf32> to vector<32x32xbf16>
    %c0_266 = arith.constant 0 : index
    %c0_267 = arith.constant 0 : index
    %639 = vector.load %arg15[%c0_266, %c0_267] : memref<32x128xbf16, #tpu.memory_space<vmem>>, vector<32x128xbf16>
    %cst_268 = arith.constant dense<0.000000e+00> : vector<32x128xf32>
    %640 = tpu.matmul %638, %639, %cst_268 {dimension_numbers = #tpu.dot_dimension_numbers<[1], [0], [0], [1], [0, 0, 1, 1], [], []>} : vector<32x32xbf16>, vector<32x128xbf16>, vector<32x128xf32> -> vector<32x128xf32>
    %c0_269 = arith.constant 0 : index
    %c0_270 = arith.constant 0 : index
    %641 = vector.load %arg16[%c0_269, %c0_270] : memref<32x128xf32, #tpu.memory_space<vmem>>, vector<32x128xf32>
    tpu.vector_store %arg16[%c0_269, %c0_270], %640 {strides = array<i32>} : memref<32x128xf32, #tpu.memory_space<vmem>>, vector<32x128xf32>,
    return
  }
}

</mosaic_0001>

<llo_original>
// kernel: tpu_custom_call.1
$region0: #{tpu_custom_call.1}
  #allocation0 [shape = 'u32[]', space=smem, size = 0x4, offset = 0x4, fixed_abs, tag = 'smem constant byte address 0x4 - core index']
  #allocation1 [shape = 'u32[72,128]{1,0:T(1,128)}', space=vmem, size = 0x9000, scoped, tag = 'internal scratch']
  %s0 = inlined_call_operand.vmem [shape: f32[64,32], index: 0, kind: input, shape index: {}]
  %s1 = inlined_call_operand.vmem [shape: f32[2,1,32], index: 1, kind: input, shape index: {}]
  %s2 = inlined_call_operand.vmem [shape: f32[2,1,32], index: 2, kind: input, shape index: {}]
  %s3 = inlined_call_operand.vmem [shape: bf16[2,32,96], index: 3, kind: input, shape index: {}]
  %s4 = inlined_call_operand.vmem [shape: f32[2,1,96], index: 4, kind: input, shape index: {}]
  %s5 = inlined_call_operand.vmem [shape: bf16[2,4,8,32], index: 5, kind: input, shape index: {}]
  %s6 = inlined_call_operand.vmem [shape: f32[2,1,32], index: 6, kind: input, shape index: {}]
  %s7 = inlined_call_operand.vmem [shape: f32[2,1,32], index: 7, kind: input, shape index: {}]
  %s8 = inlined_call_operand.vmem [shape: f32[2,1,32], index: 8, kind: input, shape index: {}]
  %s9 = inlined_call_operand.vmem [shape: bf16[2,32,128], index: 9, kind: input, shape index: {}]
  %s10 = inlined_call_operand.vmem [shape: f32[2,1,128], index: 10, kind: input, shape index: {}]
  %s11 = inlined_call_operand.vmem [shape: bf16[2,128,32], index: 11, kind: input, shape index: {}]
  %s12 = inlined_call_operand.vmem [shape: f32[2,1,32], index: 12, kind: input, shape index: {}]
  %s13 = inlined_call_operand.vmem [shape: f32[1,32], index: 13, kind: input, shape index: {}]
  %s14 = inlined_call_operand.vmem [shape: f32[1,32], index: 14, kind: input, shape index: {}]
  %s15 = inlined_call_operand.vmem [shape: bf16[32,128], index: 15, kind: input, shape index: {}]
  %s16 = inlined_call_operand.hbm [shape: f32[32,128], index: 16, kind: output, shape index: {}]
  %s17 = sld [smem:[#allocation0]]
  $region74: #{tpu_custom_call.1} parent=0
    _
  %s19 = ssub.s32 1, %s17
  %s20 = scalar_select 0, %s19, %s17
  $region1: #{tpu_custom_call.1} parent=0
    #allocation2 [shape = 'u8[16384]{0}', space=vmem, size = 0x4000, scoped, tag = 'output window, operand 0, single buffered']
    #allocation3 [shape = 's32[1]{0}', space=sflag, size = 0x4, scoped, tag = 'scoped memory for tpu_custom_call.1']
    %21 = vsyncpa [#allocation3], 0
    // Predicated region
    $region2: #{tpu_custom_call.1} parent=1 // pred_check
      _
    $region3: #{tpu_custom_call.1} parent=1 // pred_check_branch
      %23 = sbr.rel (0) target = $region5
    $region4: #{tpu_custom_call.1} parent=1 // pred_region
      _
    $region5: #{tpu_custom_call.1} parent=1 // pred_fallthru
      _
    // Predicated region
    $region6: #{tpu_custom_call.1} parent=1 // pred_check
      _
    $region7: #{tpu_custom_call.1} parent=1 // pred_check_branch
      %25 = sbr.rel (0) target = $region9
    $region8: #{tpu_custom_call.1} parent=1 // pred_region
      _
    $region9: #{tpu_custom_call.1} parent=1 // pred_fallthru
      _
    // Predicated region
    $region10: #{tpu_custom_call.1} parent=1 // pred_check
      _
    $region11: #{tpu_custom_call.1} parent=1 // pred_check_branch
      %27 = sbr.rel (0) target = $region13
    $region12: #{tpu_custom_call.1} parent=1 // pred_region
      _
    $region13: #{tpu_custom_call.1} parent=1 // pred_fallthru
      _
    // Predicated region
    $region14: #{tpu_custom_call.1} parent=1 // pred_check
      _
    $region15: #{tpu_custom_call.1} parent=1 // pred_check_branch
      %29 = sbr.rel (0) target = $region17
    $region16: #{tpu_custom_call.1} parent=1 // pred_region
      _
    $region17: #{tpu_custom_call.1} parent=1 // pred_fallthru
      _
    // Predicated region
    $region18: #{tpu_custom_call.1} parent=1 // pred_check
      _
    $region19: #{tpu_custom_call.1} parent=1 // pred_check_branch
      %31 = sbr.rel (0) target = $region21
    $region20: #{tpu_custom_call.1} parent=1 // pred_region
      _
    $region21: #{tpu_custom_call.1} parent=1 // pred_fallthru
      _
    // Predicated region
    $region22: #{tpu_custom_call.1} parent=1 // pred_check
      _
    $region23: #{tpu_custom_call.1} parent=1 // pred_check_branch
      %33 = sbr.rel (0) target = $region25
    $region24: #{tpu_custom_call.1} parent=1 // pred_region
      _
    $region25: #{tpu_custom_call.1} parent=1 // pred_fallthru
      _
    // Predicated region
    $region26: #{tpu_custom_call.1} parent=1 // pred_check
      _
    $region27: #{tpu_custom_call.1} parent=1 // pred_check_branch
      %35 = sbr.rel (0) target = $region29
    $region28: #{tpu_custom_call.1} parent=1 // pred_region
      _
    $region29: #{tpu_custom_call.1} parent=1 // pred_fallthru
      _
    // Predicated region
    $region30: #{tpu_custom_call.1} parent=1 // pred_check
      _
    $region31: #{tpu_custom_call.1} parent=1 // pred_check_branch
      %37 = sbr.rel (0) target = $region33
    $region32: #{tpu_custom_call.1} parent=1 // pred_region
      _
    $region33: #{tpu_custom_call.1} parent=1 // pred_fallthru
      _
    // Predicated region
    $region34: #{tpu_custom_call.1} parent=1 // pred_check
      _
    $region35: #{tpu_custom_call.1} parent=1 // pred_check_branch
      %39 = sbr.rel (0) target = $region37
    $region36: #{tpu_custom_call.1} parent=1 // pred_region
      _
    $region37: #{tpu_custom_call.1} parent=1 // pred_fallthru
      _
    // Predicated region
    $region38: #{tpu_custom_call.1} parent=1 // pred_check
      _
    $region39: #{tpu_custom_call.1} parent=1 // pred_check_branch
      %41 = sbr.rel (0) target = $region41
    $region40: #{tpu_custom_call.1} parent=1 // pred_region
      _
    $region41: #{tpu_custom_call.1} parent=1 // pred_fallthru
      _
    // Predicated region
    $region42: #{tpu_custom_call.1} parent=1 // pred_check
      _
    $region43: #{tpu_custom_call.1} parent=1 // pred_check_branch
      %43 = sbr.rel (0) target = $region45
    $region44: #{tpu_custom_call.1} parent=1 // pred_region
      _
    $region45: #{tpu_custom_call.1} parent=1 // pred_fallthru
      _
    // Predicated region
    $region46: #{tpu_custom_call.1} parent=1 // pred_check
      _
    $region47: #{tpu_custom_call.1} parent=1 // pred_check_branch
      %45 = sbr.rel (0) target = $region49
    $region48: #{tpu_custom_call.1} parent=1 // pred_region
      _
    $region49: #{tpu_custom_call.1} parent=1 // pred_fallthru
      _
    // Predicated region
    $region50: #{tpu_custom_call.1} parent=1 // pred_check
      _
    $region51: #{tpu_custom_call.1} parent=1 // pred_check_branch
      %47 = sbr.rel (0) target = $region53
    $region52: #{tpu_custom_call.1} parent=1 // pred_region
      _
    $region53: #{tpu_custom_call.1} parent=1 // pred_fallthru
      _
    // Predicated region
    $region54: #{tpu_custom_call.1} parent=1 // pred_check
      _
    $region55: #{tpu_custom_call.1} parent=1 // pred_check_branch
      %49 = sbr.rel (0) target = $region57
    $region56: #{tpu_custom_call.1} parent=1 // pred_region
      _
    $region57: #{tpu_custom_call.1} parent=1 // pred_fallthru
      _
    // Predicated region
    $region58: #{tpu_custom_call.1} parent=1 // pred_check
      _
    $region59: #{tpu_custom_call.1} parent=1 // pred_check_branch
      %51 = sbr.rel (0) target = $region61
    $region60: #{tpu_custom_call.1} parent=1 // pred_region
      _
    $region61: #{tpu_custom_call.1} parent=1 // pred_fallthru
      _
    // Predicated region
    $region62: #{tpu_custom_call.1} parent=1 // pred_check
      _
    $region63: #{tpu_custom_call.1} parent=1 // pred_check_branch
      %53 = sbr.rel (0) target = $region65
    $region64: #{tpu_custom_call.1} parent=1 // pred_region
      _
    $region65: #{tpu_custom_call.1} parent=1 // pred_fallthru
      _
    %v55 = vld [vmem:[%s0] sm:$0xff]
    %v56 = vld [vmem:[%s0 + $0x8] sm:$0xff]
    %v57 = vld [vmem:[%s0 + $0x10] sm:$0xff]
    %v58 = vld [vmem:[%s0 + $0x18] sm:$0xff]
    %v59 = vld [vmem:[%s0 + $0x20] sm:$0xff]
    %v60 = vld [vmem:[%s0 + $0x28] sm:$0xff]
    %v61 = vld [vmem:[%s0 + $0x30] sm:$0xff]
    %v62 = vld [vmem:[%s0 + $0x38] sm:$0xff]
    %v63 = vld [vmem:[%s1] sm:$0x1]
    %v64 = vld [vmem:[%s2] sm:$0x1]
    %vm65 = vcmask 261120
    %v66 = vsel %vm65, %v55, 0.0
    %67 = vadd.xlane.f32.xlu0 %v66
    %v68 = vpop.xlane.xlu0 %67
    %v69 = vsel %vm65, %v56, 0.0
    %70 = vadd.xlane.f32.xlu0 %v69
    %v71 = vpop.xlane.xlu0 %70
    %v72 = vsel %vm65, %v57, 0.0
    %73 = vadd.xlane.f32.xlu0 %v72
    %v74 = vpop.xlane.xlu0 %73
    %v75 = vsel %vm65, %v58, 0.0
    %76 = vadd.xlane.f32.xlu0 %v75
    %v77 = vpop.xlane.xlu0 %76
    %v78 = vsel %vm65, %v59, 0.0
    %79 = vadd.xlane.f32.xlu0 %v78
    %v80 = vpop.xlane.xlu0 %79
    %v81 = vsel %vm65, %v60, 0.0
    %82 = vadd.xlane.f32.xlu0 %v81
    %v83 = vpop.xlane.xlu0 %82
    %v84 = vsel %vm65, %v61, 0.0
    %85 = vadd.xlane.f32.xlu0 %v84
    %v86 = vpop.xlane.xlu0 %85
    %v87 = vsel %vm65, %v62, 0.0
    %88 = vadd.xlane.f32.xlu0 %v87
    %v89 = vpop.xlane.xlu0 %88
    %v90 = vrcp.pop 32.0
    %v91 = vmul.f32 32.0, %v90
    %v92 = vsub.f32 1.0, %v91
    %v93 = vmul.f32 %v90, %v92
    %v94 = vadd.f32 %v90, %v93
    %vm95 = vweird.f32 %v90
    %v96 = vsel %vm95, %v90, %v94
    %v97 = vmul.f32 %v68, %v96
    %v98 = vmul.f32 %v71, %v96
    %v99 = vmul.f32 %v74, %v96
    %v100 = vmul.f32 %v77, %v96
    %v101 = vmul.f32 %v80, %v96
    %v102 = vmul.f32 %v83, %v96
    %v103 = vmul.f32 %v86, %v96
    %v104 = vmul.f32 %v89, %v96
    %v105 = vsub.f32 %v55, %v97
    %v106 = vsub.f32 %v56, %v98
    %v107 = vsub.f32 %v57, %v99
    %v108 = vsub.f32 %v58, %v100
    %v109 = vsub.f32 %v59, %v101
    %v110 = vsub.f32 %v60, %v102
    %v111 = vsub.f32 %v61, %v103
    %v112 = vsub.f32 %v62, %v104
    %v113 = vmul.f32 %v105, %v105
    %v114 = vmul.f32 %v106, %v106
    %v115 = vmul.f32 %v107, %v107
    %v116 = vmul.f32 %v108, %v108
    %v117 = vmul.f32 %v109, %v109
    %v118 = vmul.f32 %v110, %v110
    %v119 = vmul.f32 %v111, %v111
    %v120 = vmul.f32 %v112, %v112
    %v121 = vsel %vm65, %v113, 0.0
    %122 = vadd.xlane.f32.xlu0 %v121
    %v123 = vpop.xlane.xlu0 %122
    %v124 = vsel %vm65, %v114, 0.0
    %125 = vadd.xlane.f32.xlu0 %v124
    %v126 = vpop.xlane.xlu0 %125
    %v127 = vsel %vm65, %v115, 0.0
    %128 = vadd.xlane.f32.xlu0 %v127
    %v129 = vpop.xlane.xlu0 %128
    %v130 = vsel %vm65, %v116, 0.0
    %131 = vadd.xlane.f32.xlu0 %v130
    %v132 = vpop.xlane.xlu0 %131
    %v133 = vsel %vm65, %v117, 0.0
    %134 = vadd.xlane.f32.xlu0 %v133
    %v135 = vpop.xlane.xlu0 %134
    %v136 = vsel %vm65, %v118, 0.0
    %137 = vadd.xlane.f32.xlu0 %v136
    %v138 = vpop.xlane.xlu0 %137
    %v139 = vsel %vm65, %v119, 0.0
    %140 = vadd.xlane.f32.xlu0 %v139
    %v141 = vpop.xlane.xlu0 %140
    %v142 = vsel %vm65, %v120, 0.0
    %143 = vadd.xlane.f32.xlu0 %v142
    %v144 = vpop.xlane.xlu0 %143
    %v145 = vmul.f32 %v123, %v96
    %v146 = vmul.f32 %v126, %v96
    %v147 = vmul.f32 %v129, %v96
    %v148 = vmul.f32 %v132, %v96
    %v149 = vmul.f32 %v135, %v96
    %v150 = vmul.f32 %v138, %v96
    %v151 = vmul.f32 %v141, %v96
    %v152 = vmul.f32 %v144, %v96
    %v153 = vadd.f32 %v145, 1e-05
    %v154 = vadd.f32 %v146, 1e-05
    %v155 = vadd.f32 %v147, 1e-05
    %v156 = vadd.f32 %v148, 1e-05
    %v157 = vadd.f32 %v149, 1e-05
    %v158 = vadd.f32 %v150, 1e-05
    %v159 = vadd.f32 %v151, 1e-05
    %v160 = vadd.f32 %v152, 1e-05
    %v161 = vrsqrt.pop %v153
    %v162 = vmul.f32 %v161, %v153
    %v163 = vmul.f32 %v162, %v161
    %v164 = vmul.f32 0.5, %v163
    %v165 = vsub.f32 1.5, %v164
    %v166 = vmul.f32 %v161, %v165
    %vm167 = vweird.f32 %v153
    %vm168 = vweird.f32 %v161
    %vm169 = vmor %vm167, %vm168
    %v170 = vsel %vm169, %v161, %v166
    %v171 = vrsqrt.pop %v154
    %v172 = vmul.f32 %v171, %v154
    %v173 = vmul.f32 %v172, %v171
    %v174 = vmul.f32 0.5, %v173
    %v175 = vsub.f32 1.5, %v174
    %v176 = vmul.f32 %v171, %v175
    %vm177 = vweird.f32 %v154
    %vm178 = vweird.f32 %v171
    %vm179 = vmor %vm177, %vm178
    %v180 = vsel %vm179, %v171, %v176
    %v181 = vrsqrt.pop %v155
    %v182 = vmul.f32 %v181, %v155
    %v183 = vmul.f32 %v182, %v181
    %v184 = vmul.f32 0.5, %v183
    %v185 = vsub.f32 1.5, %v184
    %v186 = vmul.f32 %v181, %v185
    %vm187 = vweird.f32 %v155
    %vm188 = vweird.f32 %v181
    %vm189 = vmor %vm187, %vm188
    %v190 = vsel %vm189, %v181, %v186
    %v191 = vrsqrt.pop %v156
    %v192 = vmul.f32 %v191, %v156
    %v193 = vmul.f32 %v192, %v191
    %v194 = vmul.f32 0.5, %v193
    %v195 = vsub.f32 1.5, %v194
    %v196 = vmul.f32 %v191, %v195
    %vm197 = vweird.f32 %v156
    %vm198 = vweird.f32 %v191
    %vm199 = vmor %vm197, %vm198
    %v200 = vsel %vm199, %v191, %v196
    %v201 = vrsqrt.pop %v157
    %v202 = vmul.f32 %v201, %v157
    %v203 = vmul.f32 %v202, %v201
    %v204 = vmul.f32 0.5, %v203
    %v205 = vsub.f32 1.5, %v204
    %v206 = vmul.f32 %v201, %v205
    %vm207 = vweird.f32 %v157
    %vm208 = vweird.f32 %v201
    %vm209 = vmor %vm207, %vm208
    %v210 = vsel %vm209, %v201, %v206
    %v211 = vrsqrt.pop %v158
    %v212 = vmul.f32 %v211, %v158
    %v213 = vmul.f32 %v212, %v211
    %v214 = vmul.f32 0.5, %v213
    %v215 = vsub.f32 1.5, %v214
    %v216 = vmul.f32 %v211, %v215
    %vm217 = vweird.f32 %v158
    %vm218 = vweird.f32 %v211
    %vm219 = vmor %vm217, %vm218
    %v220 = vsel %vm219, %v211, %v216
    %v221 = vrsqrt.pop %v159
    %v222 = vmul.f32 %v221, %v159
    %v223 = vmul.f32 %v222, %v221
    %v224 = vmul.f32 0.5, %v223
    %v225 = vsub.f32 1.5, %v224
    %v226 = vmul.f32 %v221, %v225
    %vm227 = vweird.f32 %v159
    %vm228 = vweird.f32 %v221
    %vm229 = vmor %vm227, %vm228
    %v230 = vsel %vm229, %v221, %v226
    %v231 = vrsqrt.pop %v160
    %v232 = vmul.f32 %v231, %v160
    %v233 = vmul.f32 %v232, %v231
    %v234 = vmul.f32 0.5, %v233
    %v235 = vsub.f32 1.5, %v234
    %v236 = vmul.f32 %v231, %v235
    %vm237 = vweird.f32 %v160
    %vm238 = vweird.f32 %v231
    %vm239 = vmor %vm237, %vm238
    %v240 = vsel %vm239, %v231, %v236
    %v241 = vmul.f32 %v105, %v170
    %v242 = vmul.f32 %v106, %v180
    %v243 = vmul.f32 %v107, %v190
    %v244 = vmul.f32 %v108, %v200
    %v245 = vmul.f32 %v109, %v210
    %v246 = vmul.f32 %v110, %v220
    %v247 = vmul.f32 %v111, %v230
    %v248 = vmul.f32 %v112, %v240
    %v250 = vperm.slane %v63, 0
    %v252 = vmul.f32 %v241, %v250
    %v253 = vmul.f32 %v242, %v250
    %v254 = vmul.f32 %v243, %v250
    %v255 = vmul.f32 %v244, %v250
    %v256 = vmul.f32 %v245, %v250
    %v257 = vmul.f32 %v246, %v250
    %v258 = vmul.f32 %v247, %v250
    %v259 = vmul.f32 %v248, %v250
    %v261 = vperm.slane %v64, 0
    %v263 = vadd.f32 %v252, %v261
    %v264 = vadd.f32 %v253, %v261
    %v265 = vadd.f32 %v254, %v261
    %v266 = vadd.f32 %v255, %v261
    %v267 = vadd.f32 %v256, %v261
    %v268 = vadd.f32 %v257, %v261
    %v269 = vadd.f32 %v258, %v261
    %v270 = vadd.f32 %v259, %v261
    %v271 = vpack.c.bf16 %v264, %v263
    %v272 = vpack.c.bf16 %v266, %v265
    %v273 = vpack.c.bf16 %v268, %v267
    %v274 = vpack.c.bf16 %v270, %v269
    %v275 = vld [vmem:[%s3] sm:$0xf]
    %v276 = vld [vmem:[%s3 + $0x4] sm:$0xf]
    %v277 = vld [vmem:[%s3 + $0x8] sm:$0xf]
    %v278 = vld [vmem:[%s3 + $0xc] sm:$0xf]
    %v279 = vld [vmem:[%s4] sm:$0x1]
    %v281 = vperm.slane %v279, 0
    %v287 = vunpack.c.l.b16 %v275
    %v288 = vunpack.c.l.b16 %v276
    %v289 = vunpack.c.l.b16 %v277
    %v290 = vunpack.c.l.b16 %v278
    %v291 = vpack.c.b16 %v288, %v287
    %v292 = vpack.c.b16 %v290, %v289
    %v296 = vsel %vm65, %v271, 0
    %v299 = vsel %vm65, %v272, 0
    %v302 = vsel %vm65, %v273, 0
    %v305 = vsel %vm65, %v274, 0
    %307 = vmatpush.bf16.msra.mxu0 0
    %308 = vmatpush.bf16.msra.mxu0 0
    %309 = vmatpush.bf16.msra.mxu0 0
    %310 = vmatpush.bf16.msra.mxu0 0
    %311 = vmatpush.bf16.msra.mxu0 0
    %312 = vmatpush.bf16.msra.mxu0 0
    %313 = vmatpush.bf16.msra.mxu0 %v292
    %314 = vmatpush.bf16.msra.mxu0 %v291
    %315 = vmatmul.bf16.gmra.mxu0 %v296
    %v316 = vpop.f32.mrf.mxu0
    %v317 = vadd.f32 %v281, %v316
    %v318 = vpop.f32.mrf.mxu0
    %v319 = vadd.f32 %v281, %v318
    %320 = vmatmul.bf16.gmra.mxu0 %v299
    %v321 = vpop.f32.mrf.mxu0
    %v322 = vadd.f32 %v281, %v321
    %v323 = vpop.f32.mrf.mxu0
    %v324 = vadd.f32 %v281, %v323
    %325 = vmatmul.bf16.gmra.mxu0 %v302
    %v326 = vpop.f32.mrf.mxu0
    %v327 = vadd.f32 %v281, %v326
    %v328 = vpop.f32.mrf.mxu0
    %v329 = vadd.f32 %v281, %v328
    %330 = vmatmul.bf16.gmra.mxu0 %v305
    %v331 = vpop.f32.mrf.mxu0
    %v332 = vadd.f32 %v281, %v331
    %v333 = vpop.f32.mrf.mxu0
    %v334 = vadd.f32 %v281, %v333
    %335 = vdwg.mxu0
    %v336 = vpack.c.bf16 %v319, %v317
    %v337 = vpack.c.bf16 %v324, %v322
    %340 = vrot.lane.b32.xlu0 %v336, 96
    %v341 = vpop.permute.xlu0 %340
    %342 = vrot.lane.b32.xlu0 %v337, 96
    %v343 = vpop.permute.xlu0 %342
    %vm344 = vcmask 64512
    %v346 = vsel %vm344, %v336, 0
    %v349 = vsel %vm344, %v337, 0
    %v352 = vsel %vm344, %v341, 0
    %v355 = vsel %vm344, %v343, 0
    %357 = vmatpush.bf16.xpose.msra.mxu0 0
    %358 = vmatpush.bf16.xpose.msra.mxu0 0
    %359 = vmatpush.bf16.xpose.msra.mxu0 0
    %360 = vmatpush.bf16.xpose.msra.mxu0 0
    %361 = vmatpush.bf16.xpose.msra.mxu0 0
    %362 = vmatpush.bf16.xpose.msra.mxu0 0
    %363 = vmatpush.bf16.xpose.msra.mxu0 %v355
    %364 = vmatpush.bf16.xpose.msra.mxu0 %v352
    %365 = vmatmul.bf16.gmra.mxu0 %v346
    %v366 = vpop.f32.mrf.mxu0
    %v367 = vadd.f32 0.0, %v366
    %v368 = vpop.f32.mrf.mxu0
    %v369 = vadd.f32 0.0, %v368
    %370 = vmatmul.bf16.gmra.mxu0 %v349
    %v371 = vpop.f32.mrf.mxu0
    %v372 = vadd.f32 0.0, %v371
    %v373 = vpop.f32.mrf.mxu0
    %v374 = vadd.f32 0.0, %v373
    %375 = vdwg.mxu0
    %v376 = vmul.f32 %v367, 0.35355338
    %v377 = vmul.f32 %v369, 0.35355338
    %v378 = vmul.f32 %v372, 0.35355338
    %v379 = vmul.f32 %v374, 0.35355338
    %v380 = vsel %vm65, %v376, -inf
    %381 = vmax.xlane.f32.xlu0 %v380
    %v382 = vpop.xlane.xlu0 %381
    %v383 = vsel %vm65, %v377, -inf
    %384 = vmax.xlane.f32.xlu0 %v383
    %v385 = vpop.xlane.xlu0 %384
    %v386 = vsel %vm65, %v378, -inf
    %387 = vmax.xlane.f32.xlu0 %v386
    %v388 = vpop.xlane.xlu0 %387
    %v389 = vsel %vm65, %v379, -inf
    %390 = vmax.xlane.f32.xlu0 %v389
    %v391 = vpop.xlane.xlu0 %390
    %v392 = vsub.f32 %v376, %v382
    %v393 = vsub.f32 %v377, %v385
    %v394 = vsub.f32 %v378, %v388
    %v395 = vsub.f32 %v379, %v391
    %v396 = vmul.f32 %v392, 1.442695
    %v397 = vpow.pop %v396
    %v398 = vmul.f32 %v393, 1.442695
    %v399 = vpow.pop %v398
    %v400 = vmul.f32 %v394, 1.442695
    %v401 = vpow.pop %v400
    %v402 = vmul.f32 %v395, 1.442695
    %v403 = vpow.pop %v402
    %v404 = vsel %vm65, %v397, 0.0
    %405 = vadd.xlane.f32.xlu0 %v404
    %v406 = vpop.xlane.xlu0 %405
    %v407 = vsel %vm65, %v399, 0.0
    %408 = vadd.xlane.f32.xlu0 %v407
    %v409 = vpop.xlane.xlu0 %408
    %v410 = vsel %vm65, %v401, 0.0
    %411 = vadd.xlane.f32.xlu0 %v410
    %v412 = vpop.xlane.xlu0 %411
    %v413 = vsel %vm65, %v403, 0.0
    %414 = vadd.xlane.f32.xlu0 %v413
    %v415 = vpop.xlane.xlu0 %414
    %v416 = vrcp.pop %v406
    %v417 = vrcp.pop %v409
    %v418 = vrcp.pop %v412
    %v419 = vrcp.pop %v415
    %v420 = vmul.f32 %v397, %v416
    %v421 = vmul.f32 %v399, %v417
    %v422 = vmul.f32 %v401, %v418
    %v423 = vmul.f32 %v403, %v419
    %v424 = vpack.c.bf16 %v421, %v420
    %v425 = vpack.c.bf16 %v423, %v422
    %426 = vrot.lane.b32.xlu0 %v336, 64
    %v427 = vpop.permute.xlu0 %426
    %428 = vrot.lane.b32.xlu0 %v337, 64
    %v429 = vpop.permute.xlu0 %428
    %v433 = vsel %vm65, %v424, 0
    %v436 = vsel %vm65, %v425, 0
    %438 = vmatpush.bf16.msra.mxu0 0
    %439 = vmatpush.bf16.msra.mxu0 0
    %440 = vmatpush.bf16.msra.mxu0 0
    %441 = vmatpush.bf16.msra.mxu0 0
    %442 = vmatpush.bf16.msra.mxu0 0
    %443 = vmatpush.bf16.msra.mxu0 0
    %444 = vmatpush.bf16.msra.mxu0 %v429
    %445 = vmatpush.bf16.msra.mxu0 %v427
    %446 = vmatmul.bf16.gmra.mxu0 %v433
    %v447 = vpop.f32.mrf.mxu0
    %v448 = vadd.f32 0.0, %v447
    %v449 = vpop.f32.mrf.mxu0
    %v450 = vadd.f32 0.0, %v449
    %451 = vmatmul.bf16.gmra.mxu0 %v436
    %v452 = vpop.f32.mrf.mxu0
    %v453 = vadd.f32 0.0, %v452
    %v454 = vpop.f32.mrf.mxu0
    %v455 = vadd.f32 0.0, %v454
    %456 = vdwg.mxu0
    %v457 = vpack.c.bf16 %v450, %v448
    %v458 = vpack.c.bf16 %v455, %v453
    %v459 = vld [vmem:[%s5] sm:$0xf]
    %460 = vrot.lane.b32.xlu0 %v336, 120
    %v461 = vpop.permute.xlu0 %460
    %462 = vrot.lane.b32.xlu0 %v337, 120
    %v463 = vpop.permute.xlu0 %462
    %464 = vrot.lane.b32.xlu0 %v336, 88
    %v465 = vpop.permute.xlu0 %464
    %466 = vrot.lane.b32.xlu0 %v337, 88
    %v467 = vpop.permute.xlu0 %466
    %v469 = vsel %vm344, %v461, 0
    %v472 = vsel %vm344, %v463, 0
    %v475 = vsel %vm344, %v465, 0
    %v478 = vsel %vm344, %v467, 0
    %480 = vmatpush.bf16.xpose.msra.mxu0 0
    %481 = vmatpush.bf16.xpose.msra.mxu0 0
    %482 = vmatpush.bf16.xpose.msra.mxu0 0
    %483 = vmatpush.bf16.xpose.msra.mxu0 0
    %484 = vmatpush.bf16.xpose.msra.mxu0 0
    %485 = vmatpush.bf16.xpose.msra.mxu0 0
    %486 = vmatpush.bf16.xpose.msra.mxu0 %v478
    %487 = vmatpush.bf16.xpose.msra.mxu0 %v475
    %488 = vmatmul.bf16.gmra.mxu0 %v469
    %v489 = vpop.f32.mrf.mxu0
    %v490 = vadd.f32 0.0, %v489
    %v491 = vpop.f32.mrf.mxu0
    %v492 = vadd.f32 0.0, %v491
    %493 = vmatmul.bf16.gmra.mxu0 %v472
    %v494 = vpop.f32.mrf.mxu0
    %v495 = vadd.f32 0.0, %v494
    %v496 = vpop.f32.mrf.mxu0
    %v497 = vadd.f32 0.0, %v496
    %498 = vdwg.mxu0
    %v499 = vmul.f32 %v490, 0.35355338
    %v500 = vmul.f32 %v492, 0.35355338
    %v501 = vmul.f32 %v495, 0.35355338
    %v502 = vmul.f32 %v497, 0.35355338
    %v503 = vsel %vm65, %v499, -inf
    %504 = vmax.xlane.f32.xlu0 %v503
    %v505 = vpop.xlane.xlu0 %504
    %v506 = vsel %vm65, %v500, -inf
    %507 = vmax.xlane.f32.xlu0 %v506
    %v508 = vpop.xlane.xlu0 %507
    %v509 = vsel %vm65, %v501, -inf
    %510 = vmax.xlane.f32.xlu0 %v509
    %v511 = vpop.xlane.xlu0 %510
    %v512 = vsel %vm65, %v502, -inf
    %513 = vmax.xlane.f32.xlu0 %v512
    %v514 = vpop.xlane.xlu0 %513
    %v515 = vsub.f32 %v499, %v505
    %v516 = vsub.f32 %v500, %v508
    %v517 = vsub.f32 %v501, %v511
    %v518 = vsub.f32 %v502, %v514
    %v519 = vmul.f32 %v515, 1.442695
    %v520 = vpow.pop %v519
    %v521 = vmul.f32 %v516, 1.442695
    %v522 = vpow.pop %v521
    %v523 = vmul.f32 %v517, 1.442695
    %v524 = vpow.pop %v523
    %v525 = vmul.f32 %v518, 1.442695
    %v526 = vpow.pop %v525
    %v527 = vsel %vm65, %v520, 0.0
    %528 = vadd.xlane.f32.xlu0 %v527
    %v529 = vpop.xlane.xlu0 %528
    %v530 = vsel %vm65, %v522, 0.0
    %531 = vadd.xlane.f32.xlu0 %v530
    %v532 = vpop.xlane.xlu0 %531
    %v533 = vsel %vm65, %v524, 0.0
    %534 = vadd.xlane.f32.xlu0 %v533
    %v535 = vpop.xlane.xlu0 %534
    %v536 = vsel %vm65, %v526, 0.0
    %537 = vadd.xlane.f32.xlu0 %v536
    %v538 = vpop.xlane.xlu0 %537
    %v539 = vrcp.pop %v529
    %v540 = vrcp.pop %v532
    %v541 = vrcp.pop %v535
    %v542 = vrcp.pop %v538
    %v543 = vmul.f32 %v520, %v539
    %v544 = vmul.f32 %v522, %v540
    %v545 = vmul.f32 %v524, %v541
    %v546 = vmul.f32 %v526, %v542
    %v547 = vpack.c.bf16 %v544, %v543
    %v548 = vpack.c.bf16 %v546, %v545
    %549 = vrot.lane.b32.xlu0 %v336, 56
    %v550 = vpop.permute.xlu0 %549
    %551 = vrot.lane.b32.xlu0 %v337, 56
    %v552 = vpop.permute.xlu0 %551
    %v556 = vsel %vm65, %v547, 0
    %v559 = vsel %vm65, %v548, 0
    %561 = vmatpush.bf16.msra.mxu0 0
    %562 = vmatpush.bf16.msra.mxu0 0
    %563 = vmatpush.bf16.msra.mxu0 0
    %564 = vmatpush.bf16.msra.mxu0 0
    %565 = vmatpush.bf16.msra.mxu0 0
    %566 = vmatpush.bf16.msra.mxu0 0
    %567 = vmatpush.bf16.msra.mxu0 %v552
    %568 = vmatpush.bf16.msra.mxu0 %v550
    %569 = vmatmul.bf16.gmra.mxu0 %v556
    %v570 = vpop.f32.mrf.mxu0
    %v571 = vadd.f32 0.0, %v570
    %v572 = vpop.f32.mrf.mxu0
    %v573 = vadd.f32 0.0, %v572
    %574 = vmatmul.bf16.gmra.mxu0 %v559
    %v575 = vpop.f32.mrf.mxu0
    %v576 = vadd.f32 0.0, %v575
    %v577 = vpop.f32.mrf.mxu0
    %v578 = vadd.f32 0.0, %v577
    %579 = vdwg.mxu0
    %v580 = vpack.c.bf16 %v573, %v571
    %v581 = vpack.c.bf16 %v578, %v576
    %s582 = scalar_lea.vmem %s5, 4
    %v583 = vld [vmem:[%s582] sm:$0xf]
    %v585 = vsel %vm344, %v580, 0
    %v588 = vsel %vm344, %v581, 0
    %vm590 = vcmask 1043456
    %v592 = vsel %vm590, %v583, 0
    %594 = vmatpush.bf16.msra.mxu0 0
    %595 = vmatpush.bf16.msra.mxu0 0
    %596 = vmatpush.bf16.msra.mxu0 0
    %597 = vmatpush.bf16.msra.mxu0 0
    %598 = vmatpush.bf16.msra.mxu0 0
    %599 = vmatpush.bf16.msra.mxu0 0
    %600 = vmatpush.bf16.msra.mxu0 0
    %601 = vmatpush.bf16.msra.mxu0 %v592
    %602 = vmatmul.bf16.gmra.mxu0 %v585
    %v603 = vpop.f32.mrf.mxu0
    %v604 = vadd.f32 0.0, %v603
    %v605 = vpop.f32.mrf.mxu0
    %v606 = vadd.f32 0.0, %v605
    %607 = vmatmul.bf16.gmra.mxu0 %v588
    %v608 = vpop.f32.mrf.mxu0
    %v609 = vadd.f32 0.0, %v608
    %v610 = vpop.f32.mrf.mxu0
    %v611 = vadd.f32 0.0, %v610
    %612 = vdwg.mxu0
    %v614 = vsel %vm344, %v457, 0
    %v617 = vsel %vm344, %v458, 0
    %v620 = vsel %vm590, %v459, 0
    %622 = vmatpush.bf16.msra.mxu0 0
    %623 = vmatpush.bf16.msra.mxu0 0
    %624 = vmatpush.bf16.msra.mxu0 0
    %625 = vmatpush.bf16.msra.mxu0 0
    %626 = vmatpush.bf16.msra.mxu0 0
    %627 = vmatpush.bf16.msra.mxu0 0
    %628 = vmatpush.bf16.msra.mxu0 0
    %629 = vmatpush.bf16.msra.mxu0 %v620
    %630 = vmatmul.bf16.gmra.mxu0 %v614
    %v631 = vpop.f32.mrf.mxu0
    %v632 = vadd.f32 %v604, %v631
    %v633 = vpop.f32.mrf.mxu0
    %v634 = vadd.f32 %v606, %v633
    %635 = vmatmul.bf16.gmra.mxu0 %v617
    %v636 = vpop.f32.mrf.mxu0
    %v637 = vadd.f32 %v609, %v636
    %v638 = vpop.f32.mrf.mxu0
    %v639 = vadd.f32 %v611, %v638
    %640 = vdwg.mxu0
    %641 = vrot.lane.b32.xlu0 %v336, 112
    %v642 = vpop.permute.xlu0 %641
    %643 = vrot.lane.b32.xlu0 %v337, 112
    %v644 = vpop.permute.xlu0 %643
    %645 = vrot.lane.b32.xlu0 %v336, 80
    %v646 = vpop.permute.xlu0 %645
    %647 = vrot.lane.b32.xlu0 %v337, 80
    %v648 = vpop.permute.xlu0 %647
    %v650 = vsel %vm344, %v642, 0
    %v653 = vsel %vm344, %v644, 0
    %v656 = vsel %vm344, %v646, 0
    %v659 = vsel %vm344, %v648, 0
    %661 = vmatpush.bf16.xpose.msra.mxu0 0
    %662 = vmatpush.bf16.xpose.msra.mxu0 0
    %663 = vmatpush.bf16.xpose.msra.mxu0 0
    %664 = vmatpush.bf16.xpose.msra.mxu0 0
    %665 = vmatpush.bf16.xpose.msra.mxu0 0
    %666 = vmatpush.bf16.xpose.msra.mxu0 0
    %667 = vmatpush.bf16.xpose.msra.mxu0 %v659
    %668 = vmatpush.bf16.xpose.msra.mxu0 %v656
    %669 = vmatmul.bf16.gmra.mxu0 %v650
    %v670 = vpop.f32.mrf.mxu0
    %v671 = vadd.f32 0.0, %v670
    %v672 = vpop.f32.mrf.mxu0
    %v673 = vadd.f32 0.0, %v672
    %674 = vmatmul.bf16.gmra.mxu0 %v653
    %v675 = vpop.f32.mrf.mxu0
    %v676 = vadd.f32 0.0, %v675
    %v677 = vpop.f32.mrf.mxu0
    %v678 = vadd.f32 0.0, %v677
    %679 = vdwg.mxu0
    %v680 = vmul.f32 %v671, 0.35355338
    %v681 = vmul.f32 %v673, 0.35355338
    %v682 = vmul.f32 %v676, 0.35355338
    %v683 = vmul.f32 %v678, 0.35355338
    %v684 = vsel %vm65, %v680, -inf
    %685 = vmax.xlane.f32.xlu0 %v684
    %v686 = vpop.xlane.xlu0 %685
    %v687 = vsel %vm65, %v681, -inf
    %688 = vmax.xlane.f32.xlu0 %v687
    %v689 = vpop.xlane.xlu0 %688
    %v690 = vsel %vm65, %v682, -inf
    %691 = vmax.xlane.f32.xlu0 %v690
    %v692 = vpop.xlane.xlu0 %691
    %v693 = vsel %vm65, %v683, -inf
    %694 = vmax.xlane.f32.xlu0 %v693
    %v695 = vpop.xlane.xlu0 %694
    %v696 = vsub.f32 %v680, %v686
    %v697 = vsub.f32 %v681, %v689
    %v698 = vsub.f32 %v682, %v692
    %v699 = vsub.f32 %v683, %v695
    %v700 = vmul.f32 %v696, 1.442695
    %v701 = vpow.pop %v700
    %v702 = vmul.f32 %v697, 1.442695
    %v703 = vpow.pop %v702
    %v704 = vmul.f32 %v698, 1.442695
    %v705 = vpow.pop %v704
    %v706 = vmul.f32 %v699, 1.442695
    %v707 = vpow.pop %v706
    %v708 = vsel %vm65, %v701, 0.0
    %709 = vadd.xlane.f32.xlu0 %v708
    %v710 = vpop.xlane.xlu0 %709
    %v711 = vsel %vm65, %v703, 0.0
    %712 = vadd.xlane.f32.xlu0 %v711
    %v713 = vpop.xlane.xlu0 %712
    %v714 = vsel %vm65, %v705, 0.0
    %715 = vadd.xlane.f32.xlu0 %v714
    %v716 = vpop.xlane.xlu0 %715
    %v717 = vsel %vm65, %v707, 0.0
    %718 = vadd.xlane.f32.xlu0 %v717
    %v719 = vpop.xlane.xlu0 %718
    %v720 = vrcp.pop %v710
    %v721 = vrcp.pop %v713
    %v722 = vrcp.pop %v716
    %v723 = vrcp.pop %v719
    %v724 = vmul.f32 %v701, %v720
    %v725 = vmul.f32 %v703, %v721
    %v726 = vmul.f32 %v705, %v722
    %v727 = vmul.f32 %v707, %v723
    %v728 = vpack.c.bf16 %v725, %v724
    %v729 = vpack.c.bf16 %v727, %v726
    %730 = vrot.lane.b32.xlu0 %v336, 48
    %v731 = vpop.permute.xlu0 %730
    %732 = vrot.lane.b32.xlu0 %v337, 48
    %v733 = vpop.permute.xlu0 %732
    %v737 = vsel %vm65, %v728, 0
    %v740 = vsel %vm65, %v729, 0
    %742 = vmatpush.bf16.msra.mxu0 0
    %743 = vmatpush.bf16.msra.mxu0 0
    %744 = vmatpush.bf16.msra.mxu0 0
    %745 = vmatpush.bf16.msra.mxu0 0
    %746 = vmatpush.bf16.msra.mxu0 0
    %747 = vmatpush.bf16.msra.mxu0 0
    %748 = vmatpush.bf16.msra.mxu0 %v733
    %749 = vmatpush.bf16.msra.mxu0 %v731
    %750 = vmatmul.bf16.gmra.mxu0 %v737
    %v751 = vpop.f32.mrf.mxu0
    %v752 = vadd.f32 0.0, %v751
    %v753 = vpop.f32.mrf.mxu0
    %v754 = vadd.f32 0.0, %v753
    %755 = vmatmul.bf16.gmra.mxu0 %v740
    %v756 = vpop.f32.mrf.mxu0
    %v757 = vadd.f32 0.0, %v756
    %v758 = vpop.f32.mrf.mxu0
    %v759 = vadd.f32 0.0, %v758
    %760 = vdwg.mxu0
    %v761 = vpack.c.bf16 %v754, %v752
    %v762 = vpack.c.bf16 %v759, %v757
    %s763 = scalar_lea.vmem %s5, 8
    %v764 = vld [vmem:[%s763] sm:$0xf]
    %v766 = vsel %vm344, %v761, 0
    %v769 = vsel %vm344, %v762, 0
    %v772 = vsel %vm590, %v764, 0
    %774 = vmatpush.bf16.msra.mxu0 0
    %775 = vmatpush.bf16.msra.mxu0 0
    %776 = vmatpush.bf16.msra.mxu0 0
    %777 = vmatpush.bf16.msra.mxu0 0
    %778 = vmatpush.bf16.msra.mxu0 0
    %779 = vmatpush.bf16.msra.mxu0 0
    %780 = vmatpush.bf16.msra.mxu0 0
    %781 = vmatpush.bf16.msra.mxu0 %v772
    %782 = vmatmul.bf16.gmra.mxu0 %v766
    %v783 = vpop.f32.mrf.mxu0
    %v784 = vadd.f32 0.0, %v783
    %v785 = vpop.f32.mrf.mxu0
    %v786 = vadd.f32 0.0, %v785
    %787 = vmatmul.bf16.gmra.mxu0 %v769
    %v788 = vpop.f32.mrf.mxu0
    %v789 = vadd.f32 0.0, %v788
    %v790 = vpop.f32.mrf.mxu0
    %v791 = vadd.f32 0.0, %v790
    %792 = vdwg.mxu0
    %v793 = vadd.f32 %v632, %v784
    %v794 = vadd.f32 %v634, %v786
    %v795 = vadd.f32 %v637, %v789
    %v796 = vadd.f32 %v639, %v791
    %797 = vrot.lane.b32.xlu0 %v336, 104
    %v798 = vpop.permute.xlu0 %797
    %799 = vrot.lane.b32.xlu0 %v337, 104
    %v800 = vpop.permute.xlu0 %799
    %801 = vrot.lane.b32.xlu0 %v336, 72
    %v802 = vpop.permute.xlu0 %801
    %803 = vrot.lane.b32.xlu0 %v337, 72
    %v804 = vpop.permute.xlu0 %803
    %v806 = vsel %vm344, %v798, 0
    %v809 = vsel %vm344, %v800, 0
    %v812 = vsel %vm344, %v802, 0
    %v815 = vsel %vm344, %v804, 0
    %817 = vmatpush.bf16.xpose.msra.mxu0 0
    %818 = vmatpush.bf16.xpose.msra.mxu0 0
    %819 = vmatpush.bf16.xpose.msra.mxu0 0
    %820 = vmatpush.bf16.xpose.msra.mxu0 0
    %821 = vmatpush.bf16.xpose.msra.mxu0 0
    %822 = vmatpush.bf16.xpose.msra.mxu0 0
    %823 = vmatpush.bf16.xpose.msra.mxu0 %v815
    %824 = vmatpush.bf16.xpose.msra.mxu0 %v812
    %825 = vmatmul.bf16.gmra.mxu0 %v806
    %v826 = vpop.f32.mrf.mxu0
    %v827 = vadd.f32 0.0, %v826
    %v828 = vpop.f32.mrf.mxu0
    %v829 = vadd.f32 0.0, %v828
    %830 = vmatmul.bf16.gmra.mxu0 %v809
    %v831 = vpop.f32.mrf.mxu0
    %v832 = vadd.f32 0.0, %v831
    %v833 = vpop.f32.mrf.mxu0
    %v834 = vadd.f32 0.0, %v833
    %835 = vdwg.mxu0
    %v836 = vmul.f32 %v827, 0.35355338
    %v837 = vmul.f32 %v829, 0.35355338
    %v838 = vmul.f32 %v832, 0.35355338
    %v839 = vmul.f32 %v834, 0.35355338
    %v840 = vsel %vm65, %v836, -inf
    %841 = vmax.xlane.f32.xlu0 %v840
    %v842 = vpop.xlane.xlu0 %841
    %v843 = vsel %vm65, %v837, -inf
    %844 = vmax.xlane.f32.xlu0 %v843
    %v845 = vpop.xlane.xlu0 %844
    %v846 = vsel %vm65, %v838, -inf
    %847 = vmax.xlane.f32.xlu0 %v846
    %v848 = vpop.xlane.xlu0 %847
    %v849 = vsel %vm65, %v839, -inf
    %850 = vmax.xlane.f32.xlu0 %v849
    %v851 = vpop.xlane.xlu0 %850
    %v852 = vsub.f32 %v836, %v842
    %v853 = vsub.f32 %v837, %v845
    %v854 = vsub.f32 %v838, %v848
    %v855 = vsub.f32 %v839, %v851
    %v856 = vmul.f32 %v852, 1.442695
    %v857 = vpow.pop %v856
    %v858 = vmul.f32 %v853, 1.442695
    %v859 = vpow.pop %v858
    %v860 = vmul.f32 %v854, 1.442695
    %v861 = vpow.pop %v860
    %v862 = vmul.f32 %v855, 1.442695
    %v863 = vpow.pop %v862
    %v864 = vsel %vm65, %v857, 0.0
    %865 = vadd.xlane.f32.xlu0 %v864
    %v866 = vpop.xlane.xlu0 %865
    %v867 = vsel %vm65, %v859, 0.0
    %868 = vadd.xlane.f32.xlu0 %v867
    %v869 = vpop.xlane.xlu0 %868
    %v870 = vsel %vm65, %v861, 0.0
    %871 = vadd.xlane.f32.xlu0 %v870
    %v872 = vpop.xlane.xlu0 %871
    %v873 = vsel %vm65, %v863, 0.0
    %874 = vadd.xlane.f32.xlu0 %v873
    %v875 = vpop.xlane.xlu0 %874
    %v876 = vrcp.pop %v866
    %v877 = vrcp.pop %v869
    %v878 = vrcp.pop %v872
    %v879 = vrcp.pop %v875
    %v880 = vmul.f32 %v857, %v876
    %v881 = vmul.f32 %v859, %v877
    %v882 = vmul.f32 %v861, %v878
    %v883 = vmul.f32 %v863, %v879
    %v884 = vpack.c.bf16 %v881, %v880
    %v885 = vpack.c.bf16 %v883, %v882
    %886 = vrot.lane.b32.xlu0 %v336, 40
    %v887 = vpop.permute.xlu0 %886
    %888 = vrot.lane.b32.xlu0 %v337, 40
    %v889 = vpop.permute.xlu0 %888
    %v893 = vsel %vm65, %v884, 0
    %v896 = vsel %vm65, %v885, 0
    %898 = vmatpush.bf16.msra.mxu0 0
    %899 = vmatpush.bf16.msra.mxu0 0
    %900 = vmatpush.bf16.msra.mxu0 0
    %901 = vmatpush.bf16.msra.mxu0 0
    %902 = vmatpush.bf16.msra.mxu0 0
    %903 = vmatpush.bf16.msra.mxu0 0
    %904 = vmatpush.bf16.msra.mxu0 %v889
    %905 = vmatpush.bf16.msra.mxu0 %v887
    %906 = vmatmul.bf16.gmra.mxu0 %v893
    %v907 = vpop.f32.mrf.mxu0
    %v908 = vadd.f32 0.0, %v907
    %v909 = vpop.f32.mrf.mxu0
    %v910 = vadd.f32 0.0, %v909
    %911 = vmatmul.bf16.gmra.mxu0 %v896
    %v912 = vpop.f32.mrf.mxu0
    %v913 = vadd.f32 0.0, %v912
    %v914 = vpop.f32.mrf.mxu0
    %v915 = vadd.f32 0.0, %v914
    %916 = vdwg.mxu0
    %v917 = vpack.c.bf16 %v910, %v908
    %v918 = vpack.c.bf16 %v915, %v913
    %s919 = scalar_lea.vmem %s5, 12
    %v920 = vld [vmem:[%s919] sm:$0xf]
    %v922 = vsel %vm344, %v917, 0
    %v925 = vsel %vm344, %v918, 0
    %v928 = vsel %vm590, %v920, 0
    %930 = vmatpush.bf16.msra.mxu0 0
    %931 = vmatpush.bf16.msra.mxu0 0
    %932 = vmatpush.bf16.msra.mxu0 0
    %933 = vmatpush.bf16.msra.mxu0 0
    %934 = vmatpush.bf16.msra.mxu0 0
    %935 = vmatpush.bf16.msra.mxu0 0
    %936 = vmatpush.bf16.msra.mxu0 0
    %937 = vmatpush.bf16.msra.mxu0 %v928
    %938 = vmatmul.bf16.gmra.mxu0 %v922
    %v939 = vpop.f32.mrf.mxu0
    %v940 = vadd.f32 0.0, %v939
    %v941 = vpop.f32.mrf.mxu0
    %v942 = vadd.f32 0.0, %v941
    %943 = vmatmul.bf16.gmra.mxu0 %v925
    %v944 = vpop.f32.mrf.mxu0
    %v945 = vadd.f32 0.0, %v944
    %v946 = vpop.f32.mrf.mxu0
    %v947 = vadd.f32 0.0, %v946
    %948 = vdwg.mxu0
    %v949 = vadd.f32 %v793, %v940
    %v950 = vadd.f32 %v794, %v942
    %v951 = vadd.f32 %v795, %v945
    %v952 = vadd.f32 %v796, %v947
    %v953 = vpack.c.bf16 %v329, %v327
    %v954 = vpack.c.bf16 %v334, %v332
    %957 = vrot.lane.b32.xlu0 %v953, 96
    %v958 = vpop.permute.xlu0 %957
    %959 = vrot.lane.b32.xlu0 %v954, 96
    %v960 = vpop.permute.xlu0 %959
    %v962 = vsel %vm344, %v953, 0
    %v965 = vsel %vm344, %v954, 0
    %v968 = vsel %vm344, %v958, 0
    %v971 = vsel %vm344, %v960, 0
    %973 = vmatpush.bf16.xpose.msra.mxu0 0
    %974 = vmatpush.bf16.xpose.msra.mxu0 0
    %975 = vmatpush.bf16.xpose.msra.mxu0 0
    %976 = vmatpush.bf16.xpose.msra.mxu0 0
    %977 = vmatpush.bf16.xpose.msra.mxu0 0
    %978 = vmatpush.bf16.xpose.msra.mxu0 0
    %979 = vmatpush.bf16.xpose.msra.mxu0 %v971
    %980 = vmatpush.bf16.xpose.msra.mxu0 %v968
    %981 = vmatmul.bf16.gmra.mxu0 %v962
    %v982 = vpop.f32.mrf.mxu0
    %v983 = vadd.f32 0.0, %v982
    %v984 = vpop.f32.mrf.mxu0
    %v985 = vadd.f32 0.0, %v984
    %986 = vmatmul.bf16.gmra.mxu0 %v965
    %v987 = vpop.f32.mrf.mxu0
    %v988 = vadd.f32 0.0, %v987
    %v989 = vpop.f32.mrf.mxu0
    %v990 = vadd.f32 0.0, %v989
    %991 = vdwg.mxu0
    %v992 = vmul.f32 %v983, 0.35355338
    %v993 = vmul.f32 %v985, 0.35355338
    %v994 = vmul.f32 %v988, 0.35355338
    %v995 = vmul.f32 %v990, 0.35355338
    %v996 = vsel %vm65, %v992, -inf
    %997 = vmax.xlane.f32.xlu0 %v996
    %v998 = vpop.xlane.xlu0 %997
    %v999 = vsel %vm65, %v993, -inf
    %1000 = vmax.xlane.f32.xlu0 %v999
    %v1001 = vpop.xlane.xlu0 %1000
    %v1002 = vsel %vm65, %v994, -inf
    %1003 = vmax.xlane.f32.xlu0 %v1002
    %v1004 = vpop.xlane.xlu0 %1003
    %v1005 = vsel %vm65, %v995, -inf
    %1006 = vmax.xlane.f32.xlu0 %v1005
    %v1007 = vpop.xlane.xlu0 %1006
    %v1008 = vsub.f32 %v992, %v998
    %v1009 = vsub.f32 %v993, %v1001
    %v1010 = vsub.f32 %v994, %v1004
    %v1011 = vsub.f32 %v995, %v1007
    %v1012 = vmul.f32 %v1008, 1.442695
    %v1013 = vpow.pop %v1012
    %v1014 = vmul.f32 %v1009, 1.442695
    %v1015 = vpow.pop %v1014
    %v1016 = vmul.f32 %v1010, 1.442695
    %v1017 = vpow.pop %v1016
    %v1018 = vmul.f32 %v1011, 1.442695
    %v1019 = vpow.pop %v1018
    %v1020 = vsel %vm65, %v1013, 0.0
    %1021 = vadd.xlane.f32.xlu0 %v1020
    %v1022 = vpop.xlane.xlu0 %1021
    %v1023 = vsel %vm65, %v1015, 0.0
    %1024 = vadd.xlane.f32.xlu0 %v1023
    %v1025 = vpop.xlane.xlu0 %1024
    %v1026 = vsel %vm65, %v1017, 0.0
    %1027 = vadd.xlane.f32.xlu0 %v1026
    %v1028 = vpop.xlane.xlu0 %1027
    %v1029 = vsel %vm65, %v1019, 0.0
    %1030 = vadd.xlane.f32.xlu0 %v1029
    %v1031 = vpop.xlane.xlu0 %1030
    %v1032 = vrcp.pop %v1022
    %v1033 = vrcp.pop %v1025
    %v1034 = vrcp.pop %v1028
    %v1035 = vrcp.pop %v1031
    %v1036 = vmul.f32 %v1013, %v1032
    %v1037 = vmul.f32 %v1015, %v1033
    %v1038 = vmul.f32 %v1017, %v1034
    %v1039 = vmul.f32 %v1019, %v1035
    %v1040 = vpack.c.bf16 %v1037, %v1036
    %v1041 = vpack.c.bf16 %v1039, %v1038
    %1042 = vrot.lane.b32.xlu0 %v953, 64
    %v1043 = vpop.permute.xlu0 %1042
    %1044 = vrot.lane.b32.xlu0 %v954, 64
    %v1045 = vpop.permute.xlu0 %1044
    %v1049 = vsel %vm65, %v1040, 0
    %v1052 = vsel %vm65, %v1041, 0
    %1054 = vmatpush.bf16.msra.mxu0 0
    %1055 = vmatpush.bf16.msra.mxu0 0
    %1056 = vmatpush.bf16.msra.mxu0 0
    %1057 = vmatpush.bf16.msra.mxu0 0
    %1058 = vmatpush.bf16.msra.mxu0 0
    %1059 = vmatpush.bf16.msra.mxu0 0
    %1060 = vmatpush.bf16.msra.mxu0 %v1045
    %1061 = vmatpush.bf16.msra.mxu0 %v1043
    %1062 = vmatmul.bf16.gmra.mxu0 %v1049
    %v1063 = vpop.f32.mrf.mxu0
    %v1064 = vadd.f32 0.0, %v1063
    %v1065 = vpop.f32.mrf.mxu0
    %v1066 = vadd.f32 0.0, %v1065
    %1067 = vmatmul.bf16.gmra.mxu0 %v1052
    %v1068 = vpop.f32.mrf.mxu0
    %v1069 = vadd.f32 0.0, %v1068
    %v1070 = vpop.f32.mrf.mxu0
    %v1071 = vadd.f32 0.0, %v1070
    %1072 = vdwg.mxu0
    %v1073 = vpack.c.bf16 %v1066, %v1064
    %v1074 = vpack.c.bf16 %v1071, %v1069
    %1075 = vrot.lane.b32.xlu0 %v953, 120
    %v1076 = vpop.permute.xlu0 %1075
    %1077 = vrot.lane.b32.xlu0 %v954, 120
    %v1078 = vpop.permute.xlu0 %1077
    %1079 = vrot.lane.b32.xlu0 %v953, 88
    %v1080 = vpop.permute.xlu0 %1079
    %1081 = vrot.lane.b32.xlu0 %v954, 88
    %v1082 = vpop.permute.xlu0 %1081
    %v1084 = vsel %vm344, %v1076, 0
    %v1087 = vsel %vm344, %v1078, 0
    %v1090 = vsel %vm344, %v1080, 0
    %v1093 = vsel %vm344, %v1082, 0
    %1095 = vmatpush.bf16.xpose.msra.mxu0 0
    %1096 = vmatpush.bf16.xpose.msra.mxu0 0
    %1097 = vmatpush.bf16.xpose.msra.mxu0 0
    %1098 = vmatpush.bf16.xpose.msra.mxu0 0
    %1099 = vmatpush.bf16.xpose.msra.mxu0 0
    %1100 = vmatpush.bf16.xpose.msra.mxu0 0
    %1101 = vmatpush.bf16.xpose.msra.mxu0 %v1093
    %1102 = vmatpush.bf16.xpose.msra.mxu0 %v1090
    %1103 = vmatmul.bf16.gmra.mxu0 %v1084
    %v1104 = vpop.f32.mrf.mxu0
    %v1105 = vadd.f32 0.0, %v1104
    %v1106 = vpop.f32.mrf.mxu0
    %v1107 = vadd.f32 0.0, %v1106
    %1108 = vmatmul.bf16.gmra.mxu0 %v1087
    %v1109 = vpop.f32.mrf.mxu0
    %v1110 = vadd.f32 0.0, %v1109
    %v1111 = vpop.f32.mrf.mxu0
    %v1112 = vadd.f32 0.0, %v1111
    %1113 = vdwg.mxu0
    %v1114 = vmul.f32 %v1105, 0.35355338
    %v1115 = vmul.f32 %v1107, 0.35355338
    %v1116 = vmul.f32 %v1110, 0.35355338
    %v1117 = vmul.f32 %v1112, 0.35355338
    %v1118 = vsel %vm65, %v1114, -inf
    %1119 = vmax.xlane.f32.xlu0 %v1118
    %v1120 = vpop.xlane.xlu0 %1119
    %v1121 = vsel %vm65, %v1115, -inf
    %1122 = vmax.xlane.f32.xlu0 %v1121
    %v1123 = vpop.xlane.xlu0 %1122
    %v1124 = vsel %vm65, %v1116, -inf
    %1125 = vmax.xlane.f32.xlu0 %v1124
    %v1126 = vpop.xlane.xlu0 %1125
    %v1127 = vsel %vm65, %v1117, -inf
    %1128 = vmax.xlane.f32.xlu0 %v1127
    %v1129 = vpop.xlane.xlu0 %1128
    %v1130 = vsub.f32 %v1114, %v1120
    %v1131 = vsub.f32 %v1115, %v1123
    %v1132 = vsub.f32 %v1116, %v1126
    %v1133 = vsub.f32 %v1117, %v1129
    %v1134 = vmul.f32 %v1130, 1.442695
    %v1135 = vpow.pop %v1134
    %v1136 = vmul.f32 %v1131, 1.442695
    %v1137 = vpow.pop %v1136
    %v1138 = vmul.f32 %v1132, 1.442695
    %v1139 = vpow.pop %v1138
    %v1140 = vmul.f32 %v1133, 1.442695
    %v1141 = vpow.pop %v1140
    %v1142 = vsel %vm65, %v1135, 0.0
    %1143 = vadd.xlane.f32.xlu0 %v1142
    %v1144 = vpop.xlane.xlu0 %1143
    %v1145 = vsel %vm65, %v1137, 0.0
    %1146 = vadd.xlane.f32.xlu0 %v1145
    %v1147 = vpop.xlane.xlu0 %1146
    %v1148 = vsel %vm65, %v1139, 0.0
    %1149 = vadd.xlane.f32.xlu0 %v1148
    %v1150 = vpop.xlane.xlu0 %1149
    %v1151 = vsel %vm65, %v1141, 0.0
    %1152 = vadd.xlane.f32.xlu0 %v1151
    %v1153 = vpop.xlane.xlu0 %1152
    %v1154 = vrcp.pop %v1144
    %v1155 = vrcp.pop %v1147
    %v1156 = vrcp.pop %v1150
    %v1157 = vrcp.pop %v1153
    %v1158 = vmul.f32 %v1135, %v1154
    %v1159 = vmul.f32 %v1137, %v1155
    %v1160 = vmul.f32 %v1139, %v1156
    %v1161 = vmul.f32 %v1141, %v1157
    %v1162 = vpack.c.bf16 %v1159, %v1158
    %v1163 = vpack.c.bf16 %v1161, %v1160
    %1164 = vrot.lane.b32.xlu0 %v953, 56
    %v1165 = vpop.permute.xlu0 %1164
    %1166 = vrot.lane.b32.xlu0 %v954, 56
    %v1167 = vpop.permute.xlu0 %1166
    %v1171 = vsel %vm65, %v1162, 0
    %v1174 = vsel %vm65, %v1163, 0
    %1176 = vmatpush.bf16.msra.mxu0 0
    %1177 = vmatpush.bf16.msra.mxu0 0
    %1178 = vmatpush.bf16.msra.mxu0 0
    %1179 = vmatpush.bf16.msra.mxu0 0
    %1180 = vmatpush.bf16.msra.mxu0 0
    %1181 = vmatpush.bf16.msra.mxu0 0
    %1182 = vmatpush.bf16.msra.mxu0 %v1167
    %1183 = vmatpush.bf16.msra.mxu0 %v1165
    %1184 = vmatmul.bf16.gmra.mxu0 %v1171
    %v1185 = vpop.f32.mrf.mxu0
    %v1186 = vadd.f32 0.0, %v1185
    %v1187 = vpop.f32.mrf.mxu0
    %v1188 = vadd.f32 0.0, %v1187
    %1189 = vmatmul.bf16.gmra.mxu0 %v1174
    %v1190 = vpop.f32.mrf.mxu0
    %v1191 = vadd.f32 0.0, %v1190
    %v1192 = vpop.f32.mrf.mxu0
    %v1193 = vadd.f32 0.0, %v1192
    %1194 = vdwg.mxu0
    %v1195 = vpack.c.bf16 %v1188, %v1186
    %v1196 = vpack.c.bf16 %v1193, %v1191
    %v1198 = vsel %vm344, %v1195, 0
    %v1201 = vsel %vm344, %v1196, 0
    %1203 = vmatpush.bf16.msra.mxu0 0
    %1204 = vmatpush.bf16.msra.mxu0 0
    %1205 = vmatpush.bf16.msra.mxu0 0
    %1206 = vmatpush.bf16.msra.mxu0 0
    %1207 = vmatpush.bf16.msra.mxu0 0
    %1208 = vmatpush.bf16.msra.mxu0 0
    %1209 = vmatpush.bf16.msra.mxu0 0
    %1210 = vmatpush.bf16.msra.mxu0 %v592
    %1211 = vmatmul.bf16.gmra.mxu0 %v1198
    %v1212 = vpop.f32.mrf.mxu0
    %v1213 = vadd.f32 0.0, %v1212
    %v1214 = vpop.f32.mrf.mxu0
    %v1215 = vadd.f32 0.0, %v1214
    %1216 = vmatmul.bf16.gmra.mxu0 %v1201
    %v1217 = vpop.f32.mrf.mxu0
    %v1218 = vadd.f32 0.0, %v1217
    %v1219 = vpop.f32.mrf.mxu0
    %v1220 = vadd.f32 0.0, %v1219
    %1221 = vdwg.mxu0
    %v1223 = vsel %vm344, %v1073, 0
    %v1226 = vsel %vm344, %v1074, 0
    %1228 = vmatpush.bf16.msra.mxu0 0
    %1229 = vmatpush.bf16.msra.mxu0 0
    %1230 = vmatpush.bf16.msra.mxu0 0
    %1231 = vmatpush.bf16.msra.mxu0 0
    %1232 = vmatpush.bf16.msra.mxu0 0
    %1233 = vmatpush.bf16.msra.mxu0 0
    %1234 = vmatpush.bf16.msra.mxu0 0
    %1235 = vmatpush.bf16.msra.mxu0 %v620
    %1236 = vmatmul.bf16.gmra.mxu0 %v1223
    %v1237 = vpop.f32.mrf.mxu0
    %v1238 = vadd.f32 %v1213, %v1237
    %v1239 = vpop.f32.mrf.mxu0
    %v1240 = vadd.f32 %v1215, %v1239
    %1241 = vmatmul.bf16.gmra.mxu0 %v1226
    %v1242 = vpop.f32.mrf.mxu0
    %v1243 = vadd.f32 %v1218, %v1242
    %v1244 = vpop.f32.mrf.mxu0
    %v1245 = vadd.f32 %v1220, %v1244
    %1246 = vdwg.mxu0
    %1247 = vrot.lane.b32.xlu0 %v953, 112
    %v1248 = vpop.permute.xlu0 %1247
    %1249 = vrot.lane.b32.xlu0 %v954, 112
    %v1250 = vpop.permute.xlu0 %1249
    %1251 = vrot.lane.b32.xlu0 %v953, 80
    %v1252 = vpop.permute.xlu0 %1251
    %1253 = vrot.lane.b32.xlu0 %v954, 80
    %v1254 = vpop.permute.xlu0 %1253
    %v1256 = vsel %vm344, %v1248, 0
    %v1259 = vsel %vm344, %v1250, 0
    %v1262 = vsel %vm344, %v1252, 0
    %v1265 = vsel %vm344, %v1254, 0
    %1267 = vmatpush.bf16.xpose.msra.mxu0 0
    %1268 = vmatpush.bf16.xpose.msra.mxu0 0
    %1269 = vmatpush.bf16.xpose.msra.mxu0 0
    %1270 = vmatpush.bf16.xpose.msra.mxu0 0
    %1271 = vmatpush.bf16.xpose.msra.mxu0 0
    %1272 = vmatpush.bf16.xpose.msra.mxu0 0
    %1273 = vmatpush.bf16.xpose.msra.mxu0 %v1265
    %1274 = vmatpush.bf16.xpose.msra.mxu0 %v1262
    %1275 = vmatmul.bf16.gmra.mxu0 %v1256
    %v1276 = vpop.f32.mrf.mxu0
    %v1277 = vadd.f32 0.0, %v1276
    %v1278 = vpop.f32.mrf.mxu0
    %v1279 = vadd.f32 0.0, %v1278
    %1280 = vmatmul.bf16.gmra.mxu0 %v1259
    %v1281 = vpop.f32.mrf.mxu0
    %v1282 = vadd.f32 0.0, %v1281
    %v1283 = vpop.f32.mrf.mxu0
    %v1284 = vadd.f32 0.0, %v1283
    %1285 = vdwg.mxu0
    %v1286 = vmul.f32 %v1277, 0.35355338
    %v1287 = vmul.f32 %v1279, 0.35355338
    %v1288 = vmul.f32 %v1282, 0.35355338
    %v1289 = vmul.f32 %v1284, 0.35355338
    %v1290 = vsel %vm65, %v1286, -inf
    %1291 = vmax.xlane.f32.xlu0 %v1290
    %v1292 = vpop.xlane.xlu0 %1291
    %v1293 = vsel %vm65, %v1287, -inf
    %1294 = vmax.xlane.f32.xlu0 %v1293
    %v1295 = vpop.xlane.xlu0 %1294
    %v1296 = vsel %vm65, %v1288, -inf
    %1297 = vmax.xlane.f32.xlu0 %v1296
    %v1298 = vpop.xlane.xlu0 %1297
    %v1299 = vsel %vm65, %v1289, -inf
    %1300 = vmax.xlane.f32.xlu0 %v1299
    %v1301 = vpop.xlane.xlu0 %1300
    %v1302 = vsub.f32 %v1286, %v1292
    %v1303 = vsub.f32 %v1287, %v1295
    %v1304 = vsub.f32 %v1288, %v1298
    %v1305 = vsub.f32 %v1289, %v1301
    %v1306 = vmul.f32 %v1302, 1.442695
    %v1307 = vpow.pop %v1306
    %v1308 = vmul.f32 %v1303, 1.442695
    %v1309 = vpow.pop %v1308
    %v1310 = vmul.f32 %v1304, 1.442695
    %v1311 = vpow.pop %v1310
    %v1312 = vmul.f32 %v1305, 1.442695
    %v1313 = vpow.pop %v1312
    %v1314 = vsel %vm65, %v1307, 0.0
    %1315 = vadd.xlane.f32.xlu0 %v1314
    %v1316 = vpop.xlane.xlu0 %1315
    %v1317 = vsel %vm65, %v1309, 0.0
    %1318 = vadd.xlane.f32.xlu0 %v1317
    %v1319 = vpop.xlane.xlu0 %1318
    %v1320 = vsel %vm65, %v1311, 0.0
    %1321 = vadd.xlane.f32.xlu0 %v1320
    %v1322 = vpop.xlane.xlu0 %1321
    %v1323 = vsel %vm65, %v1313, 0.0
    %1324 = vadd.xlane.f32.xlu0 %v1323
    %v1325 = vpop.xlane.xlu0 %1324
    %v1326 = vrcp.pop %v1316
    %v1327 = vrcp.pop %v1319
    %v1328 = vrcp.pop %v1322
    %v1329 = vrcp.pop %v1325
    %v1330 = vmul.f32 %v1307, %v1326
    %v1331 = vmul.f32 %v1309, %v1327
    %v1332 = vmul.f32 %v1311, %v1328
    %v1333 = vmul.f32 %v1313, %v1329
    %v1334 = vpack.c.bf16 %v1331, %v1330
    %v1335 = vpack.c.bf16 %v1333, %v1332
    %1336 = vrot.lane.b32.xlu0 %v953, 48
    %v1337 = vpop.permute.xlu0 %1336
    %1338 = vrot.lane.b32.xlu0 %v954, 48
    %v1339 = vpop.permute.xlu0 %1338
    %v1343 = vsel %vm65, %v1334, 0
    %v1346 = vsel %vm65, %v1335, 0
    %1348 = vmatpush.bf16.msra.mxu0 0
    %1349 = vmatpush.bf16.msra.mxu0 0
    %1350 = vmatpush.bf16.msra.mxu0 0
    %1351 = vmatpush.bf16.msra.mxu0 0
    %1352 = vmatpush.bf16.msra.mxu0 0
    %1353 = vmatpush.bf16.msra.mxu0 0
    %1354 = vmatpush.bf16.msra.mxu0 %v1339
    %1355 = vmatpush.bf16.msra.mxu0 %v1337
    %1356 = vmatmul.bf16.gmra.mxu0 %v1343
    %v1357 = vpop.f32.mrf.mxu0
    %v1358 = vadd.f32 0.0, %v1357
    %v1359 = vpop.f32.mrf.mxu0
    %v1360 = vadd.f32 0.0, %v1359
    %1361 = vmatmul.bf16.gmra.mxu0 %v1346
    %v1362 = vpop.f32.mrf.mxu0
    %v1363 = vadd.f32 0.0, %v1362
    %v1364 = vpop.f32.mrf.mxu0
    %v1365 = vadd.f32 0.0, %v1364
    %1366 = vdwg.mxu0
    %v1367 = vpack.c.bf16 %v1360, %v1358
    %v1368 = vpack.c.bf16 %v1365, %v1363
    %v1370 = vsel %vm344, %v1367, 0
    %v1373 = vsel %vm344, %v1368, 0
    %1375 = vmatpush.bf16.msra.mxu0 0
    %1376 = vmatpush.bf16.msra.mxu0 0
    %1377 = vmatpush.bf16.msra.mxu0 0
    %1378 = vmatpush.bf16.msra.mxu0 0
    %1379 = vmatpush.bf16.msra.mxu0 0
    %1380 = vmatpush.bf16.msra.mxu0 0
    %1381 = vmatpush.bf16.msra.mxu0 0
    %1382 = vmatpush.bf16.msra.mxu0 %v772
    %1383 = vmatmul.bf16.gmra.mxu0 %v1370
    %v1384 = vpop.f32.mrf.mxu0
    %v1385 = vadd.f32 0.0, %v1384
    %v1386 = vpop.f32.mrf.mxu0
    %v1387 = vadd.f32 0.0, %v1386
    %1388 = vmatmul.bf16.gmra.mxu0 %v1373
    %v1389 = vpop.f32.mrf.mxu0
    %v1390 = vadd.f32 0.0, %v1389
    %v1391 = vpop.f32.mrf.mxu0
    %v1392 = vadd.f32 0.0, %v1391
    %1393 = vdwg.mxu0
    %v1394 = vadd.f32 %v1238, %v1385
    %v1395 = vadd.f32 %v1240, %v1387
    %v1396 = vadd.f32 %v1243, %v1390
    %v1397 = vadd.f32 %v1245, %v1392
    %1398 = vrot.lane.b32.xlu0 %v953, 104
    %v1399 = vpop.permute.xlu0 %1398
    %1400 = vrot.lane.b32.xlu0 %v954, 104
    %v1401 = vpop.permute.xlu0 %1400
    %1402 = vrot.lane.b32.xlu0 %v953, 72
    %v1403 = vpop.permute.xlu0 %1402
    %1404 = vrot.lane.b32.xlu0 %v954, 72
    %v1405 = vpop.permute.xlu0 %1404
    %v1407 = vsel %vm344, %v1399, 0
    %v1410 = vsel %vm344, %v1401, 0
    %v1413 = vsel %vm344, %v1403, 0
    %v1416 = vsel %vm344, %v1405, 0
    %1418 = vmatpush.bf16.xpose.msra.mxu0 0
    %1419 = vmatpush.bf16.xpose.msra.mxu0 0
    %1420 = vmatpush.bf16.xpose.msra.mxu0 0
    %1421 = vmatpush.bf16.xpose.msra.mxu0 0
    %1422 = vmatpush.bf16.xpose.msra.mxu0 0
    %1423 = vmatpush.bf16.xpose.msra.mxu0 0
    %1424 = vmatpush.bf16.xpose.msra.mxu0 %v1416
    %1425 = vmatpush.bf16.xpose.msra.mxu0 %v1413
    %1426 = vmatmul.bf16.gmra.mxu0 %v1407
    %v1427 = vpop.f32.mrf.mxu0
    %v1428 = vadd.f32 0.0, %v1427
    %v1429 = vpop.f32.mrf.mxu0
    %v1430 = vadd.f32 0.0, %v1429
    %1431 = vmatmul.bf16.gmra.mxu0 %v1410
    %v1432 = vpop.f32.mrf.mxu0
    %v1433 = vadd.f32 0.0, %v1432
    %v1434 = vpop.f32.mrf.mxu0
    %v1435 = vadd.f32 0.0, %v1434
    %1436 = vdwg.mxu0
    %v1437 = vmul.f32 %v1428, 0.35355338
    %v1438 = vmul.f32 %v1430, 0.35355338
    %v1439 = vmul.f32 %v1433, 0.35355338
    %v1440 = vmul.f32 %v1435, 0.35355338
    %v1441 = vsel %vm65, %v1437, -inf
    %1442 = vmax.xlane.f32.xlu0 %v1441
    %v1443 = vpop.xlane.xlu0 %1442
    %v1444 = vsel %vm65, %v1438, -inf
    %1445 = vmax.xlane.f32.xlu0 %v1444
    %v1446 = vpop.xlane.xlu0 %1445
    %v1447 = vsel %vm65, %v1439, -inf
    %1448 = vmax.xlane.f32.xlu0 %v1447
    %v1449 = vpop.xlane.xlu0 %1448
    %v1450 = vsel %vm65, %v1440, -inf
    %1451 = vmax.xlane.f32.xlu0 %v1450
    %v1452 = vpop.xlane.xlu0 %1451
    %v1453 = vsub.f32 %v1437, %v1443
    %v1454 = vsub.f32 %v1438, %v1446
    %v1455 = vsub.f32 %v1439, %v1449
    %v1456 = vsub.f32 %v1440, %v1452
    %v1457 = vmul.f32 %v1453, 1.442695
    %v1458 = vpow.pop %v1457
    %v1459 = vmul.f32 %v1454, 1.442695
    %v1460 = vpow.pop %v1459
    %v1461 = vmul.f32 %v1455, 1.442695
    %v1462 = vpow.pop %v1461
    %v1463 = vmul.f32 %v1456, 1.442695
    %v1464 = vpow.pop %v1463
    %v1465 = vsel %vm65, %v1458, 0.0
    %1466 = vadd.xlane.f32.xlu0 %v1465
    %v1467 = vpop.xlane.xlu0 %1466
    %v1468 = vsel %vm65, %v1460, 0.0
    %1469 = vadd.xlane.f32.xlu0 %v1468
    %v1470 = vpop.xlane.xlu0 %1469
    %v1471 = vsel %vm65, %v1462, 0.0
    %1472 = vadd.xlane.f32.xlu0 %v1471
    %v1473 = vpop.xlane.xlu0 %1472
    %v1474 = vsel %vm65, %v1464, 0.0
    %1475 = vadd.xlane.f32.xlu0 %v1474
    %v1476 = vpop.xlane.xlu0 %1475
    %v1477 = vrcp.pop %v1467
    %v1478 = vrcp.pop %v1470
    %v1479 = vrcp.pop %v1473
    %v1480 = vrcp.pop %v1476
    %v1481 = vmul.f32 %v1458, %v1477
    %v1482 = vmul.f32 %v1460, %v1478
    %v1483 = vmul.f32 %v1462, %v1479
    %v1484 = vmul.f32 %v1464, %v1480
    %v1485 = vpack.c.bf16 %v1482, %v1481
    %v1486 = vpack.c.bf16 %v1484, %v1483
    %1487 = vrot.lane.b32.xlu0 %v953, 40
    %v1488 = vpop.permute.xlu0 %1487
    %1489 = vrot.lane.b32.xlu0 %v954, 40
    %v1490 = vpop.permute.xlu0 %1489
    %v1494 = vsel %vm65, %v1485, 0
    %v1497 = vsel %vm65, %v1486, 0
    %1499 = vmatpush.bf16.msra.mxu0 0
    %1500 = vmatpush.bf16.msra.mxu0 0
    %1501 = vmatpush.bf16.msra.mxu0 0
    %1502 = vmatpush.bf16.msra.mxu0 0
    %1503 = vmatpush.bf16.msra.mxu0 0
    %1504 = vmatpush.bf16.msra.mxu0 0
    %1505 = vmatpush.bf16.msra.mxu0 %v1490
    %1506 = vmatpush.bf16.msra.mxu0 %v1488
    %1507 = vmatmul.bf16.gmra.mxu0 %v1494
    %v1508 = vpop.f32.mrf.mxu0
    %v1509 = vadd.f32 0.0, %v1508
    %v1510 = vpop.f32.mrf.mxu0
    %v1511 = vadd.f32 0.0, %v1510
    %1512 = vmatmul.bf16.gmra.mxu0 %v1497
    %v1513 = vpop.f32.mrf.mxu0
    %v1514 = vadd.f32 0.0, %v1513
    %v1515 = vpop.f32.mrf.mxu0
    %v1516 = vadd.f32 0.0, %v1515
    %1517 = vdwg.mxu0
    %v1518 = vpack.c.bf16 %v1511, %v1509
    %v1519 = vpack.c.bf16 %v1516, %v1514
    %v1521 = vsel %vm344, %v1518, 0
    %v1524 = vsel %vm344, %v1519, 0
    %1526 = vmatpush.bf16.msra.mxu0 0
    %1527 = vmatpush.bf16.msra.mxu0 0
    %1528 = vmatpush.bf16.msra.mxu0 0
    %1529 = vmatpush.bf16.msra.mxu0 0
    %1530 = vmatpush.bf16.msra.mxu0 0
    %1531 = vmatpush.bf16.msra.mxu0 0
    %1532 = vmatpush.bf16.msra.mxu0 0
    %1533 = vmatpush.bf16.msra.mxu0 %v928
    %1534 = vmatmul.bf16.gmra.mxu0 %v1521
    %v1535 = vpop.f32.mrf.mxu0
    %v1536 = vadd.f32 0.0, %v1535
    %v1537 = vpop.f32.mrf.mxu0
    %v1538 = vadd.f32 0.0, %v1537
    %1539 = vmatmul.bf16.gmra.mxu0 %v1524
    %v1540 = vpop.f32.mrf.mxu0
    %v1541 = vadd.f32 0.0, %v1540
    %v1542 = vpop.f32.mrf.mxu0
    %v1543 = vadd.f32 0.0, %v1542
    %1544 = vdwg.mxu0
    %v1545 = vadd.f32 %v1394, %v1536
    %v1546 = vadd.f32 %v1395, %v1538
    %v1547 = vadd.f32 %v1396, %v1541
    %v1548 = vadd.f32 %v1397, %v1543
    %v1549 = vld [vmem:[%s6] sm:$0x1]
    %v1551 = vperm.slane %v1549, 0
    %v1553 = vadd.f32 %v949, %v1551
    %v1554 = vadd.f32 %v950, %v1551
    %v1555 = vadd.f32 %v951, %v1551
    %v1556 = vadd.f32 %v952, %v1551
    %v1557 = vadd.f32 %v1545, %v1551
    %v1558 = vadd.f32 %v1546, %v1551
    %v1559 = vadd.f32 %v1547, %v1551
    %v1560 = vadd.f32 %v1548, %v1551
    %v1561 = vadd.f32 %v55, %v1553
    %v1562 = vadd.f32 %v56, %v1554
    %v1563 = vadd.f32 %v57, %v1555
    %v1564 = vadd.f32 %v58, %v1556
    %v1565 = vadd.f32 %v59, %v1557
    %v1566 = vadd.f32 %v60, %v1558
    %v1567 = vadd.f32 %v61, %v1559
    %v1568 = vadd.f32 %v62, %v1560
    %v1569 = vld [vmem:[%s7] sm:$0x1]
    %v1570 = vld [vmem:[%s8] sm:$0x1]
    %v1571 = vsel %vm65, %v1561, 0.0
    %1572 = vadd.xlane.f32.xlu0 %v1571
    %v1573 = vpop.xlane.xlu0 %1572
    %v1574 = vsel %vm65, %v1562, 0.0
    %1575 = vadd.xlane.f32.xlu0 %v1574
    %v1576 = vpop.xlane.xlu0 %1575
    %v1577 = vsel %vm65, %v1563, 0.0
    %1578 = vadd.xlane.f32.xlu0 %v1577
    %v1579 = vpop.xlane.xlu0 %1578
    %v1580 = vsel %vm65, %v1564, 0.0
    %1581 = vadd.xlane.f32.xlu0 %v1580
    %v1582 = vpop.xlane.xlu0 %1581
    %v1583 = vsel %vm65, %v1565, 0.0
    %1584 = vadd.xlane.f32.xlu0 %v1583
    %v1585 = vpop.xlane.xlu0 %1584
    %v1586 = vsel %vm65, %v1566, 0.0
    %1587 = vadd.xlane.f32.xlu0 %v1586
    %v1588 = vpop.xlane.xlu0 %1587
    %v1589 = vsel %vm65, %v1567, 0.0
    %1590 = vadd.xlane.f32.xlu0 %v1589
    %v1591 = vpop.xlane.xlu0 %1590
    %v1592 = vsel %vm65, %v1568, 0.0
    %1593 = vadd.xlane.f32.xlu0 %v1592
    %v1594 = vpop.xlane.xlu0 %1593
    %v1595 = vmul.f32 %v1573, %v96
    %v1596 = vmul.f32 %v1576, %v96
    %v1597 = vmul.f32 %v1579, %v96
    %v1598 = vmul.f32 %v1582, %v96
    %v1599 = vmul.f32 %v1585, %v96
    %v1600 = vmul.f32 %v1588, %v96
    %v1601 = vmul.f32 %v1591, %v96
    %v1602 = vmul.f32 %v1594, %v96
    %v1603 = vsub.f32 %v1561, %v1595
    %v1604 = vsub.f32 %v1562, %v1596
    %v1605 = vsub.f32 %v1563, %v1597
    %v1606 = vsub.f32 %v1564, %v1598
    %v1607 = vsub.f32 %v1565, %v1599
    %v1608 = vsub.f32 %v1566, %v1600
    %v1609 = vsub.f32 %v1567, %v1601
    %v1610 = vsub.f32 %v1568, %v1602
    %v1611 = vmul.f32 %v1603, %v1603
    %v1612 = vmul.f32 %v1604, %v1604
    %v1613 = vmul.f32 %v1605, %v1605
    %v1614 = vmul.f32 %v1606, %v1606
    %v1615 = vmul.f32 %v1607, %v1607
    %v1616 = vmul.f32 %v1608, %v1608
    %v1617 = vmul.f32 %v1609, %v1609
    %v1618 = vmul.f32 %v1610, %v1610
    %v1619 = vsel %vm65, %v1611, 0.0
    %1620 = vadd.xlane.f32.xlu0 %v1619
    %v1621 = vpop.xlane.xlu0 %1620
    %v1622 = vsel %vm65, %v1612, 0.0
    %1623 = vadd.xlane.f32.xlu0 %v1622
    %v1624 = vpop.xlane.xlu0 %1623
    %v1625 = vsel %vm65, %v1613, 0.0
    %1626 = vadd.xlane.f32.xlu0 %v1625
    %v1627 = vpop.xlane.xlu0 %1626
    %v1628 = vsel %vm65, %v1614, 0.0
    %1629 = vadd.xlane.f32.xlu0 %v1628
    %v1630 = vpop.xlane.xlu0 %1629
    %v1631 = vsel %vm65, %v1615, 0.0
    %1632 = vadd.xlane.f32.xlu0 %v1631
    %v1633 = vpop.xlane.xlu0 %1632
    %v1634 = vsel %vm65, %v1616, 0.0
    %1635 = vadd.xlane.f32.xlu0 %v1634
    %v1636 = vpop.xlane.xlu0 %1635
    %v1637 = vsel %vm65, %v1617, 0.0
    %1638 = vadd.xlane.f32.xlu0 %v1637
    %v1639 = vpop.xlane.xlu0 %1638
    %v1640 = vsel %vm65, %v1618, 0.0
    %1641 = vadd.xlane.f32.xlu0 %v1640
    %v1642 = vpop.xlane.xlu0 %1641
    %v1643 = vmul.f32 %v1621, %v96
    %v1644 = vmul.f32 %v1624, %v96
    %v1645 = vmul.f32 %v1627, %v96
    %v1646 = vmul.f32 %v1630, %v96
    %v1647 = vmul.f32 %v1633, %v96
    %v1648 = vmul.f32 %v1636, %v96
    %v1649 = vmul.f32 %v1639, %v96
    %v1650 = vmul.f32 %v1642, %v96
    %v1651 = vadd.f32 %v1643, 1e-05
    %v1652 = vadd.f32 %v1644, 1e-05
    %v1653 = vadd.f32 %v1645, 1e-05
    %v1654 = vadd.f32 %v1646, 1e-05
    %v1655 = vadd.f32 %v1647, 1e-05
    %v1656 = vadd.f32 %v1648, 1e-05
    %v1657 = vadd.f32 %v1649, 1e-05
    %v1658 = vadd.f32 %v1650, 1e-05
    %v1659 = vrsqrt.pop %v1651
    %v1660 = vmul.f32 %v1659, %v1651
    %v1661 = vmul.f32 %v1660, %v1659
    %v1662 = vmul.f32 0.5, %v1661
    %v1663 = vsub.f32 1.5, %v1662
    %v1664 = vmul.f32 %v1659, %v1663
    %vm1665 = vweird.f32 %v1651
    %vm1666 = vweird.f32 %v1659
    %vm1667 = vmor %vm1665, %vm1666
    %v1668 = vsel %vm1667, %v1659, %v1664
    %v1669 = vrsqrt.pop %v1652
    %v1670 = vmul.f32 %v1669, %v1652
    %v1671 = vmul.f32 %v1670, %v1669
    %v1672 = vmul.f32 0.5, %v1671
    %v1673 = vsub.f32 1.5, %v1672
    %v1674 = vmul.f32 %v1669, %v1673
    %vm1675 = vweird.f32 %v1652
    %vm1676 = vweird.f32 %v1669
    %vm1677 = vmor %vm1675, %vm1676
    %v1678 = vsel %vm1677, %v1669, %v1674
    %v1679 = vrsqrt.pop %v1653
    %v1680 = vmul.f32 %v1679, %v1653
    %v1681 = vmul.f32 %v1680, %v1679
    %v1682 = vmul.f32 0.5, %v1681
    %v1683 = vsub.f32 1.5, %v1682
    %v1684 = vmul.f32 %v1679, %v1683
    %vm1685 = vweird.f32 %v1653
    %vm1686 = vweird.f32 %v1679
    %vm1687 = vmor %vm1685, %vm1686
    %v1688 = vsel %vm1687, %v1679, %v1684
    %v1689 = vrsqrt.pop %v1654
    %v1690 = vmul.f32 %v1689, %v1654
    %v1691 = vmul.f32 %v1690, %v1689
    %v1692 = vmul.f32 0.5, %v1691
    %v1693 = vsub.f32 1.5, %v1692
    %v1694 = vmul.f32 %v1689, %v1693
    %vm1695 = vweird.f32 %v1654
    %vm1696 = vweird.f32 %v1689
    %vm1697 = vmor %vm1695, %vm1696
    %v1698 = vsel %vm1697, %v1689, %v1694
    %v1699 = vrsqrt.pop %v1655
    %v1700 = vmul.f32 %v1699, %v1655
    %v1701 = vmul.f32 %v1700, %v1699
    %v1702 = vmul.f32 0.5, %v1701
    %v1703 = vsub.f32 1.5, %v1702
    %v1704 = vmul.f32 %v1699, %v1703
    %vm1705 = vweird.f32 %v1655
    %vm1706 = vweird.f32 %v1699
    %vm1707 = vmor %vm1705, %vm1706
    %v1708 = vsel %vm1707, %v1699, %v1704
    %v1709 = vrsqrt.pop %v1656
    %v1710 = vmul.f32 %v1709, %v1656
    %v1711 = vmul.f32 %v1710, %v1709
    %v1712 = vmul.f32 0.5, %v1711
    %v1713 = vsub.f32 1.5, %v1712
    %v1714 = vmul.f32 %v1709, %v1713
    %vm1715 = vweird.f32 %v1656
    %vm1716 = vweird.f32 %v1709
    %vm1717 = vmor %vm1715, %vm1716
    %v1718 = vsel %vm1717, %v1709, %v1714
    %v1719 = vrsqrt.pop %v1657
    %v1720 = vmul.f32 %v1719, %v1657
    %v1721 = vmul.f32 %v1720, %v1719
    %v1722 = vmul.f32 0.5, %v1721
    %v1723 = vsub.f32 1.5, %v1722
    %v1724 = vmul.f32 %v1719, %v1723
    %vm1725 = vweird.f32 %v1657
    %vm1726 = vweird.f32 %v1719
    %vm1727 = vmor %vm1725, %vm1726
    %v1728 = vsel %vm1727, %v1719, %v1724
    %v1729 = vrsqrt.pop %v1658
    %v1730 = vmul.f32 %v1729, %v1658
    %v1731 = vmul.f32 %v1730, %v1729
    %v1732 = vmul.f32 0.5, %v1731
    %v1733 = vsub.f32 1.5, %v1732
    %v1734 = vmul.f32 %v1729, %v1733
    %vm1735 = vweird.f32 %v1658
    %vm1736 = vweird.f32 %v1729
    %vm1737 = vmor %vm1735, %vm1736
    %v1738 = vsel %vm1737, %v1729, %v1734
    %v1739 = vmul.f32 %v1603, %v1668
    %v1740 = vmul.f32 %v1604, %v1678
    %v1741 = vmul.f32 %v1605, %v1688
    %v1742 = vmul.f32 %v1606, %v1698
    %v1743 = vmul.f32 %v1607, %v1708
    %v1744 = vmul.f32 %v1608, %v1718
    %v1745 = vmul.f32 %v1609, %v1728
    %v1746 = vmul.f32 %v1610, %v1738
    %v1748 = vperm.slane %v1569, 0
    %v1750 = vmul.f32 %v1739, %v1748
    %v1751 = vmul.f32 %v1740, %v1748
    %v1752 = vmul.f32 %v1741, %v1748
    %v1753 = vmul.f32 %v1742, %v1748
    %v1754 = vmul.f32 %v1743, %v1748
    %v1755 = vmul.f32 %v1744, %v1748
    %v1756 = vmul.f32 %v1745, %v1748
    %v1757 = vmul.f32 %v1746, %v1748
    %v1759 = vperm.slane %v1570, 0
    %v1761 = vadd.f32 %v1750, %v1759
    %v1762 = vadd.f32 %v1751, %v1759
    %v1763 = vadd.f32 %v1752, %v1759
    %v1764 = vadd.f32 %v1753, %v1759
    %v1765 = vadd.f32 %v1754, %v1759
    %v1766 = vadd.f32 %v1755, %v1759
    %v1767 = vadd.f32 %v1756, %v1759
    %v1768 = vadd.f32 %v1757, %v1759
    %v1769 = vpack.c.bf16 %v1762, %v1761
    %v1770 = vpack.c.bf16 %v1764, %v1763
    %v1771 = vpack.c.bf16 %v1766, %v1765
    %v1772 = vpack.c.bf16 %v1768, %v1767
    %v1773 = vld [vmem:[%s9] sm:$0xf]
    %v1774 = vld [vmem:[%s9 + $0x4] sm:$0xf]
    %v1775 = vld [vmem:[%s9 + $0x8] sm:$0xf]
    %v1776 = vld [vmem:[%s9 + $0xc] sm:$0xf]
    %v1777 = vld [vmem:[%s10] sm:$0x1]
    %v1779 = vperm.slane %v1777, 0
    %v1785 = vunpack.c.l.b16 %v1773
    %v1786 = vunpack.c.l.b16 %v1774
    %v1787 = vunpack.c.l.b16 %v1775
    %v1788 = vunpack.c.l.b16 %v1776
    %v1789 = vpack.c.b16 %v1786, %v1785
    %v1790 = vpack.c.b16 %v1788, %v1787
    %v1794 = vsel %vm65, %v1769, 0
    %v1797 = vsel %vm65, %v1770, 0
    %v1800 = vsel %vm65, %v1771, 0
    %v1803 = vsel %vm65, %v1772, 0
    %1805 = vmatpush.bf16.msra.mxu0 0
    %1806 = vmatpush.bf16.msra.mxu0 0
    %1807 = vmatpush.bf16.msra.mxu0 0
    %1808 = vmatpush.bf16.msra.mxu0 0
    %1809 = vmatpush.bf16.msra.mxu0 0
    %1810 = vmatpush.bf16.msra.mxu0 0
    %1811 = vmatpush.bf16.msra.mxu0 %v1790
    %1812 = vmatpush.bf16.msra.mxu0 %v1789
    %1813 = vmatmul.bf16.gmra.mxu0 %v1794
    %v1814 = vpop.f32.mrf.mxu0
    %v1815 = vadd.f32 %v1779, %v1814
    %v1816 = vpop.f32.mrf.mxu0
    %v1817 = vadd.f32 %v1779, %v1816
    %1818 = vmatmul.bf16.gmra.mxu0 %v1797
    %v1819 = vpop.f32.mrf.mxu0
    %v1820 = vadd.f32 %v1779, %v1819
    %v1821 = vpop.f32.mrf.mxu0
    %v1822 = vadd.f32 %v1779, %v1821
    %1823 = vmatmul.bf16.gmra.mxu0 %v1800
    %v1824 = vpop.f32.mrf.mxu0
    %v1825 = vadd.f32 %v1779, %v1824
    %v1826 = vpop.f32.mrf.mxu0
    %v1827 = vadd.f32 %v1779, %v1826
    %1828 = vmatmul.bf16.gmra.mxu0 %v1803
    %v1829 = vpop.f32.mrf.mxu0
    %v1830 = vadd.f32 %v1779, %v1829
    %v1831 = vpop.f32.mrf.mxu0
    %v1832 = vadd.f32 %v1779, %v1831
    %1833 = vdwg.mxu0
    %v1834 = vmul.f32 %v1815, 0.5
    %v1835 = vmul.f32 %v1817, 0.5
    %v1836 = vmul.f32 %v1820, 0.5
    %v1837 = vmul.f32 %v1822, 0.5
    %v1838 = vmul.f32 %v1825, 0.5
    %v1839 = vmul.f32 %v1827, 0.5
    %v1840 = vmul.f32 %v1830, 0.5
    %v1841 = vmul.f32 %v1832, 0.5
    %v1842 = vmul.f32 %v1815, 0.044715
    %v1843 = vmul.f32 %v1817, 0.044715
    %v1844 = vmul.f32 %v1820, 0.044715
    %v1845 = vmul.f32 %v1822, 0.044715
    %v1846 = vmul.f32 %v1825, 0.044715
    %v1847 = vmul.f32 %v1827, 0.044715
    %v1848 = vmul.f32 %v1830, 0.044715
    %v1849 = vmul.f32 %v1832, 0.044715
    %v1850 = vmul.f32 %v1842, %v1815
    %v1851 = vmul.f32 %v1843, %v1817
    %v1852 = vmul.f32 %v1844, %v1820
    %v1853 = vmul.f32 %v1845, %v1822
    %v1854 = vmul.f32 %v1846, %v1825
    %v1855 = vmul.f32 %v1847, %v1827
    %v1856 = vmul.f32 %v1848, %v1830
    %v1857 = vmul.f32 %v1849, %v1832
    %v1858 = vmul.f32 %v1850, %v1815
    %v1859 = vmul.f32 %v1851, %v1817
    %v1860 = vmul.f32 %v1852, %v1820
    %v1861 = vmul.f32 %v1853, %v1822
    %v1862 = vmul.f32 %v1854, %v1825
    %v1863 = vmul.f32 %v1855, %v1827
    %v1864 = vmul.f32 %v1856, %v1830
    %v1865 = vmul.f32 %v1857, %v1832
    %v1866 = vadd.f32 %v1815, %v1858
    %v1867 = vadd.f32 %v1817, %v1859
    %v1868 = vadd.f32 %v1820, %v1860
    %v1869 = vadd.f32 %v1822, %v1861
    %v1870 = vadd.f32 %v1825, %v1862
    %v1871 = vadd.f32 %v1827, %v1863
    %v1872 = vadd.f32 %v1830, %v1864
    %v1873 = vadd.f32 %v1832, %v1865
    %v1874 = vmul.f32 %v1866, 0.7978846
    %v1875 = vmul.f32 %v1867, 0.7978846
    %v1876 = vmul.f32 %v1868, 0.7978846
    %v1877 = vmul.f32 %v1869, 0.7978846
    %v1878 = vmul.f32 %v1870, 0.7978846
    %v1879 = vmul.f32 %v1871, 0.7978846
    %v1880 = vmul.f32 %v1872, 0.7978846
    %v1881 = vmul.f32 %v1873, 0.7978846
    %v1882 = vtanh.pop %v1874
    %v1883 = vtanh.pop %v1875
    %v1884 = vtanh.pop %v1876
    %v1885 = vtanh.pop %v1877
    %v1886 = vtanh.pop %v1878
    %v1887 = vtanh.pop %v1879
    %v1888 = vtanh.pop %v1880
    %v1889 = vtanh.pop %v1881
    %v1890 = vadd.f32 %v1882, 1.0
    %v1891 = vadd.f32 %v1883, 1.0
    %v1892 = vadd.f32 %v1884, 1.0
    %v1893 = vadd.f32 %v1885, 1.0
    %v1894 = vadd.f32 %v1886, 1.0
    %v1895 = vadd.f32 %v1887, 1.0
    %v1896 = vadd.f32 %v1888, 1.0
    %v1897 = vadd.f32 %v1889, 1.0
    %v1898 = vmul.f32 %v1834, %v1890
    %v1899 = vmul.f32 %v1835, %v1891
    %v1900 = vmul.f32 %v1836, %v1892
    %v1901 = vmul.f32 %v1837, %v1893
    %v1902 = vmul.f32 %v1838, %v1894
    %v1903 = vmul.f32 %v1839, %v1895
    %v1904 = vmul.f32 %v1840, %v1896
    %v1905 = vmul.f32 %v1841, %v1897
    %v1906 = vpack.c.bf16 %v1899, %v1898
    %v1907 = vpack.c.bf16 %v1901, %v1900
    %v1908 = vpack.c.bf16 %v1903, %v1902
    %v1909 = vpack.c.bf16 %v1905, %v1904
    %v1910 = vld [vmem:[%s11] sm:$0xf]
    %v1911 = vld [vmem:[%s11 + $0x4] sm:$0xf]
    %v1912 = vld [vmem:[%s11 + $0x8] sm:$0xf]
    %v1913 = vld [vmem:[%s11 + $0xc] sm:$0xf]
    %v1914 = vld [vmem:[%s11 + $0x10] sm:$0xf]
    %v1915 = vld [vmem:[%s11 + $0x14] sm:$0xf]
    %v1916 = vld [vmem:[%s11 + $0x18] sm:$0xf]
    %v1917 = vld [vmem:[%s11 + $0x1c] sm:$0xf]
    %v1918 = vld [vmem:[%s11 + $0x20] sm:$0xf]
    %v1919 = vld [vmem:[%s11 + $0x24] sm:$0xf]
    %v1920 = vld [vmem:[%s11 + $0x28] sm:$0xf]
    %v1921 = vld [vmem:[%s11 + $0x2c] sm:$0xf]
    %v1922 = vld [vmem:[%s11 + $0x30] sm:$0xf]
    %v1923 = vld [vmem:[%s11 + $0x34] sm:$0xf]
    %v1924 = vld [vmem:[%s11 + $0x38] sm:$0xf]
    %v1925 = vld [vmem:[%s11 + $0x3c] sm:$0xf]
    %v1926 = vld [vmem:[%s12] sm:$0x1]
    %v1928 = vperm.slane %v1926, 0
    %v1946 = vunpack.c.l.b16 %v1910
    %v1947 = vunpack.c.l.b16 %v1911
    %v1948 = vunpack.c.l.b16 %v1912
    %v1949 = vunpack.c.l.b16 %v1913
    %v1950 = vunpack.c.l.b16 %v1914
    %v1951 = vunpack.c.l.b16 %v1915
    %v1952 = vunpack.c.l.b16 %v1916
    %v1953 = vunpack.c.l.b16 %v1917
    %v1954 = vunpack.c.l.b16 %v1918
    %v1955 = vunpack.c.l.b16 %v1919
    %v1956 = vunpack.c.l.b16 %v1920
    %v1957 = vunpack.c.l.b16 %v1921
    %v1958 = vunpack.c.l.b16 %v1922
    %v1959 = vunpack.c.l.b16 %v1923
    %v1960 = vunpack.c.l.b16 %v1924
    %v1961 = vunpack.c.l.b16 %v1925
    %v1962 = vpack.c.b16 %v1947, %v1946
    %v1963 = vpack.c.b16 %v1949, %v1948
    %v1964 = vpack.c.b16 %v1951, %v1950
    %v1965 = vpack.c.b16 %v1953, %v1952
    %v1966 = vpack.c.b16 %v1955, %v1954
    %v1967 = vpack.c.b16 %v1957, %v1956
    %v1968 = vpack.c.b16 %v1959, %v1958
    %v1969 = vpack.c.b16 %v1961, %v1960
    %1978 = vmatpush.bf16.msra.mxu0 %v1969
    %1979 = vmatpush.bf16.msra.mxu0 %v1968
    %1980 = vmatpush.bf16.msra.mxu0 %v1967
    %1981 = vmatpush.bf16.msra.mxu0 %v1966
    %1982 = vmatpush.bf16.msra.mxu0 %v1965
    %1983 = vmatpush.bf16.msra.mxu0 %v1964
    %1984 = vmatpush.bf16.msra.mxu0 %v1963
    %1985 = vmatpush.bf16.msra.mxu0 %v1962
    %1986 = vmatmul.bf16.gmra.mxu0 %v1906
    %v1987 = vpop.f32.mrf.mxu0
    %v1988 = vadd.f32 %v1928, %v1987
    %v1989 = vpop.f32.mrf.mxu0
    %v1990 = vadd.f32 %v1928, %v1989
    %1991 = vmatmul.bf16.gmra.mxu0 %v1907
    %v1992 = vpop.f32.mrf.mxu0
    %v1993 = vadd.f32 %v1928, %v1992
    %v1994 = vpop.f32.mrf.mxu0
    %v1995 = vadd.f32 %v1928, %v1994
    %1996 = vmatmul.bf16.gmra.mxu0 %v1908
    %v1997 = vpop.f32.mrf.mxu0
    %v1998 = vadd.f32 %v1928, %v1997
    %v1999 = vpop.f32.mrf.mxu0
    %v2000 = vadd.f32 %v1928, %v1999
    %2001 = vmatmul.bf16.gmra.mxu0 %v1909
    %v2002 = vpop.f32.mrf.mxu0
    %v2003 = vadd.f32 %v1928, %v2002
    %v2004 = vpop.f32.mrf.mxu0
    %v2005 = vadd.f32 %v1928, %v2004
    %2006 = vdwg.mxu0
    %v2007 = vadd.f32 %v1561, %v1988
    %v2008 = vadd.f32 %v1562, %v1990
    %v2009 = vadd.f32 %v1563, %v1993
    %v2010 = vadd.f32 %v1564, %v1995
    %v2011 = vadd.f32 %v1565, %v1998
    %v2012 = vadd.f32 %v1566, %v2000
    %v2013 = vadd.f32 %v1567, %v2003
    %v2014 = vadd.f32 %v1568, %v2005
    %s2015 = scalar_lea.vmem %s1, 1
    %v2016 = vld [vmem:[%s2015] sm:$0x1]
    %s2017 = scalar_lea.vmem %s2, 1
    %v2018 = vld [vmem:[%s2017] sm:$0x1]
    %v2019 = vsel %vm65, %v2007, 0.0
    %2020 = vadd.xlane.f32.xlu0 %v2019
    %v2021 = vpop.xlane.xlu0 %2020
    %v2022 = vsel %vm65, %v2008, 0.0
    %2023 = vadd.xlane.f32.xlu0 %v2022
    %v2024 = vpop.xlane.xlu0 %2023
    %v2025 = vsel %vm65, %v2009, 0.0
    %2026 = vadd.xlane.f32.xlu0 %v2025
    %v2027 = vpop.xlane.xlu0 %2026
    %v2028 = vsel %vm65, %v2010, 0.0
    %2029 = vadd.xlane.f32.xlu0 %v2028
    %v2030 = vpop.xlane.xlu0 %2029
    %v2031 = vsel %vm65, %v2011, 0.0
    %2032 = vadd.xlane.f32.xlu0 %v2031
    %v2033 = vpop.xlane.xlu0 %2032
    %v2034 = vsel %vm65, %v2012, 0.0
    %2035 = vadd.xlane.f32.xlu0 %v2034
    %v2036 = vpop.xlane.xlu0 %2035
    %v2037 = vsel %vm65, %v2013, 0.0
    %2038 = vadd.xlane.f32.xlu0 %v2037
    %v2039 = vpop.xlane.xlu0 %2038
    %v2040 = vsel %vm65, %v2014, 0.0
    %2041 = vadd.xlane.f32.xlu0 %v2040
    %v2042 = vpop.xlane.xlu0 %2041
    %v2043 = vmul.f32 %v2021, %v96
    %v2044 = vmul.f32 %v2024, %v96
    %v2045 = vmul.f32 %v2027, %v96
    %v2046 = vmul.f32 %v2030, %v96
    %v2047 = vmul.f32 %v2033, %v96
    %v2048 = vmul.f32 %v2036, %v96
    %v2049 = vmul.f32 %v2039, %v96
    %v2050 = vmul.f32 %v2042, %v96
    %v2051 = vsub.f32 %v2007, %v2043
    %v2052 = vsub.f32 %v2008, %v2044
    %v2053 = vsub.f32 %v2009, %v2045
    %v2054 = vsub.f32 %v2010, %v2046
    %v2055 = vsub.f32 %v2011, %v2047
    %v2056 = vsub.f32 %v2012, %v2048
    %v2057 = vsub.f32 %v2013, %v2049
    %v2058 = vsub.f32 %v2014, %v2050
    %v2059 = vmul.f32 %v2051, %v2051
    %v2060 = vmul.f32 %v2052, %v2052
    %v2061 = vmul.f32 %v2053, %v2053
    %v2062 = vmul.f32 %v2054, %v2054
    %v2063 = vmul.f32 %v2055, %v2055
    %v2064 = vmul.f32 %v2056, %v2056
    %v2065 = vmul.f32 %v2057, %v2057
    %v2066 = vmul.f32 %v2058, %v2058
    %v2067 = vsel %vm65, %v2059, 0.0
    %2068 = vadd.xlane.f32.xlu0 %v2067
    %v2069 = vpop.xlane.xlu0 %2068
    %v2070 = vsel %vm65, %v2060, 0.0
    %2071 = vadd.xlane.f32.xlu0 %v2070
    %v2072 = vpop.xlane.xlu0 %2071
    %v2073 = vsel %vm65, %v2061, 0.0
    %2074 = vadd.xlane.f32.xlu0 %v2073
    %v2075 = vpop.xlane.xlu0 %2074
    %v2076 = vsel %vm65, %v2062, 0.0
    %2077 = vadd.xlane.f32.xlu0 %v2076
    %v2078 = vpop.xlane.xlu0 %2077
    %v2079 = vsel %vm65, %v2063, 0.0
    %2080 = vadd.xlane.f32.xlu0 %v2079
    %v2081 = vpop.xlane.xlu0 %2080
    %v2082 = vsel %vm65, %v2064, 0.0
    %2083 = vadd.xlane.f32.xlu0 %v2082
    %v2084 = vpop.xlane.xlu0 %2083
    %v2085 = vsel %vm65, %v2065, 0.0
    %2086 = vadd.xlane.f32.xlu0 %v2085
    %v2087 = vpop.xlane.xlu0 %2086
    %v2088 = vsel %vm65, %v2066, 0.0
    %2089 = vadd.xlane.f32.xlu0 %v2088
    %v2090 = vpop.xlane.xlu0 %2089
    %v2091 = vmul.f32 %v2069, %v96
    %v2092 = vmul.f32 %v2072, %v96
    %v2093 = vmul.f32 %v2075, %v96
    %v2094 = vmul.f32 %v2078, %v96
    %v2095 = vmul.f32 %v2081, %v96
    %v2096 = vmul.f32 %v2084, %v96
    %v2097 = vmul.f32 %v2087, %v96
    %v2098 = vmul.f32 %v2090, %v96
    %v2099 = vadd.f32 %v2091, 1e-05
    %v2100 = vadd.f32 %v2092, 1e-05
    %v2101 = vadd.f32 %v2093, 1e-05
    %v2102 = vadd.f32 %v2094, 1e-05
    %v2103 = vadd.f32 %v2095, 1e-05
    %v2104 = vadd.f32 %v2096, 1e-05
    %v2105 = vadd.f32 %v2097, 1e-05
    %v2106 = vadd.f32 %v2098, 1e-05
    %v2107 = vrsqrt.pop %v2099
    %v2108 = vmul.f32 %v2107, %v2099
    %v2109 = vmul.f32 %v2108, %v2107
    %v2110 = vmul.f32 0.5, %v2109
    %v2111 = vsub.f32 1.5, %v2110
    %v2112 = vmul.f32 %v2107, %v2111
    %vm2113 = vweird.f32 %v2099
    %vm2114 = vweird.f32 %v2107
    %vm2115 = vmor %vm2113, %vm2114
    %v2116 = vsel %vm2115, %v2107, %v2112
    %v2117 = vrsqrt.pop %v2100
    %v2118 = vmul.f32 %v2117, %v2100
    %v2119 = vmul.f32 %v2118, %v2117
    %v2120 = vmul.f32 0.5, %v2119
    %v2121 = vsub.f32 1.5, %v2120
    %v2122 = vmul.f32 %v2117, %v2121
    %vm2123 = vweird.f32 %v2100
    %vm2124 = vweird.f32 %v2117
    %vm2125 = vmor %vm2123, %vm2124
    %v2126 = vsel %vm2125, %v2117, %v2122
    %v2127 = vrsqrt.pop %v2101
    %v2128 = vmul.f32 %v2127, %v2101
    %v2129 = vmul.f32 %v2128, %v2127
    %v2130 = vmul.f32 0.5, %v2129
    %v2131 = vsub.f32 1.5, %v2130
    %v2132 = vmul.f32 %v2127, %v2131
    %vm2133 = vweird.f32 %v2101
    %vm2134 = vweird.f32 %v2127
    %vm2135 = vmor %vm2133, %vm2134
    %v2136 = vsel %vm2135, %v2127, %v2132
    %v2137 = vrsqrt.pop %v2102
    %v2138 = vmul.f32 %v2137, %v2102
    %v2139 = vmul.f32 %v2138, %v2137
    %v2140 = vmul.f32 0.5, %v2139
    %v2141 = vsub.f32 1.5, %v2140
    %v2142 = vmul.f32 %v2137, %v2141
    %vm2143 = vweird.f32 %v2102
    %vm2144 = vweird.f32 %v2137
    %vm2145 = vmor %vm2143, %vm2144
    %v2146 = vsel %vm2145, %v2137, %v2142
    %v2147 = vrsqrt.pop %v2103
    %v2148 = vmul.f32 %v2147, %v2103
    %v2149 = vmul.f32 %v2148, %v2147
    %v2150 = vmul.f32 0.5, %v2149
    %v2151 = vsub.f32 1.5, %v2150
    %v2152 = vmul.f32 %v2147, %v2151
    %vm2153 = vweird.f32 %v2103
    %vm2154 = vweird.f32 %v2147
    %vm2155 = vmor %vm2153, %vm2154
    %v2156 = vsel %vm2155, %v2147, %v2152
    %v2157 = vrsqrt.pop %v2104
    %v2158 = vmul.f32 %v2157, %v2104
    %v2159 = vmul.f32 %v2158, %v2157
    %v2160 = vmul.f32 0.5, %v2159
    %v2161 = vsub.f32 1.5, %v2160
    %v2162 = vmul.f32 %v2157, %v2161
    %vm2163 = vweird.f32 %v2104
    %vm2164 = vweird.f32 %v2157
    %vm2165 = vmor %vm2163, %vm2164
    %v2166 = vsel %vm2165, %v2157, %v2162
    %v2167 = vrsqrt.pop %v2105
    %v2168 = vmul.f32 %v2167, %v2105
    %v2169 = vmul.f32 %v2168, %v2167
    %v2170 = vmul.f32 0.5, %v2169
    %v2171 = vsub.f32 1.5, %v2170
    %v2172 = vmul.f32 %v2167, %v2171
    %vm2173 = vweird.f32 %v2105
    %vm2174 = vweird.f32 %v2167
    %vm2175 = vmor %vm2173, %vm2174
    %v2176 = vsel %vm2175, %v2167, %v2172
    %v2177 = vrsqrt.pop %v2106
    %v2178 = vmul.f32 %v2177, %v2106
    %v2179 = vmul.f32 %v2178, %v2177
    %v2180 = vmul.f32 0.5, %v2179
    %v2181 = vsub.f32 1.5, %v2180
    %v2182 = vmul.f32 %v2177, %v2181
    %vm2183 = vweird.f32 %v2106
    %vm2184 = vweird.f32 %v2177
    %vm2185 = vmor %vm2183, %vm2184
    %v2186 = vsel %vm2185, %v2177, %v2182
    %v2187 = vmul.f32 %v2051, %v2116
    %v2188 = vmul.f32 %v2052, %v2126
    %v2189 = vmul.f32 %v2053, %v2136
    %v2190 = vmul.f32 %v2054, %v2146
    %v2191 = vmul.f32 %v2055, %v2156
    %v2192 = vmul.f32 %v2056, %v2166
    %v2193 = vmul.f32 %v2057, %v2176
    %v2194 = vmul.f32 %v2058, %v2186
    %v2196 = vperm.slane %v2016, 0
    %v2198 = vmul.f32 %v2187, %v2196
    %v2199 = vmul.f32 %v2188, %v2196
    %v2200 = vmul.f32 %v2189, %v2196
    %v2201 = vmul.f32 %v2190, %v2196
    %v2202 = vmul.f32 %v2191, %v2196
    %v2203 = vmul.f32 %v2192, %v2196
    %v2204 = vmul.f32 %v2193, %v2196
    %v2205 = vmul.f32 %v2194, %v2196
    %v2207 = vperm.slane %v2018, 0
    %v2209 = vadd.f32 %v2198, %v2207
    %v2210 = vadd.f32 %v2199, %v2207
    %v2211 = vadd.f32 %v2200, %v2207
    %v2212 = vadd.f32 %v2201, %v2207
    %v2213 = vadd.f32 %v2202, %v2207
    %v2214 = vadd.f32 %v2203, %v2207
    %v2215 = vadd.f32 %v2204, %v2207
    %v2216 = vadd.f32 %v2205, %v2207
    %v2217 = vpack.c.bf16 %v2210, %v2209
    %v2218 = vpack.c.bf16 %v2212, %v2211
    %v2219 = vpack.c.bf16 %v2214, %v2213
    %v2220 = vpack.c.bf16 %v2216, %v2215
    %s2221 = scalar_lea.vmem %s3, 16
    %v2222 = vld [vmem:[%s2221] sm:$0xf]
    %v2223 = vld [vmem:[%s2221 + $0x4] sm:$0xf]
    %v2224 = vld [vmem:[%s2221 + $0x8] sm:$0xf]
    %v2225 = vld [vmem:[%s2221 + $0xc] sm:$0xf]
    %s2226 = scalar_lea.vmem %s4, 1
    %v2227 = vld [vmem:[%s2226] sm:$0x1]
    %v2229 = vperm.slane %v2227, 0
    %v2235 = vunpack.c.l.b16 %v2222
    %v2236 = vunpack.c.l.b16 %v2223
    %v2237 = vunpack.c.l.b16 %v2224
    %v2238 = vunpack.c.l.b16 %v2225
    %v2239 = vpack.c.b16 %v2236, %v2235
    %v2240 = vpack.c.b16 %v2238, %v2237
    %v2244 = vsel %vm65, %v2217, 0
    %v2247 = vsel %vm65, %v2218, 0
    %v2250 = vsel %vm65, %v2219, 0
    %v2253 = vsel %vm65, %v2220, 0
    %2255 = vmatpush.bf16.msra.mxu0 0
    %2256 = vmatpush.bf16.msra.mxu0 0
    %2257 = vmatpush.bf16.msra.mxu0 0
    %2258 = vmatpush.bf16.msra.mxu0 0
    %2259 = vmatpush.bf16.msra.mxu0 0
    %2260 = vmatpush.bf16.msra.mxu0 0
    %2261 = vmatpush.bf16.msra.mxu0 %v2240
    %2262 = vmatpush.bf16.msra.mxu0 %v2239
    %2263 = vmatmul.bf16.gmra.mxu0 %v2244
    %v2264 = vpop.f32.mrf.mxu0
    %v2265 = vadd.f32 %v2229, %v2264
    %v2266 = vpop.f32.mrf.mxu0
    %v2267 = vadd.f32 %v2229, %v2266
    %2268 = vmatmul.bf16.gmra.mxu0 %v2247
    %v2269 = vpop.f32.mrf.mxu0
    %v2270 = vadd.f32 %v2229, %v2269
    %v2271 = vpop.f32.mrf.mxu0
    %v2272 = vadd.f32 %v2229, %v2271
    %2273 = vmatmul.bf16.gmra.mxu0 %v2250
    %v2274 = vpop.f32.mrf.mxu0
    %v2275 = vadd.f32 %v2229, %v2274
    %v2276 = vpop.f32.mrf.mxu0
    %v2277 = vadd.f32 %v2229, %v2276
    %2278 = vmatmul.bf16.gmra.mxu0 %v2253
    %v2279 = vpop.f32.mrf.mxu0
    %v2280 = vadd.f32 %v2229, %v2279
    %v2281 = vpop.f32.mrf.mxu0
    %v2282 = vadd.f32 %v2229, %v2281
    %2283 = vdwg.mxu0
    %v2284 = vpack.c.bf16 %v2267, %v2265
    %v2285 = vpack.c.bf16 %v2272, %v2270
    %2288 = vrot.lane.b32.xlu0 %v2284, 96
    %v2289 = vpop.permute.xlu0 %2288
    %2290 = vrot.lane.b32.xlu0 %v2285, 96
    %v2291 = vpop.permute.xlu0 %2290
    %v2293 = vsel %vm344, %v2284, 0
    %v2296 = vsel %vm344, %v2285, 0
    %v2299 = vsel %vm344, %v2289, 0
    %v2302 = vsel %vm344, %v2291, 0
    %2304 = vmatpush.bf16.xpose.msra.mxu0 0
    %2305 = vmatpush.bf16.xpose.msra.mxu0 0
    %2306 = vmatpush.bf16.xpose.msra.mxu0 0
    %2307 = vmatpush.bf16.xpose.msra.mxu0 0
    %2308 = vmatpush.bf16.xpose.msra.mxu0 0
    %2309 = vmatpush.bf16.xpose.msra.mxu0 0
    %2310 = vmatpush.bf16.xpose.msra.mxu0 %v2302
    %2311 = vmatpush.bf16.xpose.msra.mxu0 %v2299
    %2312 = vmatmul.bf16.gmra.mxu0 %v2293
    %v2313 = vpop.f32.mrf.mxu0
    %v2314 = vadd.f32 0.0, %v2313
    %v2315 = vpop.f32.mrf.mxu0
    %v2316 = vadd.f32 0.0, %v2315
    %2317 = vmatmul.bf16.gmra.mxu0 %v2296
    %v2318 = vpop.f32.mrf.mxu0
    %v2319 = vadd.f32 0.0, %v2318
    %v2320 = vpop.f32.mrf.mxu0
    %v2321 = vadd.f32 0.0, %v2320
    %2322 = vdwg.mxu0
    %v2323 = vmul.f32 %v2314, 0.35355338
    %v2324 = vmul.f32 %v2316, 0.35355338
    %v2325 = vmul.f32 %v2319, 0.35355338
    %v2326 = vmul.f32 %v2321, 0.35355338
    %v2327 = vsel %vm65, %v2323, -inf
    %2328 = vmax.xlane.f32.xlu0 %v2327
    %v2329 = vpop.xlane.xlu0 %2328
    %v2330 = vsel %vm65, %v2324, -inf
    %2331 = vmax.xlane.f32.xlu0 %v2330
    %v2332 = vpop.xlane.xlu0 %2331
    %v2333 = vsel %vm65, %v2325, -inf
    %2334 = vmax.xlane.f32.xlu0 %v2333
    %v2335 = vpop.xlane.xlu0 %2334
    %v2336 = vsel %vm65, %v2326, -inf
    %2337 = vmax.xlane.f32.xlu0 %v2336
    %v2338 = vpop.xlane.xlu0 %2337
    %v2339 = vsub.f32 %v2323, %v2329
    %v2340 = vsub.f32 %v2324, %v2332
    %v2341 = vsub.f32 %v2325, %v2335
    %v2342 = vsub.f32 %v2326, %v2338
    %v2343 = vmul.f32 %v2339, 1.442695
    %v2344 = vpow.pop %v2343
    %v2345 = vmul.f32 %v2340, 1.442695
    %v2346 = vpow.pop %v2345
    %v2347 = vmul.f32 %v2341, 1.442695
    %v2348 = vpow.pop %v2347
    %v2349 = vmul.f32 %v2342, 1.442695
    %v2350 = vpow.pop %v2349
    %v2351 = vsel %vm65, %v2344, 0.0
    %2352 = vadd.xlane.f32.xlu0 %v2351
    %v2353 = vpop.xlane.xlu0 %2352
    %v2354 = vsel %vm65, %v2346, 0.0
    %2355 = vadd.xlane.f32.xlu0 %v2354
    %v2356 = vpop.xlane.xlu0 %2355
    %v2357 = vsel %vm65, %v2348, 0.0
    %2358 = vadd.xlane.f32.xlu0 %v2357
    %v2359 = vpop.xlane.xlu0 %2358
    %v2360 = vsel %vm65, %v2350, 0.0
    %2361 = vadd.xlane.f32.xlu0 %v2360
    %v2362 = vpop.xlane.xlu0 %2361
    %v2363 = vrcp.pop %v2353
    %v2364 = vrcp.pop %v2356
    %v2365 = vrcp.pop %v2359
    %v2366 = vrcp.pop %v2362
    %v2367 = vmul.f32 %v2344, %v2363
    %v2368 = vmul.f32 %v2346, %v2364
    %v2369 = vmul.f32 %v2348, %v2365
    %v2370 = vmul.f32 %v2350, %v2366
    %v2371 = vpack.c.bf16 %v2368, %v2367
    %v2372 = vpack.c.bf16 %v2370, %v2369
    %2373 = vrot.lane.b32.xlu0 %v2284, 64
    %v2374 = vpop.permute.xlu0 %2373
    %2375 = vrot.lane.b32.xlu0 %v2285, 64
    %v2376 = vpop.permute.xlu0 %2375
    %v2380 = vsel %vm65, %v2371, 0
    %v2383 = vsel %vm65, %v2372, 0
    %2385 = vmatpush.bf16.msra.mxu0 0
    %2386 = vmatpush.bf16.msra.mxu0 0
    %2387 = vmatpush.bf16.msra.mxu0 0
    %2388 = vmatpush.bf16.msra.mxu0 0
    %2389 = vmatpush.bf16.msra.mxu0 0
    %2390 = vmatpush.bf16.msra.mxu0 0
    %2391 = vmatpush.bf16.msra.mxu0 %v2376
    %2392 = vmatpush.bf16.msra.mxu0 %v2374
    %2393 = vmatmul.bf16.gmra.mxu0 %v2380
    %v2394 = vpop.f32.mrf.mxu0
    %v2395 = vadd.f32 0.0, %v2394
    %v2396 = vpop.f32.mrf.mxu0
    %v2397 = vadd.f32 0.0, %v2396
    %2398 = vmatmul.bf16.gmra.mxu0 %v2383
    %v2399 = vpop.f32.mrf.mxu0
    %v2400 = vadd.f32 0.0, %v2399
    %v2401 = vpop.f32.mrf.mxu0
    %v2402 = vadd.f32 0.0, %v2401
    %2403 = vdwg.mxu0
    %v2404 = vpack.c.bf16 %v2397, %v2395
    %v2405 = vpack.c.bf16 %v2402, %v2400
    %s2406 = scalar_lea.vmem %s5, 16
    %v2407 = vld [vmem:[%s2406] sm:$0xf]
    %2408 = vrot.lane.b32.xlu0 %v2284, 120
    %v2409 = vpop.permute.xlu0 %2408
    %2410 = vrot.lane.b32.xlu0 %v2285, 120
    %v2411 = vpop.permute.xlu0 %2410
    %2412 = vrot.lane.b32.xlu0 %v2284, 88
    %v2413 = vpop.permute.xlu0 %2412
    %2414 = vrot.lane.b32.xlu0 %v2285, 88
    %v2415 = vpop.permute.xlu0 %2414
    %v2417 = vsel %vm344, %v2409, 0
    %v2420 = vsel %vm344, %v2411, 0
    %v2423 = vsel %vm344, %v2413, 0
    %v2426 = vsel %vm344, %v2415, 0
    %2428 = vmatpush.bf16.xpose.msra.mxu0 0
    %2429 = vmatpush.bf16.xpose.msra.mxu0 0
    %2430 = vmatpush.bf16.xpose.msra.mxu0 0
    %2431 = vmatpush.bf16.xpose.msra.mxu0 0
    %2432 = vmatpush.bf16.xpose.msra.mxu0 0
    %2433 = vmatpush.bf16.xpose.msra.mxu0 0
    %2434 = vmatpush.bf16.xpose.msra.mxu0 %v2426
    %2435 = vmatpush.bf16.xpose.msra.mxu0 %v2423
    %2436 = vmatmul.bf16.gmra.mxu0 %v2417
    %v2437 = vpop.f32.mrf.mxu0
    %v2438 = vadd.f32 0.0, %v2437
    %v2439 = vpop.f32.mrf.mxu0
    %v2440 = vadd.f32 0.0, %v2439
    %2441 = vmatmul.bf16.gmra.mxu0 %v2420
    %v2442 = vpop.f32.mrf.mxu0
    %v2443 = vadd.f32 0.0, %v2442
    %v2444 = vpop.f32.mrf.mxu0
    %v2445 = vadd.f32 0.0, %v2444
    %2446 = vdwg.mxu0
    %v2447 = vmul.f32 %v2438, 0.35355338
    %v2448 = vmul.f32 %v2440, 0.35355338
    %v2449 = vmul.f32 %v2443, 0.35355338
    %v2450 = vmul.f32 %v2445, 0.35355338
    %v2451 = vsel %vm65, %v2447, -inf
    %2452 = vmax.xlane.f32.xlu0 %v2451
    %v2453 = vpop.xlane.xlu0 %2452
    %v2454 = vsel %vm65, %v2448, -inf
    %2455 = vmax.xlane.f32.xlu0 %v2454
    %v2456 = vpop.xlane.xlu0 %2455
    %v2457 = vsel %vm65, %v2449, -inf
    %2458 = vmax.xlane.f32.xlu0 %v2457
    %v2459 = vpop.xlane.xlu0 %2458
    %v2460 = vsel %vm65, %v2450, -inf
    %2461 = vmax.xlane.f32.xlu0 %v2460
    %v2462 = vpop.xlane.xlu0 %2461
    %v2463 = vsub.f32 %v2447, %v2453
    %v2464 = vsub.f32 %v2448, %v2456
    %v2465 = vsub.f32 %v2449, %v2459
    %v2466 = vsub.f32 %v2450, %v2462
    %v2467 = vmul.f32 %v2463, 1.442695
    %v2468 = vpow.pop %v2467
    %v2469 = vmul.f32 %v2464, 1.442695
    %v2470 = vpow.pop %v2469
    %v2471 = vmul.f32 %v2465, 1.442695
    %v2472 = vpow.pop %v2471
    %v2473 = vmul.f32 %v2466, 1.442695
    %v2474 = vpow.pop %v2473
    %v2475 = vsel %vm65, %v2468, 0.0
    %2476 = vadd.xlane.f32.xlu0 %v2475
    %v2477 = vpop.xlane.xlu0 %2476
    %v2478 = vsel %vm65, %v2470, 0.0
    %2479 = vadd.xlane.f32.xlu0 %v2478
    %v2480 = vpop.xlane.xlu0 %2479
    %v2481 = vsel %vm65, %v2472, 0.0
    %2482 = vadd.xlane.f32.xlu0 %v2481
    %v2483 = vpop.xlane.xlu0 %2482
    %v2484 = vsel %vm65, %v2474, 0.0
    %2485 = vadd.xlane.f32.xlu0 %v2484
    %v2486 = vpop.xlane.xlu0 %2485
    %v2487 = vrcp.pop %v2477
    %v2488 = vrcp.pop %v2480
    %v2489 = vrcp.pop %v2483
    %v2490 = vrcp.pop %v2486
    %v2491 = vmul.f32 %v2468, %v2487
    %v2492 = vmul.f32 %v2470, %v2488
    %v2493 = vmul.f32 %v2472, %v2489
    %v2494 = vmul.f32 %v2474, %v2490
    %v2495 = vpack.c.bf16 %v2492, %v2491
    %v2496 = vpack.c.bf16 %v2494, %v2493
    %2497 = vrot.lane.b32.xlu0 %v2284, 56
    %v2498 = vpop.permute.xlu0 %2497
    %2499 = vrot.lane.b32.xlu0 %v2285, 56
    %v2500 = vpop.permute.xlu0 %2499
    %v2504 = vsel %vm65, %v2495, 0
    %v2507 = vsel %vm65, %v2496, 0
    %2509 = vmatpush.bf16.msra.mxu0 0
    %2510 = vmatpush.bf16.msra.mxu0 0
    %2511 = vmatpush.bf16.msra.mxu0 0
    %2512 = vmatpush.bf16.msra.mxu0 0
    %2513 = vmatpush.bf16.msra.mxu0 0
    %2514 = vmatpush.bf16.msra.mxu0 0
    %2515 = vmatpush.bf16.msra.mxu0 %v2500
    %2516 = vmatpush.bf16.msra.mxu0 %v2498
    %2517 = vmatmul.bf16.gmra.mxu0 %v2504
    %v2518 = vpop.f32.mrf.mxu0
    %v2519 = vadd.f32 0.0, %v2518
    %v2520 = vpop.f32.mrf.mxu0
    %v2521 = vadd.f32 0.0, %v2520
    %2522 = vmatmul.bf16.gmra.mxu0 %v2507
    %v2523 = vpop.f32.mrf.mxu0
    %v2524 = vadd.f32 0.0, %v2523
    %v2525 = vpop.f32.mrf.mxu0
    %v2526 = vadd.f32 0.0, %v2525
    %2527 = vdwg.mxu0
    %v2528 = vpack.c.bf16 %v2521, %v2519
    %v2529 = vpack.c.bf16 %v2526, %v2524
    %s2530 = scalar_lea.vmem %s5, 20
    %v2531 = vld [vmem:[%s2530] sm:$0xf]
    %v2533 = vsel %vm344, %v2528, 0
    %v2536 = vsel %vm344, %v2529, 0
    %v2539 = vsel %vm590, %v2531, 0
    %2541 = vmatpush.bf16.msra.mxu0 0
    %2542 = vmatpush.bf16.msra.mxu0 0
    %2543 = vmatpush.bf16.msra.mxu0 0
    %2544 = vmatpush.bf16.msra.mxu0 0
    %2545 = vmatpush.bf16.msra.mxu0 0
    %2546 = vmatpush.bf16.msra.mxu0 0
    %2547 = vmatpush.bf16.msra.mxu0 0
    %2548 = vmatpush.bf16.msra.mxu0 %v2539
    %2549 = vmatmul.bf16.gmra.mxu0 %v2533
    %v2550 = vpop.f32.mrf.mxu0
    %v2551 = vadd.f32 0.0, %v2550
    %v2552 = vpop.f32.mrf.mxu0
    %v2553 = vadd.f32 0.0, %v2552
    %2554 = vmatmul.bf16.gmra.mxu0 %v2536
    %v2555 = vpop.f32.mrf.mxu0
    %v2556 = vadd.f32 0.0, %v2555
    %v2557 = vpop.f32.mrf.mxu0
    %v2558 = vadd.f32 0.0, %v2557
    %2559 = vdwg.mxu0
    %v2561 = vsel %vm344, %v2404, 0
    %v2564 = vsel %vm344, %v2405, 0
    %v2567 = vsel %vm590, %v2407, 0
    %2569 = vmatpush.bf16.msra.mxu0 0
    %2570 = vmatpush.bf16.msra.mxu0 0
    %2571 = vmatpush.bf16.msra.mxu0 0
    %2572 = vmatpush.bf16.msra.mxu0 0
    %2573 = vmatpush.bf16.msra.mxu0 0
    %2574 = vmatpush.bf16.msra.mxu0 0
    %2575 = vmatpush.bf16.msra.mxu0 0
    %2576 = vmatpush.bf16.msra.mxu0 %v2567
    %2577 = vmatmul.bf16.gmra.mxu0 %v2561
    %v2578 = vpop.f32.mrf.mxu0
    %v2579 = vadd.f32 %v2551, %v2578
    %v2580 = vpop.f32.mrf.mxu0
    %v2581 = vadd.f32 %v2553, %v2580
    %2582 = vmatmul.bf16.gmra.mxu0 %v2564
    %v2583 = vpop.f32.mrf.mxu0
    %v2584 = vadd.f32 %v2556, %v2583
    %v2585 = vpop.f32.mrf.mxu0
    %v2586 = vadd.f32 %v2558, %v2585
    %2587 = vdwg.mxu0
    %2588 = vrot.lane.b32.xlu0 %v2284, 112
    %v2589 = vpop.permute.xlu0 %2588
    %2590 = vrot.lane.b32.xlu0 %v2285, 112
    %v2591 = vpop.permute.xlu0 %2590
    %2592 = vrot.lane.b32.xlu0 %v2284, 80
    %v2593 = vpop.permute.xlu0 %2592
    %2594 = vrot.lane.b32.xlu0 %v2285, 80
    %v2595 = vpop.permute.xlu0 %2594
    %v2597 = vsel %vm344, %v2589, 0
    %v2600 = vsel %vm344, %v2591, 0
    %v2603 = vsel %vm344, %v2593, 0
    %v2606 = vsel %vm344, %v2595, 0
    %2608 = vmatpush.bf16.xpose.msra.mxu0 0
    %2609 = vmatpush.bf16.xpose.msra.mxu0 0
    %2610 = vmatpush.bf16.xpose.msra.mxu0 0
    %2611 = vmatpush.bf16.xpose.msra.mxu0 0
    %2612 = vmatpush.bf16.xpose.msra.mxu0 0
    %2613 = vmatpush.bf16.xpose.msra.mxu0 0
    %2614 = vmatpush.bf16.xpose.msra.mxu0 %v2606
    %2615 = vmatpush.bf16.xpose.msra.mxu0 %v2603
    %2616 = vmatmul.bf16.gmra.mxu0 %v2597
    %v2617 = vpop.f32.mrf.mxu0
    %v2618 = vadd.f32 0.0, %v2617
    %v2619 = vpop.f32.mrf.mxu0
    %v2620 = vadd.f32 0.0, %v2619
    %2621 = vmatmul.bf16.gmra.mxu0 %v2600
    %v2622 = vpop.f32.mrf.mxu0
    %v2623 = vadd.f32 0.0, %v2622
    %v2624 = vpop.f32.mrf.mxu0
    %v2625 = vadd.f32 0.0, %v2624
    %2626 = vdwg.mxu0
    %v2627 = vmul.f32 %v2618, 0.35355338
    %v2628 = vmul.f32 %v2620, 0.35355338
    %v2629 = vmul.f32 %v2623, 0.35355338
    %v2630 = vmul.f32 %v2625, 0.35355338
    %v2631 = vsel %vm65, %v2627, -inf
    %2632 = vmax.xlane.f32.xlu0 %v2631
    %v2633 = vpop.xlane.xlu0 %2632
    %v2634 = vsel %vm65, %v2628, -inf
    %2635 = vmax.xlane.f32.xlu0 %v2634
    %v2636 = vpop.xlane.xlu0 %2635
    %v2637 = vsel %vm65, %v2629, -inf
    %2638 = vmax.xlane.f32.xlu0 %v2637
    %v2639 = vpop.xlane.xlu0 %2638
    %v2640 = vsel %vm65, %v2630, -inf
    %2641 = vmax.xlane.f32.xlu0 %v2640
    %v2642 = vpop.xlane.xlu0 %2641
    %v2643 = vsub.f32 %v2627, %v2633
    %v2644 = vsub.f32 %v2628, %v2636
    %v2645 = vsub.f32 %v2629, %v2639
    %v2646 = vsub.f32 %v2630, %v2642
    %v2647 = vmul.f32 %v2643, 1.442695
    %v2648 = vpow.pop %v2647
    %v2649 = vmul.f32 %v2644, 1.442695
    %v2650 = vpow.pop %v2649
    %v2651 = vmul.f32 %v2645, 1.442695
    %v2652 = vpow.pop %v2651
    %v2653 = vmul.f32 %v2646, 1.442695
    %v2654 = vpow.pop %v2653
    %v2655 = vsel %vm65, %v2648, 0.0
    %2656 = vadd.xlane.f32.xlu0 %v2655
    %v2657 = vpop.xlane.xlu0 %2656
    %v2658 = vsel %vm65, %v2650, 0.0
    %2659 = vadd.xlane.f32.xlu0 %v2658
    %v2660 = vpop.xlane.xlu0 %2659
    %v2661 = vsel %vm65, %v2652, 0.0
    %2662 = vadd.xlane.f32.xlu0 %v2661
    %v2663 = vpop.xlane.xlu0 %2662
    %v2664 = vsel %vm65, %v2654, 0.0
    %2665 = vadd.xlane.f32.xlu0 %v2664
    %v2666 = vpop.xlane.xlu0 %2665
    %v2667 = vrcp.pop %v2657
    %v2668 = vrcp.pop %v2660
    %v2669 = vrcp.pop %v2663
    %v2670 = vrcp.pop %v2666
    %v2671 = vmul.f32 %v2648, %v2667
    %v2672 = vmul.f32 %v2650, %v2668
    %v2673 = vmul.f32 %v2652, %v2669
    %v2674 = vmul.f32 %v2654, %v2670
    %v2675 = vpack.c.bf16 %v2672, %v2671
    %v2676 = vpack.c.bf16 %v2674, %v2673
    %2677 = vrot.lane.b32.xlu0 %v2284, 48
    %v2678 = vpop.permute.xlu0 %2677
    %2679 = vrot.lane.b32.xlu0 %v2285, 48
    %v2680 = vpop.permute.xlu0 %2679
    %v2684 = vsel %vm65, %v2675, 0
    %v2687 = vsel %vm65, %v2676, 0
    %2689 = vmatpush.bf16.msra.mxu0 0
    %2690 = vmatpush.bf16.msra.mxu0 0
    %2691 = vmatpush.bf16.msra.mxu0 0
    %2692 = vmatpush.bf16.msra.mxu0 0
    %2693 = vmatpush.bf16.msra.mxu0 0
    %2694 = vmatpush.bf16.msra.mxu0 0
    %2695 = vmatpush.bf16.msra.mxu0 %v2680
    %2696 = vmatpush.bf16.msra.mxu0 %v2678
    %2697 = vmatmul.bf16.gmra.mxu0 %v2684
    %v2698 = vpop.f32.mrf.mxu0
    %v2699 = vadd.f32 0.0, %v2698
    %v2700 = vpop.f32.mrf.mxu0
    %v2701 = vadd.f32 0.0, %v2700
    %2702 = vmatmul.bf16.gmra.mxu0 %v2687
    %v2703 = vpop.f32.mrf.mxu0
    %v2704 = vadd.f32 0.0, %v2703
    %v2705 = vpop.f32.mrf.mxu0
    %v2706 = vadd.f32 0.0, %v2705
    %2707 = vdwg.mxu0
    %v2708 = vpack.c.bf16 %v2701, %v2699
    %v2709 = vpack.c.bf16 %v2706, %v2704
    %s2710 = scalar_lea.vmem %s5, 24
    %v2711 = vld [vmem:[%s2710] sm:$0xf]
    %v2713 = vsel %vm344, %v2708, 0
    %v2716 = vsel %vm344, %v2709, 0
    %v2719 = vsel %vm590, %v2711, 0
    %2721 = vmatpush.bf16.msra.mxu0 0
    %2722 = vmatpush.bf16.msra.mxu0 0
    %2723 = vmatpush.bf16.msra.mxu0 0
    %2724 = vmatpush.bf16.msra.mxu0 0
    %2725 = vmatpush.bf16.msra.mxu0 0
    %2726 = vmatpush.bf16.msra.mxu0 0
    %2727 = vmatpush.bf16.msra.mxu0 0
    %2728 = vmatpush.bf16.msra.mxu0 %v2719
    %2729 = vmatmul.bf16.gmra.mxu0 %v2713
    %v2730 = vpop.f32.mrf.mxu0
    %v2731 = vadd.f32 0.0, %v2730
    %v2732 = vpop.f32.mrf.mxu0
    %v2733 = vadd.f32 0.0, %v2732
    %2734 = vmatmul.bf16.gmra.mxu0 %v2716
    %v2735 = vpop.f32.mrf.mxu0
    %v2736 = vadd.f32 0.0, %v2735
    %v2737 = vpop.f32.mrf.mxu0
    %v2738 = vadd.f32 0.0, %v2737
    %2739 = vdwg.mxu0
    %v2740 = vadd.f32 %v2579, %v2731
    %v2741 = vadd.f32 %v2581, %v2733
    %v2742 = vadd.f32 %v2584, %v2736
    %v2743 = vadd.f32 %v2586, %v2738
    %2744 = vrot.lane.b32.xlu0 %v2284, 104
    %v2745 = vpop.permute.xlu0 %2744
    %2746 = vrot.lane.b32.xlu0 %v2285, 104
    %v2747 = vpop.permute.xlu0 %2746
    %2748 = vrot.lane.b32.xlu0 %v2284, 72
    %v2749 = vpop.permute.xlu0 %2748
    %2750 = vrot.lane.b32.xlu0 %v2285, 72
    %v2751 = vpop.permute.xlu0 %2750
    %v2753 = vsel %vm344, %v2745, 0
    %v2756 = vsel %vm344, %v2747, 0
    %v2759 = vsel %vm344, %v2749, 0
    %v2762 = vsel %vm344, %v2751, 0
    %2764 = vmatpush.bf16.xpose.msra.mxu0 0
    %2765 = vmatpush.bf16.xpose.msra.mxu0 0
    %2766 = vmatpush.bf16.xpose.msra.mxu0 0
    %2767 = vmatpush.bf16.xpose.msra.mxu0 0
    %2768 = vmatpush.bf16.xpose.msra.mxu0 0
    %2769 = vmatpush.bf16.xpose.msra.mxu0 0
    %2770 = vmatpush.bf16.xpose.msra.mxu0 %v2762
    %2771 = vmatpush.bf16.xpose.msra.mxu0 %v2759
    %2772 = vmatmul.bf16.gmra.mxu0 %v2753
    %v2773 = vpop.f32.mrf.mxu0
    %v2774 = vadd.f32 0.0, %v2773
    %v2775 = vpop.f32.mrf.mxu0
    %v2776 = vadd.f32 0.0, %v2775
    %2777 = vmatmul.bf16.gmra.mxu0 %v2756
    %v2778 = vpop.f32.mrf.mxu0
    %v2779 = vadd.f32 0.0, %v2778
    %v2780 = vpop.f32.mrf.mxu0
    %v2781 = vadd.f32 0.0, %v2780
    %2782 = vdwg.mxu0
    %v2783 = vmul.f32 %v2774, 0.35355338
    %v2784 = vmul.f32 %v2776, 0.35355338
    %v2785 = vmul.f32 %v2779, 0.35355338
    %v2786 = vmul.f32 %v2781, 0.35355338
    %v2787 = vsel %vm65, %v2783, -inf
    %2788 = vmax.xlane.f32.xlu0 %v2787
    %v2789 = vpop.xlane.xlu0 %2788
    %v2790 = vsel %vm65, %v2784, -inf
    %2791 = vmax.xlane.f32.xlu0 %v2790
    %v2792 = vpop.xlane.xlu0 %2791
    %v2793 = vsel %vm65, %v2785, -inf
    %2794 = vmax.xlane.f32.xlu0 %v2793
    %v2795 = vpop.xlane.xlu0 %2794
    %v2796 = vsel %vm65, %v2786, -inf
    %2797 = vmax.xlane.f32.xlu0 %v2796
    %v2798 = vpop.xlane.xlu0 %2797
    %v2799 = vsub.f32 %v2783, %v2789
    %v2800 = vsub.f32 %v2784, %v2792
    %v2801 = vsub.f32 %v2785, %v2795
    %v2802 = vsub.f32 %v2786, %v2798
    %v2803 = vmul.f32 %v2799, 1.442695
    %v2804 = vpow.pop %v2803
    %v2805 = vmul.f32 %v2800, 1.442695
    %v2806 = vpow.pop %v2805
    %v2807 = vmul.f32 %v2801, 1.442695
    %v2808 = vpow.pop %v2807
    %v2809 = vmul.f32 %v2802, 1.442695
    %v2810 = vpow.pop %v2809
    %v2811 = vsel %vm65, %v2804, 0.0
    %2812 = vadd.xlane.f32.xlu0 %v2811
    %v2813 = vpop.xlane.xlu0 %2812
    %v2814 = vsel %vm65, %v2806, 0.0
    %2815 = vadd.xlane.f32.xlu0 %v2814
    %v2816 = vpop.xlane.xlu0 %2815
    %v2817 = vsel %vm65, %v2808, 0.0
    %2818 = vadd.xlane.f32.xlu0 %v2817
    %v2819 = vpop.xlane.xlu0 %2818
    %v2820 = vsel %vm65, %v2810, 0.0
    %2821 = vadd.xlane.f32.xlu0 %v2820
    %v2822 = vpop.xlane.xlu0 %2821
    %v2823 = vrcp.pop %v2813
    %v2824 = vrcp.pop %v2816
    %v2825 = vrcp.pop %v2819
    %v2826 = vrcp.pop %v2822
    %v2827 = vmul.f32 %v2804, %v2823
    %v2828 = vmul.f32 %v2806, %v2824
    %v2829 = vmul.f32 %v2808, %v2825
    %v2830 = vmul.f32 %v2810, %v2826
    %v2831 = vpack.c.bf16 %v2828, %v2827
    %v2832 = vpack.c.bf16 %v2830, %v2829
    %2833 = vrot.lane.b32.xlu0 %v2284, 40
    %v2834 = vpop.permute.xlu0 %2833
    %2835 = vrot.lane.b32.xlu0 %v2285, 40
    %v2836 = vpop.permute.xlu0 %2835
    %v2840 = vsel %vm65, %v2831, 0
    %v2843 = vsel %vm65, %v2832, 0
    %2845 = vmatpush.bf16.msra.mxu0 0
    %2846 = vmatpush.bf16.msra.mxu0 0
    %2847 = vmatpush.bf16.msra.mxu0 0
    %2848 = vmatpush.bf16.msra.mxu0 0
    %2849 = vmatpush.bf16.msra.mxu0 0
    %2850 = vmatpush.bf16.msra.mxu0 0
    %2851 = vmatpush.bf16.msra.mxu0 %v2836
    %2852 = vmatpush.bf16.msra.mxu0 %v2834
    %2853 = vmatmul.bf16.gmra.mxu0 %v2840
    %v2854 = vpop.f32.mrf.mxu0
    %v2855 = vadd.f32 0.0, %v2854
    %v2856 = vpop.f32.mrf.mxu0
    %v2857 = vadd.f32 0.0, %v2856
    %2858 = vmatmul.bf16.gmra.mxu0 %v2843
    %v2859 = vpop.f32.mrf.mxu0
    %v2860 = vadd.f32 0.0, %v2859
    %v2861 = vpop.f32.mrf.mxu0
    %v2862 = vadd.f32 0.0, %v2861
    %2863 = vdwg.mxu0
    %v2864 = vpack.c.bf16 %v2857, %v2855
    %v2865 = vpack.c.bf16 %v2862, %v2860
    %s2866 = scalar_lea.vmem %s5, 28
    %v2867 = vld [vmem:[%s2866] sm:$0xf]
    %v2869 = vsel %vm344, %v2864, 0
    %v2872 = vsel %vm344, %v2865, 0
    %v2875 = vsel %vm590, %v2867, 0
    %2877 = vmatpush.bf16.msra.mxu0 0
    %2878 = vmatpush.bf16.msra.mxu0 0
    %2879 = vmatpush.bf16.msra.mxu0 0
    %2880 = vmatpush.bf16.msra.mxu0 0
    %2881 = vmatpush.bf16.msra.mxu0 0
    %2882 = vmatpush.bf16.msra.mxu0 0
    %2883 = vmatpush.bf16.msra.mxu0 0
    %2884 = vmatpush.bf16.msra.mxu0 %v2875
    %2885 = vmatmul.bf16.gmra.mxu0 %v2869
    %v2886 = vpop.f32.mrf.mxu0
    %v2887 = vadd.f32 0.0, %v2886
    %v2888 = vpop.f32.mrf.mxu0
    %v2889 = vadd.f32 0.0, %v2888
    %2890 = vmatmul.bf16.gmra.mxu0 %v2872
    %v2891 = vpop.f32.mrf.mxu0
    %v2892 = vadd.f32 0.0, %v2891
    %v2893 = vpop.f32.mrf.mxu0
    %v2894 = vadd.f32 0.0, %v2893
    %2895 = vdwg.mxu0
    %v2896 = vadd.f32 %v2740, %v2887
    %v2897 = vadd.f32 %v2741, %v2889
    %v2898 = vadd.f32 %v2742, %v2892
    %v2899 = vadd.f32 %v2743, %v2894
    %v2900 = vpack.c.bf16 %v2277, %v2275
    %v2901 = vpack.c.bf16 %v2282, %v2280
    %2904 = vrot.lane.b32.xlu0 %v2900, 96
    %v2905 = vpop.permute.xlu0 %2904
    %2906 = vrot.lane.b32.xlu0 %v2901, 96
    %v2907 = vpop.permute.xlu0 %2906
    %v2909 = vsel %vm344, %v2900, 0
    %v2912 = vsel %vm344, %v2901, 0
    %v2915 = vsel %vm344, %v2905, 0
    %v2918 = vsel %vm344, %v2907, 0
    %2920 = vmatpush.bf16.xpose.msra.mxu0 0
    %2921 = vmatpush.bf16.xpose.msra.mxu0 0
    %2922 = vmatpush.bf16.xpose.msra.mxu0 0
    %2923 = vmatpush.bf16.xpose.msra.mxu0 0
    %2924 = vmatpush.bf16.xpose.msra.mxu0 0
    %2925 = vmatpush.bf16.xpose.msra.mxu0 0
    %2926 = vmatpush.bf16.xpose.msra.mxu0 %v2918
    %2927 = vmatpush.bf16.xpose.msra.mxu0 %v2915
    %2928 = vmatmul.bf16.gmra.mxu0 %v2909
    %v2929 = vpop.f32.mrf.mxu0
    %v2930 = vadd.f32 0.0, %v2929
    %v2931 = vpop.f32.mrf.mxu0
    %v2932 = vadd.f32 0.0, %v2931
    %2933 = vmatmul.bf16.gmra.mxu0 %v2912
    %v2934 = vpop.f32.mrf.mxu0
    %v2935 = vadd.f32 0.0, %v2934
    %v2936 = vpop.f32.mrf.mxu0
    %v2937 = vadd.f32 0.0, %v2936
    %2938 = vdwg.mxu0
    %v2939 = vmul.f32 %v2930, 0.35355338
    %v2940 = vmul.f32 %v2932, 0.35355338
    %v2941 = vmul.f32 %v2935, 0.35355338
    %v2942 = vmul.f32 %v2937, 0.35355338
    %v2943 = vsel %vm65, %v2939, -inf
    %2944 = vmax.xlane.f32.xlu0 %v2943
    %v2945 = vpop.xlane.xlu0 %2944
    %v2946 = vsel %vm65, %v2940, -inf
    %2947 = vmax.xlane.f32.xlu0 %v2946
    %v2948 = vpop.xlane.xlu0 %2947
    %v2949 = vsel %vm65, %v2941, -inf
    %2950 = vmax.xlane.f32.xlu0 %v2949
    %v2951 = vpop.xlane.xlu0 %2950
    %v2952 = vsel %vm65, %v2942, -inf
    %2953 = vmax.xlane.f32.xlu0 %v2952
    %v2954 = vpop.xlane.xlu0 %2953
    %v2955 = vsub.f32 %v2939, %v2945
    %v2956 = vsub.f32 %v2940, %v2948
    %v2957 = vsub.f32 %v2941, %v2951
    %v2958 = vsub.f32 %v2942, %v2954
    %v2959 = vmul.f32 %v2955, 1.442695
    %v2960 = vpow.pop %v2959
    %v2961 = vmul.f32 %v2956, 1.442695
    %v2962 = vpow.pop %v2961
    %v2963 = vmul.f32 %v2957, 1.442695
    %v2964 = vpow.pop %v2963
    %v2965 = vmul.f32 %v2958, 1.442695
    %v2966 = vpow.pop %v2965
    %v2967 = vsel %vm65, %v2960, 0.0
    %2968 = vadd.xlane.f32.xlu0 %v2967
    %v2969 = vpop.xlane.xlu0 %2968
    %v2970 = vsel %vm65, %v2962, 0.0
    %2971 = vadd.xlane.f32.xlu0 %v2970
    %v2972 = vpop.xlane.xlu0 %2971
    %v2973 = vsel %vm65, %v2964, 0.0
    %2974 = vadd.xlane.f32.xlu0 %v2973
    %v2975 = vpop.xlane.xlu0 %2974
    %v2976 = vsel %vm65, %v2966, 0.0
    %2977 = vadd.xlane.f32.xlu0 %v2976
    %v2978 = vpop.xlane.xlu0 %2977
    %v2979 = vrcp.pop %v2969
    %v2980 = vrcp.pop %v2972
    %v2981 = vrcp.pop %v2975
    %v2982 = vrcp.pop %v2978
    %v2983 = vmul.f32 %v2960, %v2979
    %v2984 = vmul.f32 %v2962, %v2980
    %v2985 = vmul.f32 %v2964, %v2981
    %v2986 = vmul.f32 %v2966, %v2982
    %v2987 = vpack.c.bf16 %v2984, %v2983
    %v2988 = vpack.c.bf16 %v2986, %v2985
    %2989 = vrot.lane.b32.xlu0 %v2900, 64
    %v2990 = vpop.permute.xlu0 %2989
    %2991 = vrot.lane.b32.xlu0 %v2901, 64
    %v2992 = vpop.permute.xlu0 %2991
    %v2996 = vsel %vm65, %v2987, 0
    %v2999 = vsel %vm65, %v2988, 0
    %3001 = vmatpush.bf16.msra.mxu0 0
    %3002 = vmatpush.bf16.msra.mxu0 0
    %3003 = vmatpush.bf16.msra.mxu0 0
    %3004 = vmatpush.bf16.msra.mxu0 0
    %3005 = vmatpush.bf16.msra.mxu0 0
    %3006 = vmatpush.bf16.msra.mxu0 0
    %3007 = vmatpush.bf16.msra.mxu0 %v2992
    %3008 = vmatpush.bf16.msra.mxu0 %v2990
    %3009 = vmatmul.bf16.gmra.mxu0 %v2996
    %v3010 = vpop.f32.mrf.mxu0
    %v3011 = vadd.f32 0.0, %v3010
    %v3012 = vpop.f32.mrf.mxu0
    %v3013 = vadd.f32 0.0, %v3012
    %3014 = vmatmul.bf16.gmra.mxu0 %v2999
    %v3015 = vpop.f32.mrf.mxu0
    %v3016 = vadd.f32 0.0, %v3015
    %v3017 = vpop.f32.mrf.mxu0
    %v3018 = vadd.f32 0.0, %v3017
    %3019 = vdwg.mxu0
    %v3020 = vpack.c.bf16 %v3013, %v3011
    %v3021 = vpack.c.bf16 %v3018, %v3016
    %3022 = vrot.lane.b32.xlu0 %v2900, 120
    %v3023 = vpop.permute.xlu0 %3022
    %3024 = vrot.lane.b32.xlu0 %v2901, 120
    %v3025 = vpop.permute.xlu0 %3024
    %3026 = vrot.lane.b32.xlu0 %v2900, 88
    %v3027 = vpop.permute.xlu0 %3026
    %3028 = vrot.lane.b32.xlu0 %v2901, 88
    %v3029 = vpop.permute.xlu0 %3028
    %v3031 = vsel %vm344, %v3023, 0
    %v3034 = vsel %vm344, %v3025, 0
    %v3037 = vsel %vm344, %v3027, 0
    %v3040 = vsel %vm344, %v3029, 0
    %3042 = vmatpush.bf16.xpose.msra.mxu0 0
    %3043 = vmatpush.bf16.xpose.msra.mxu0 0
    %3044 = vmatpush.bf16.xpose.msra.mxu0 0
    %3045 = vmatpush.bf16.xpose.msra.mxu0 0
    %3046 = vmatpush.bf16.xpose.msra.mxu0 0
    %3047 = vmatpush.bf16.xpose.msra.mxu0 0
    %3048 = vmatpush.bf16.xpose.msra.mxu0 %v3040
    %3049 = vmatpush.bf16.xpose.msra.mxu0 %v3037
    %3050 = vmatmul.bf16.gmra.mxu0 %v3031
    %v3051 = vpop.f32.mrf.mxu0
    %v3052 = vadd.f32 0.0, %v3051
    %v3053 = vpop.f32.mrf.mxu0
    %v3054 = vadd.f32 0.0, %v3053
    %3055 = vmatmul.bf16.gmra.mxu0 %v3034
    %v3056 = vpop.f32.mrf.mxu0
    %v3057 = vadd.f32 0.0, %v3056
    %v3058 = vpop.f32.mrf.mxu0
    %v3059 = vadd.f32 0.0, %v3058
    %3060 = vdwg.mxu0
    %v3061 = vmul.f32 %v3052, 0.35355338
    %v3062 = vmul.f32 %v3054, 0.35355338
    %v3063 = vmul.f32 %v3057, 0.35355338
    %v3064 = vmul.f32 %v3059, 0.35355338
    %v3065 = vsel %vm65, %v3061, -inf
    %3066 = vmax.xlane.f32.xlu0 %v3065
    %v3067 = vpop.xlane.xlu0 %3066
    %v3068 = vsel %vm65, %v3062, -inf
    %3069 = vmax.xlane.f32.xlu0 %v3068
    %v3070 = vpop.xlane.xlu0 %3069
    %v3071 = vsel %vm65, %v3063, -inf
    %3072 = vmax.xlane.f32.xlu0 %v3071
    %v3073 = vpop.xlane.xlu0 %3072
    %v3074 = vsel %vm65, %v3064, -inf
    %3075 = vmax.xlane.f32.xlu0 %v3074
    %v3076 = vpop.xlane.xlu0 %3075
    %v3077 = vsub.f32 %v3061, %v3067
    %v3078 = vsub.f32 %v3062, %v3070
    %v3079 = vsub.f32 %v3063, %v3073
    %v3080 = vsub.f32 %v3064, %v3076
    %v3081 = vmul.f32 %v3077, 1.442695
    %v3082 = vpow.pop %v3081
    %v3083 = vmul.f32 %v3078, 1.442695
    %v3084 = vpow.pop %v3083
    %v3085 = vmul.f32 %v3079, 1.442695
    %v3086 = vpow.pop %v3085
    %v3087 = vmul.f32 %v3080, 1.442695
    %v3088 = vpow.pop %v3087
    %v3089 = vsel %vm65, %v3082, 0.0
    %3090 = vadd.xlane.f32.xlu0 %v3089
    %v3091 = vpop.xlane.xlu0 %3090
    %v3092 = vsel %vm65, %v3084, 0.0
    %3093 = vadd.xlane.f32.xlu0 %v3092
    %v3094 = vpop.xlane.xlu0 %3093
    %v3095 = vsel %vm65, %v3086, 0.0
    %3096 = vadd.xlane.f32.xlu0 %v3095
    %v3097 = vpop.xlane.xlu0 %3096
    %v3098 = vsel %vm65, %v3088, 0.0
    %3099 = vadd.xlane.f32.xlu0 %v3098
    %v3100 = vpop.xlane.xlu0 %3099
    %v3101 = vrcp.pop %v3091
    %v3102 = vrcp.pop %v3094
    %v3103 = vrcp.pop %v3097
    %v3104 = vrcp.pop %v3100
    %v3105 = vmul.f32 %v3082, %v3101
    %v3106 = vmul.f32 %v3084, %v3102
    %v3107 = vmul.f32 %v3086, %v3103
    %v3108 = vmul.f32 %v3088, %v3104
    %v3109 = vpack.c.bf16 %v3106, %v3105
    %v3110 = vpack.c.bf16 %v3108, %v3107
    %3111 = vrot.lane.b32.xlu0 %v2900, 56
    %v3112 = vpop.permute.xlu0 %3111
    %3113 = vrot.lane.b32.xlu0 %v2901, 56
    %v3114 = vpop.permute.xlu0 %3113
    %v3118 = vsel %vm65, %v3109, 0
    %v3121 = vsel %vm65, %v3110, 0
    %3123 = vmatpush.bf16.msra.mxu0 0
    %3124 = vmatpush.bf16.msra.mxu0 0
    %3125 = vmatpush.bf16.msra.mxu0 0
    %3126 = vmatpush.bf16.msra.mxu0 0
    %3127 = vmatpush.bf16.msra.mxu0 0
    %3128 = vmatpush.bf16.msra.mxu0 0
    %3129 = vmatpush.bf16.msra.mxu0 %v3114
    %3130 = vmatpush.bf16.msra.mxu0 %v3112
    %3131 = vmatmul.bf16.gmra.mxu0 %v3118
    %v3132 = vpop.f32.mrf.mxu0
    %v3133 = vadd.f32 0.0, %v3132
    %v3134 = vpop.f32.mrf.mxu0
    %v3135 = vadd.f32 0.0, %v3134
    %3136 = vmatmul.bf16.gmra.mxu0 %v3121
    %v3137 = vpop.f32.mrf.mxu0
    %v3138 = vadd.f32 0.0, %v3137
    %v3139 = vpop.f32.mrf.mxu0
    %v3140 = vadd.f32 0.0, %v3139
    %3141 = vdwg.mxu0
    %v3142 = vpack.c.bf16 %v3135, %v3133
    %v3143 = vpack.c.bf16 %v3140, %v3138
    %v3145 = vsel %vm344, %v3142, 0
    %v3148 = vsel %vm344, %v3143, 0
    %3150 = vmatpush.bf16.msra.mxu0 0
    %3151 = vmatpush.bf16.msra.mxu0 0
    %3152 = vmatpush.bf16.msra.mxu0 0
    %3153 = vmatpush.bf16.msra.mxu0 0
    %3154 = vmatpush.bf16.msra.mxu0 0
    %3155 = vmatpush.bf16.msra.mxu0 0
    %3156 = vmatpush.bf16.msra.mxu0 0
    %3157 = vmatpush.bf16.msra.mxu0 %v2539
    %3158 = vmatmul.bf16.gmra.mxu0 %v3145
    %v3159 = vpop.f32.mrf.mxu0
    %v3160 = vadd.f32 0.0, %v3159
    %v3161 = vpop.f32.mrf.mxu0
    %v3162 = vadd.f32 0.0, %v3161
    %3163 = vmatmul.bf16.gmra.mxu0 %v3148
    %v3164 = vpop.f32.mrf.mxu0
    %v3165 = vadd.f32 0.0, %v3164
    %v3166 = vpop.f32.mrf.mxu0
    %v3167 = vadd.f32 0.0, %v3166
    %3168 = vdwg.mxu0
    %v3170 = vsel %vm344, %v3020, 0
    %v3173 = vsel %vm344, %v3021, 0
    %3175 = vmatpush.bf16.msra.mxu0 0
    %3176 = vmatpush.bf16.msra.mxu0 0
    %3177 = vmatpush.bf16.msra.mxu0 0
    %3178 = vmatpush.bf16.msra.mxu0 0
    %3179 = vmatpush.bf16.msra.mxu0 0
    %3180 = vmatpush.bf16.msra.mxu0 0
    %3181 = vmatpush.bf16.msra.mxu0 0
    %3182 = vmatpush.bf16.msra.mxu0 %v2567
    %3183 = vmatmul.bf16.gmra.mxu0 %v3170
    %v3184 = vpop.f32.mrf.mxu0
    %v3185 = vadd.f32 %v3160, %v3184
    %v3186 = vpop.f32.mrf.mxu0
    %v3187 = vadd.f32 %v3162, %v3186
    %3188 = vmatmul.bf16.gmra.mxu0 %v3173
    %v3189 = vpop.f32.mrf.mxu0
    %v3190 = vadd.f32 %v3165, %v3189
    %v3191 = vpop.f32.mrf.mxu0
    %v3192 = vadd.f32 %v3167, %v3191
    %3193 = vdwg.mxu0
    %3194 = vrot.lane.b32.xlu0 %v2900, 112
    %v3195 = vpop.permute.xlu0 %3194
    %3196 = vrot.lane.b32.xlu0 %v2901, 112
    %v3197 = vpop.permute.xlu0 %3196
    %3198 = vrot.lane.b32.xlu0 %v2900, 80
    %v3199 = vpop.permute.xlu0 %3198
    %3200 = vrot.lane.b32.xlu0 %v2901, 80
    %v3201 = vpop.permute.xlu0 %3200
    %v3203 = vsel %vm344, %v3195, 0
    %v3206 = vsel %vm344, %v3197, 0
    %v3209 = vsel %vm344, %v3199, 0
    %v3212 = vsel %vm344, %v3201, 0
    %3214 = vmatpush.bf16.xpose.msra.mxu0 0
    %3215 = vmatpush.bf16.xpose.msra.mxu0 0
    %3216 = vmatpush.bf16.xpose.msra.mxu0 0
    %3217 = vmatpush.bf16.xpose.msra.mxu0 0
    %3218 = vmatpush.bf16.xpose.msra.mxu0 0
    %3219 = vmatpush.bf16.xpose.msra.mxu0 0
    %3220 = vmatpush.bf16.xpose.msra.mxu0 %v3212
    %3221 = vmatpush.bf16.xpose.msra.mxu0 %v3209
    %3222 = vmatmul.bf16.gmra.mxu0 %v3203
    %v3223 = vpop.f32.mrf.mxu0
    %v3224 = vadd.f32 0.0, %v3223
    %v3225 = vpop.f32.mrf.mxu0
    %v3226 = vadd.f32 0.0, %v3225
    %3227 = vmatmul.bf16.gmra.mxu0 %v3206
    %v3228 = vpop.f32.mrf.mxu0
    %v3229 = vadd.f32 0.0, %v3228
    %v3230 = vpop.f32.mrf.mxu0
    %v3231 = vadd.f32 0.0, %v3230
    %3232 = vdwg.mxu0
    %v3233 = vmul.f32 %v3224, 0.35355338
    %v3234 = vmul.f32 %v3226, 0.35355338
    %v3235 = vmul.f32 %v3229, 0.35355338
    %v3236 = vmul.f32 %v3231, 0.35355338
    %v3237 = vsel %vm65, %v3233, -inf
    %3238 = vmax.xlane.f32.xlu0 %v3237
    %v3239 = vpop.xlane.xlu0 %3238
    %v3240 = vsel %vm65, %v3234, -inf
    %3241 = vmax.xlane.f32.xlu0 %v3240
    %v3242 = vpop.xlane.xlu0 %3241
    %v3243 = vsel %vm65, %v3235, -inf
    %3244 = vmax.xlane.f32.xlu0 %v3243
    %v3245 = vpop.xlane.xlu0 %3244
    %v3246 = vsel %vm65, %v3236, -inf
    %3247 = vmax.xlane.f32.xlu0 %v3246
    %v3248 = vpop.xlane.xlu0 %3247
    %v3249 = vsub.f32 %v3233, %v3239
    %v3250 = vsub.f32 %v3234, %v3242
    %v3251 = vsub.f32 %v3235, %v3245
    %v3252 = vsub.f32 %v3236, %v3248
    %v3253 = vmul.f32 %v3249, 1.442695
    %v3254 = vpow.pop %v3253
    %v3255 = vmul.f32 %v3250, 1.442695
    %v3256 = vpow.pop %v3255
    %v3257 = vmul.f32 %v3251, 1.442695
    %v3258 = vpow.pop %v3257
    %v3259 = vmul.f32 %v3252, 1.442695
    %v3260 = vpow.pop %v3259
    %v3261 = vsel %vm65, %v3254, 0.0
    %3262 = vadd.xlane.f32.xlu0 %v3261
    %v3263 = vpop.xlane.xlu0 %3262
    %v3264 = vsel %vm65, %v3256, 0.0
    %3265 = vadd.xlane.f32.xlu0 %v3264
    %v3266 = vpop.xlane.xlu0 %3265
    %v3267 = vsel %vm65, %v3258, 0.0
    %3268 = vadd.xlane.f32.xlu0 %v3267
    %v3269 = vpop.xlane.xlu0 %3268
    %v3270 = vsel %vm65, %v3260, 0.0
    %3271 = vadd.xlane.f32.xlu0 %v3270
    %v3272 = vpop.xlane.xlu0 %3271
    %v3273 = vrcp.pop %v3263
    %v3274 = vrcp.pop %v3266
    %v3275 = vrcp.pop %v3269
    %v3276 = vrcp.pop %v3272
    %v3277 = vmul.f32 %v3254, %v3273
    %v3278 = vmul.f32 %v3256, %v3274
    %v3279 = vmul.f32 %v3258, %v3275
    %v3280 = vmul.f32 %v3260, %v3276
    %v3281 = vpack.c.bf16 %v3278, %v3277
    %v3282 = vpack.c.bf16 %v3280, %v3279
    %3283 = vrot.lane.b32.xlu0 %v2900, 48
    %v3284 = vpop.permute.xlu0 %3283
    %3285 = vrot.lane.b32.xlu0 %v2901, 48
    %v3286 = vpop.permute.xlu0 %3285
    %v3290 = vsel %vm65, %v3281, 0
    %v3293 = vsel %vm65, %v3282, 0
    %3295 = vmatpush.bf16.msra.mxu0 0
    %3296 = vmatpush.bf16.msra.mxu0 0
    %3297 = vmatpush.bf16.msra.mxu0 0
    %3298 = vmatpush.bf16.msra.mxu0 0
    %3299 = vmatpush.bf16.msra.mxu0 0
    %3300 = vmatpush.bf16.msra.mxu0 0
    %3301 = vmatpush.bf16.msra.mxu0 %v3286
    %3302 = vmatpush.bf16.msra.mxu0 %v3284
    %3303 = vmatmul.bf16.gmra.mxu0 %v3290
    %v3304 = vpop.f32.mrf.mxu0
    %v3305 = vadd.f32 0.0, %v3304
    %v3306 = vpop.f32.mrf.mxu0
    %v3307 = vadd.f32 0.0, %v3306
    %3308 = vmatmul.bf16.gmra.mxu0 %v3293
    %v3309 = vpop.f32.mrf.mxu0
    %v3310 = vadd.f32 0.0, %v3309
    %v3311 = vpop.f32.mrf.mxu0
    %v3312 = vadd.f32 0.0, %v3311
    %3313 = vdwg.mxu0
    %v3314 = vpack.c.bf16 %v3307, %v3305
    %v3315 = vpack.c.bf16 %v3312, %v3310
    %v3317 = vsel %vm344, %v3314, 0
    %v3320 = vsel %vm344, %v3315, 0
    %3322 = vmatpush.bf16.msra.mxu0 0
    %3323 = vmatpush.bf16.msra.mxu0 0
    %3324 = vmatpush.bf16.msra.mxu0 0
    %3325 = vmatpush.bf16.msra.mxu0 0
    %3326 = vmatpush.bf16.msra.mxu0 0
    %3327 = vmatpush.bf16.msra.mxu0 0
    %3328 = vmatpush.bf16.msra.mxu0 0
    %3329 = vmatpush.bf16.msra.mxu0 %v2719
    %3330 = vmatmul.bf16.gmra.mxu0 %v3317
    %v3331 = vpop.f32.mrf.mxu0
    %v3332 = vadd.f32 0.0, %v3331
    %v3333 = vpop.f32.mrf.mxu0
    %v3334 = vadd.f32 0.0, %v3333
    %3335 = vmatmul.bf16.gmra.mxu0 %v3320
    %v3336 = vpop.f32.mrf.mxu0
    %v3337 = vadd.f32 0.0, %v3336
    %v3338 = vpop.f32.mrf.mxu0
    %v3339 = vadd.f32 0.0, %v3338
    %3340 = vdwg.mxu0
    %v3341 = vadd.f32 %v3185, %v3332
    %v3342 = vadd.f32 %v3187, %v3334
    %v3343 = vadd.f32 %v3190, %v3337
    %v3344 = vadd.f32 %v3192, %v3339
    %3345 = vrot.lane.b32.xlu0 %v2900, 104
    %v3346 = vpop.permute.xlu0 %3345
    %3347 = vrot.lane.b32.xlu0 %v2901, 104
    %v3348 = vpop.permute.xlu0 %3347
    %3349 = vrot.lane.b32.xlu0 %v2900, 72
    %v3350 = vpop.permute.xlu0 %3349
    %3351 = vrot.lane.b32.xlu0 %v2901, 72
    %v3352 = vpop.permute.xlu0 %3351
    %v3354 = vsel %vm344, %v3346, 0
    %v3357 = vsel %vm344, %v3348, 0
    %v3360 = vsel %vm344, %v3350, 0
    %v3363 = vsel %vm344, %v3352, 0
    %3365 = vmatpush.bf16.xpose.msra.mxu0 0
    %3366 = vmatpush.bf16.xpose.msra.mxu0 0
    %3367 = vmatpush.bf16.xpose.msra.mxu0 0
    %3368 = vmatpush.bf16.xpose.msra.mxu0 0
    %3369 = vmatpush.bf16.xpose.msra.mxu0 0
    %3370 = vmatpush.bf16.xpose.msra.mxu0 0
    %3371 = vmatpush.bf16.xpose.msra.mxu0 %v3363
    %3372 = vmatpush.bf16.xpose.msra.mxu0 %v3360
    %3373 = vmatmul.bf16.gmra.mxu0 %v3354
    %v3374 = vpop.f32.mrf.mxu0
    %v3375 = vadd.f32 0.0, %v3374
    %v3376 = vpop.f32.mrf.mxu0
    %v3377 = vadd.f32 0.0, %v3376
    %3378 = vmatmul.bf16.gmra.mxu0 %v3357
    %v3379 = vpop.f32.mrf.mxu0
    %v3380 = vadd.f32 0.0, %v3379
    %v3381 = vpop.f32.mrf.mxu0
    %v3382 = vadd.f32 0.0, %v3381
    %3383 = vdwg.mxu0
    %v3384 = vmul.f32 %v3375, 0.35355338
    %v3385 = vmul.f32 %v3377, 0.35355338
    %v3386 = vmul.f32 %v3380, 0.35355338
    %v3387 = vmul.f32 %v3382, 0.35355338
    %v3388 = vsel %vm65, %v3384, -inf
    %3389 = vmax.xlane.f32.xlu0 %v3388
    %v3390 = vpop.xlane.xlu0 %3389
    %v3391 = vsel %vm65, %v3385, -inf
    %3392 = vmax.xlane.f32.xlu0 %v3391
    %v3393 = vpop.xlane.xlu0 %3392
    %v3394 = vsel %vm65, %v3386, -inf
    %3395 = vmax.xlane.f32.xlu0 %v3394
    %v3396 = vpop.xlane.xlu0 %3395
    %v3397 = vsel %vm65, %v3387, -inf
    %3398 = vmax.xlane.f32.xlu0 %v3397
    %v3399 = vpop.xlane.xlu0 %3398
    %v3400 = vsub.f32 %v3384, %v3390
    %v3401 = vsub.f32 %v3385, %v3393
    %v3402 = vsub.f32 %v3386, %v3396
    %v3403 = vsub.f32 %v3387, %v3399
    %v3404 = vmul.f32 %v3400, 1.442695
    %v3405 = vpow.pop %v3404
    %v3406 = vmul.f32 %v3401, 1.442695
    %v3407 = vpow.pop %v3406
    %v3408 = vmul.f32 %v3402, 1.442695
    %v3409 = vpow.pop %v3408
    %v3410 = vmul.f32 %v3403, 1.442695
    %v3411 = vpow.pop %v3410
    %v3412 = vsel %vm65, %v3405, 0.0
    %3413 = vadd.xlane.f32.xlu0 %v3412
    %v3414 = vpop.xlane.xlu0 %3413
    %v3415 = vsel %vm65, %v3407, 0.0
    %3416 = vadd.xlane.f32.xlu0 %v3415
    %v3417 = vpop.xlane.xlu0 %3416
    %v3418 = vsel %vm65, %v3409, 0.0
    %3419 = vadd.xlane.f32.xlu0 %v3418
    %v3420 = vpop.xlane.xlu0 %3419
    %v3421 = vsel %vm65, %v3411, 0.0
    %3422 = vadd.xlane.f32.xlu0 %v3421
    %v3423 = vpop.xlane.xlu0 %3422
    %v3424 = vrcp.pop %v3414
    %v3425 = vrcp.pop %v3417
    %v3426 = vrcp.pop %v3420
    %v3427 = vrcp.pop %v3423
    %v3428 = vmul.f32 %v3405, %v3424
    %v3429 = vmul.f32 %v3407, %v3425
    %v3430 = vmul.f32 %v3409, %v3426
    %v3431 = vmul.f32 %v3411, %v3427
    %v3432 = vpack.c.bf16 %v3429, %v3428
    %v3433 = vpack.c.bf16 %v3431, %v3430
    %3434 = vrot.lane.b32.xlu0 %v2900, 40
    %v3435 = vpop.permute.xlu0 %3434
    %3436 = vrot.lane.b32.xlu0 %v2901, 40
    %v3437 = vpop.permute.xlu0 %3436
    %v3441 = vsel %vm65, %v3432, 0
    %v3444 = vsel %vm65, %v3433, 0
    %3446 = vmatpush.bf16.msra.mxu0 0
    %3447 = vmatpush.bf16.msra.mxu0 0
    %3448 = vmatpush.bf16.msra.mxu0 0
    %3449 = vmatpush.bf16.msra.mxu0 0
    %3450 = vmatpush.bf16.msra.mxu0 0
    %3451 = vmatpush.bf16.msra.mxu0 0
    %3452 = vmatpush.bf16.msra.mxu0 %v3437
    %3453 = vmatpush.bf16.msra.mxu0 %v3435
    %3454 = vmatmul.bf16.gmra.mxu0 %v3441
    %v3455 = vpop.f32.mrf.mxu0
    %v3456 = vadd.f32 0.0, %v3455
    %v3457 = vpop.f32.mrf.mxu0
    %v3458 = vadd.f32 0.0, %v3457
    %3459 = vmatmul.bf16.gmra.mxu0 %v3444
    %v3460 = vpop.f32.mrf.mxu0
    %v3461 = vadd.f32 0.0, %v3460
    %v3462 = vpop.f32.mrf.mxu0
    %v3463 = vadd.f32 0.0, %v3462
    %3464 = vdwg.mxu0
    %v3465 = vpack.c.bf16 %v3458, %v3456
    %v3466 = vpack.c.bf16 %v3463, %v3461
    %v3468 = vsel %vm344, %v3465, 0
    %v3471 = vsel %vm344, %v3466, 0
    %3473 = vmatpush.bf16.msra.mxu0 0
    %3474 = vmatpush.bf16.msra.mxu0 0
    %3475 = vmatpush.bf16.msra.mxu0 0
    %3476 = vmatpush.bf16.msra.mxu0 0
    %3477 = vmatpush.bf16.msra.mxu0 0
    %3478 = vmatpush.bf16.msra.mxu0 0
    %3479 = vmatpush.bf16.msra.mxu0 0
    %3480 = vmatpush.bf16.msra.mxu0 %v2875
    %3481 = vmatmul.bf16.gmra.mxu0 %v3468
    %v3482 = vpop.f32.mrf.mxu0
    %v3483 = vadd.f32 0.0, %v3482
    %v3484 = vpop.f32.mrf.mxu0
    %v3485 = vadd.f32 0.0, %v3484
    %3486 = vmatmul.bf16.gmra.mxu0 %v3471
    %v3487 = vpop.f32.mrf.mxu0
    %v3488 = vadd.f32 0.0, %v3487
    %v3489 = vpop.f32.mrf.mxu0
    %v3490 = vadd.f32 0.0, %v3489
    %3491 = vdwg.mxu0
    %v3492 = vadd.f32 %v3341, %v3483
    %v3493 = vadd.f32 %v3342, %v3485
    %v3494 = vadd.f32 %v3343, %v3488
    %v3495 = vadd.f32 %v3344, %v3490
    %s3496 = scalar_lea.vmem %s6, 1
    %v3497 = vld [vmem:[%s3496] sm:$0x1]
    %v3499 = vperm.slane %v3497, 0
    %v3501 = vadd.f32 %v2896, %v3499
    %v3502 = vadd.f32 %v2897, %v3499
    %v3503 = vadd.f32 %v2898, %v3499
    %v3504 = vadd.f32 %v2899, %v3499
    %v3505 = vadd.f32 %v3492, %v3499
    %v3506 = vadd.f32 %v3493, %v3499
    %v3507 = vadd.f32 %v3494, %v3499
    %v3508 = vadd.f32 %v3495, %v3499
    %v3509 = vadd.f32 %v2007, %v3501
    %v3510 = vadd.f32 %v2008, %v3502
    %v3511 = vadd.f32 %v2009, %v3503
    %v3512 = vadd.f32 %v2010, %v3504
    %v3513 = vadd.f32 %v2011, %v3505
    %v3514 = vadd.f32 %v2012, %v3506
    %v3515 = vadd.f32 %v2013, %v3507
    %v3516 = vadd.f32 %v2014, %v3508
    %s3517 = scalar_lea.vmem %s7, 1
    %v3518 = vld [vmem:[%s3517] sm:$0x1]
    %s3519 = scalar_lea.vmem %s8, 1
    %v3520 = vld [vmem:[%s3519] sm:$0x1]
    %v3521 = vsel %vm65, %v3509, 0.0
    %3522 = vadd.xlane.f32.xlu0 %v3521
    %v3523 = vpop.xlane.xlu0 %3522
    %v3524 = vsel %vm65, %v3510, 0.0
    %3525 = vadd.xlane.f32.xlu0 %v3524
    %v3526 = vpop.xlane.xlu0 %3525
    %v3527 = vsel %vm65, %v3511, 0.0
    %3528 = vadd.xlane.f32.xlu0 %v3527
    %v3529 = vpop.xlane.xlu0 %3528
    %v3530 = vsel %vm65, %v3512, 0.0
    %3531 = vadd.xlane.f32.xlu0 %v3530
    %v3532 = vpop.xlane.xlu0 %3531
    %v3533 = vsel %vm65, %v3513, 0.0
    %3534 = vadd.xlane.f32.xlu0 %v3533
    %v3535 = vpop.xlane.xlu0 %3534
    %v3536 = vsel %vm65, %v3514, 0.0
    %3537 = vadd.xlane.f32.xlu0 %v3536
    %v3538 = vpop.xlane.xlu0 %3537
    %v3539 = vsel %vm65, %v3515, 0.0
    %3540 = vadd.xlane.f32.xlu0 %v3539
    %v3541 = vpop.xlane.xlu0 %3540
    %v3542 = vsel %vm65, %v3516, 0.0
    %3543 = vadd.xlane.f32.xlu0 %v3542
    %v3544 = vpop.xlane.xlu0 %3543
    %v3545 = vmul.f32 %v3523, %v96
    %v3546 = vmul.f32 %v3526, %v96
    %v3547 = vmul.f32 %v3529, %v96
    %v3548 = vmul.f32 %v3532, %v96
    %v3549 = vmul.f32 %v3535, %v96
    %v3550 = vmul.f32 %v3538, %v96
    %v3551 = vmul.f32 %v3541, %v96
    %v3552 = vmul.f32 %v3544, %v96
    %v3553 = vsub.f32 %v3509, %v3545
    %v3554 = vsub.f32 %v3510, %v3546
    %v3555 = vsub.f32 %v3511, %v3547
    %v3556 = vsub.f32 %v3512, %v3548
    %v3557 = vsub.f32 %v3513, %v3549
    %v3558 = vsub.f32 %v3514, %v3550
    %v3559 = vsub.f32 %v3515, %v3551
    %v3560 = vsub.f32 %v3516, %v3552
    %v3561 = vmul.f32 %v3553, %v3553
    %v3562 = vmul.f32 %v3554, %v3554
    %v3563 = vmul.f32 %v3555, %v3555
    %v3564 = vmul.f32 %v3556, %v3556
    %v3565 = vmul.f32 %v3557, %v3557
    %v3566 = vmul.f32 %v3558, %v3558
    %v3567 = vmul.f32 %v3559, %v3559
    %v3568 = vmul.f32 %v3560, %v3560
    %v3569 = vsel %vm65, %v3561, 0.0
    %3570 = vadd.xlane.f32.xlu0 %v3569
    %v3571 = vpop.xlane.xlu0 %3570
    %v3572 = vsel %vm65, %v3562, 0.0
    %3573 = vadd.xlane.f32.xlu0 %v3572
    %v3574 = vpop.xlane.xlu0 %3573
    %v3575 = vsel %vm65, %v3563, 0.0
    %3576 = vadd.xlane.f32.xlu0 %v3575
    %v3577 = vpop.xlane.xlu0 %3576
    %v3578 = vsel %vm65, %v3564, 0.0
    %3579 = vadd.xlane.f32.xlu0 %v3578
    %v3580 = vpop.xlane.xlu0 %3579
    %v3581 = vsel %vm65, %v3565, 0.0
    %3582 = vadd.xlane.f32.xlu0 %v3581
    %v3583 = vpop.xlane.xlu0 %3582
    %v3584 = vsel %vm65, %v3566, 0.0
    %3585 = vadd.xlane.f32.xlu0 %v3584
    %v3586 = vpop.xlane.xlu0 %3585
    %v3587 = vsel %vm65, %v3567, 0.0
    %3588 = vadd.xlane.f32.xlu0 %v3587
    %v3589 = vpop.xlane.xlu0 %3588
    %v3590 = vsel %vm65, %v3568, 0.0
    %3591 = vadd.xlane.f32.xlu0 %v3590
    %v3592 = vpop.xlane.xlu0 %3591
    %v3593 = vmul.f32 %v3571, %v96
    %v3594 = vmul.f32 %v3574, %v96
    %v3595 = vmul.f32 %v3577, %v96
    %v3596 = vmul.f32 %v3580, %v96
    %v3597 = vmul.f32 %v3583, %v96
    %v3598 = vmul.f32 %v3586, %v96
    %v3599 = vmul.f32 %v3589, %v96
    %v3600 = vmul.f32 %v3592, %v96
    %v3601 = vadd.f32 %v3593, 1e-05
    %v3602 = vadd.f32 %v3594, 1e-05
    %v3603 = vadd.f32 %v3595, 1e-05
    %v3604 = vadd.f32 %v3596, 1e-05
    %v3605 = vadd.f32 %v3597, 1e-05
    %v3606 = vadd.f32 %v3598, 1e-05
    %v3607 = vadd.f32 %v3599, 1e-05
    %v3608 = vadd.f32 %v3600, 1e-05
    %v3609 = vrsqrt.pop %v3601
    %v3610 = vmul.f32 %v3609, %v3601
    %v3611 = vmul.f32 %v3610, %v3609
    %v3612 = vmul.f32 0.5, %v3611
    %v3613 = vsub.f32 1.5, %v3612
    %v3614 = vmul.f32 %v3609, %v3613
    %vm3615 = vweird.f32 %v3601
    %vm3616 = vweird.f32 %v3609
    %vm3617 = vmor %vm3615, %vm3616
    %v3618 = vsel %vm3617, %v3609, %v3614
    %v3619 = vrsqrt.pop %v3602
    %v3620 = vmul.f32 %v3619, %v3602
    %v3621 = vmul.f32 %v3620, %v3619
    %v3622 = vmul.f32 0.5, %v3621
    %v3623 = vsub.f32 1.5, %v3622
    %v3624 = vmul.f32 %v3619, %v3623
    %vm3625 = vweird.f32 %v3602
    %vm3626 = vweird.f32 %v3619
    %vm3627 = vmor %vm3625, %vm3626
    %v3628 = vsel %vm3627, %v3619, %v3624
    %v3629 = vrsqrt.pop %v3603
    %v3630 = vmul.f32 %v3629, %v3603
    %v3631 = vmul.f32 %v3630, %v3629
    %v3632 = vmul.f32 0.5, %v3631
    %v3633 = vsub.f32 1.5, %v3632
    %v3634 = vmul.f32 %v3629, %v3633
    %vm3635 = vweird.f32 %v3603
    %vm3636 = vweird.f32 %v3629
    %vm3637 = vmor %vm3635, %vm3636
    %v3638 = vsel %vm3637, %v3629, %v3634
    %v3639 = vrsqrt.pop %v3604
    %v3640 = vmul.f32 %v3639, %v3604
    %v3641 = vmul.f32 %v3640, %v3639
    %v3642 = vmul.f32 0.5, %v3641
    %v3643 = vsub.f32 1.5, %v3642
    %v3644 = vmul.f32 %v3639, %v3643
    %vm3645 = vweird.f32 %v3604
    %vm3646 = vweird.f32 %v3639
    %vm3647 = vmor %vm3645, %vm3646
    %v3648 = vsel %vm3647, %v3639, %v3644
    %v3649 = vrsqrt.pop %v3605
    %v3650 = vmul.f32 %v3649, %v3605
    %v3651 = vmul.f32 %v3650, %v3649
    %v3652 = vmul.f32 0.5, %v3651
    %v3653 = vsub.f32 1.5, %v3652
    %v3654 = vmul.f32 %v3649, %v3653
    %vm3655 = vweird.f32 %v3605
    %vm3656 = vweird.f32 %v3649
    %vm3657 = vmor %vm3655, %vm3656
    %v3658 = vsel %vm3657, %v3649, %v3654
    %v3659 = vrsqrt.pop %v3606
    %v3660 = vmul.f32 %v3659, %v3606
    %v3661 = vmul.f32 %v3660, %v3659
    %v3662 = vmul.f32 0.5, %v3661
    %v3663 = vsub.f32 1.5, %v3662
    %v3664 = vmul.f32 %v3659, %v3663
    %vm3665 = vweird.f32 %v3606
    %vm3666 = vweird.f32 %v3659
    %vm3667 = vmor %vm3665, %vm3666
    %v3668 = vsel %vm3667, %v3659, %v3664
    %v3669 = vrsqrt.pop %v3607
    %v3670 = vmul.f32 %v3669, %v3607
    %v3671 = vmul.f32 %v3670, %v3669
    %v3672 = vmul.f32 0.5, %v3671
    %v3673 = vsub.f32 1.5, %v3672
    %v3674 = vmul.f32 %v3669, %v3673
    %vm3675 = vweird.f32 %v3607
    %vm3676 = vweird.f32 %v3669
    %vm3677 = vmor %vm3675, %vm3676
    %v3678 = vsel %vm3677, %v3669, %v3674
    %v3679 = vrsqrt.pop %v3608
    %v3680 = vmul.f32 %v3679, %v3608
    %v3681 = vmul.f32 %v3680, %v3679
    %v3682 = vmul.f32 0.5, %v3681
    %v3683 = vsub.f32 1.5, %v3682
    %v3684 = vmul.f32 %v3679, %v3683
    %vm3685 = vweird.f32 %v3608
    %vm3686 = vweird.f32 %v3679
    %vm3687 = vmor %vm3685, %vm3686
    %v3688 = vsel %vm3687, %v3679, %v3684
    %v3689 = vmul.f32 %v3553, %v3618
    %v3690 = vmul.f32 %v3554, %v3628
    %v3691 = vmul.f32 %v3555, %v3638
    %v3692 = vmul.f32 %v3556, %v3648
    %v3693 = vmul.f32 %v3557, %v3658
    %v3694 = vmul.f32 %v3558, %v3668
    %v3695 = vmul.f32 %v3559, %v3678
    %v3696 = vmul.f32 %v3560, %v3688
    %v3698 = vperm.slane %v3518, 0
    %v3700 = vmul.f32 %v3689, %v3698
    %v3701 = vmul.f32 %v3690, %v3698
    %v3702 = vmul.f32 %v3691, %v3698
    %v3703 = vmul.f32 %v3692, %v3698
    %v3704 = vmul.f32 %v3693, %v3698
    %v3705 = vmul.f32 %v3694, %v3698
    %v3706 = vmul.f32 %v3695, %v3698
    %v3707 = vmul.f32 %v3696, %v3698
    %v3709 = vperm.slane %v3520, 0
    %v3711 = vadd.f32 %v3700, %v3709
    %v3712 = vadd.f32 %v3701, %v3709
    %v3713 = vadd.f32 %v3702, %v3709
    %v3714 = vadd.f32 %v3703, %v3709
    %v3715 = vadd.f32 %v3704, %v3709
    %v3716 = vadd.f32 %v3705, %v3709
    %v3717 = vadd.f32 %v3706, %v3709
    %v3718 = vadd.f32 %v3707, %v3709
    %v3719 = vpack.c.bf16 %v3712, %v3711
    %v3720 = vpack.c.bf16 %v3714, %v3713
    %v3721 = vpack.c.bf16 %v3716, %v3715
    %v3722 = vpack.c.bf16 %v3718, %v3717
    %s3723 = scalar_lea.vmem %s9, 16
    %v3724 = vld [vmem:[%s3723] sm:$0xf]
    %v3725 = vld [vmem:[%s3723 + $0x4] sm:$0xf]
    %v3726 = vld [vmem:[%s3723 + $0x8] sm:$0xf]
    %v3727 = vld [vmem:[%s3723 + $0xc] sm:$0xf]
    %s3728 = scalar_lea.vmem %s10, 1
    %v3729 = vld [vmem:[%s3728] sm:$0x1]
    %v3731 = vperm.slane %v3729, 0
    %v3737 = vunpack.c.l.b16 %v3724
    %v3738 = vunpack.c.l.b16 %v3725
    %v3739 = vunpack.c.l.b16 %v3726
    %v3740 = vunpack.c.l.b16 %v3727
    %v3741 = vpack.c.b16 %v3738, %v3737
    %v3742 = vpack.c.b16 %v3740, %v3739
    %v3746 = vsel %vm65, %v3719, 0
    %v3749 = vsel %vm65, %v3720, 0
    %v3752 = vsel %vm65, %v3721, 0
    %v3755 = vsel %vm65, %v3722, 0
    %3757 = vmatpush.bf16.msra.mxu0 0
    %3758 = vmatpush.bf16.msra.mxu0 0
    %3759 = vmatpush.bf16.msra.mxu0 0
    %3760 = vmatpush.bf16.msra.mxu0 0
    %3761 = vmatpush.bf16.msra.mxu0 0
    %3762 = vmatpush.bf16.msra.mxu0 0
    %3763 = vmatpush.bf16.msra.mxu0 %v3742
    %3764 = vmatpush.bf16.msra.mxu0 %v3741
    %3765 = vmatmul.bf16.gmra.mxu0 %v3746
    %v3766 = vpop.f32.mrf.mxu0
    %v3767 = vadd.f32 %v3731, %v3766
    %v3768 = vpop.f32.mrf.mxu0
    %v3769 = vadd.f32 %v3731, %v3768
    %3770 = vmatmul.bf16.gmra.mxu0 %v3749
    %v3771 = vpop.f32.mrf.mxu0
    %v3772 = vadd.f32 %v3731, %v3771
    %v3773 = vpop.f32.mrf.mxu0
    %v3774 = vadd.f32 %v3731, %v3773
    %3775 = vmatmul.bf16.gmra.mxu0 %v3752
    %v3776 = vpop.f32.mrf.mxu0
    %v3777 = vadd.f32 %v3731, %v3776
    %v3778 = vpop.f32.mrf.mxu0
    %v3779 = vadd.f32 %v3731, %v3778
    %3780 = vmatmul.bf16.gmra.mxu0 %v3755
    %v3781 = vpop.f32.mrf.mxu0
    %v3782 = vadd.f32 %v3731, %v3781
    %v3783 = vpop.f32.mrf.mxu0
    %v3784 = vadd.f32 %v3731, %v3783
    %3785 = vdwg.mxu0
    %v3786 = vmul.f32 %v3767, 0.5
    %v3787 = vmul.f32 %v3769, 0.5
    %v3788 = vmul.f32 %v3772, 0.5
    %v3789 = vmul.f32 %v3774, 0.5
    %v3790 = vmul.f32 %v3777, 0.5
    %v3791 = vmul.f32 %v3779, 0.5
    %v3792 = vmul.f32 %v3782, 0.5
    %v3793 = vmul.f32 %v3784, 0.5
    %v3794 = vmul.f32 %v3767, 0.044715
    %v3795 = vmul.f32 %v3769, 0.044715
    %v3796 = vmul.f32 %v3772, 0.044715
    %v3797 = vmul.f32 %v3774, 0.044715
    %v3798 = vmul.f32 %v3777, 0.044715
    %v3799 = vmul.f32 %v3779, 0.044715
    %v3800 = vmul.f32 %v3782, 0.044715
    %v3801 = vmul.f32 %v3784, 0.044715
    %v3802 = vmul.f32 %v3794, %v3767
    %v3803 = vmul.f32 %v3795, %v3769
    %v3804 = vmul.f32 %v3796, %v3772
    %v3805 = vmul.f32 %v3797, %v3774
    %v3806 = vmul.f32 %v3798, %v3777
    %v3807 = vmul.f32 %v3799, %v3779
    %v3808 = vmul.f32 %v3800, %v3782
    %v3809 = vmul.f32 %v3801, %v3784
    %v3810 = vmul.f32 %v3802, %v3767
    %v3811 = vmul.f32 %v3803, %v3769
    %v3812 = vmul.f32 %v3804, %v3772
    %v3813 = vmul.f32 %v3805, %v3774
    %v3814 = vmul.f32 %v3806, %v3777
    %v3815 = vmul.f32 %v3807, %v3779
    %v3816 = vmul.f32 %v3808, %v3782
    %v3817 = vmul.f32 %v3809, %v3784
    %v3818 = vadd.f32 %v3767, %v3810
    %v3819 = vadd.f32 %v3769, %v3811
    %v3820 = vadd.f32 %v3772, %v3812
    %v3821 = vadd.f32 %v3774, %v3813
    %v3822 = vadd.f32 %v3777, %v3814
    %v3823 = vadd.f32 %v3779, %v3815
    %v3824 = vadd.f32 %v3782, %v3816
    %v3825 = vadd.f32 %v3784, %v3817
    %v3826 = vmul.f32 %v3818, 0.7978846
    %v3827 = vmul.f32 %v3819, 0.7978846
    %v3828 = vmul.f32 %v3820, 0.7978846
    %v3829 = vmul.f32 %v3821, 0.7978846
    %v3830 = vmul.f32 %v3822, 0.7978846
    %v3831 = vmul.f32 %v3823, 0.7978846
    %v3832 = vmul.f32 %v3824, 0.7978846
    %v3833 = vmul.f32 %v3825, 0.7978846
    %v3834 = vtanh.pop %v3826
    %v3835 = vtanh.pop %v3827
    %v3836 = vtanh.pop %v3828
    %v3837 = vtanh.pop %v3829
    %v3838 = vtanh.pop %v3830
    %v3839 = vtanh.pop %v3831
    %v3840 = vtanh.pop %v3832
    %v3841 = vtanh.pop %v3833
    %v3842 = vadd.f32 %v3834, 1.0
    %v3843 = vadd.f32 %v3835, 1.0
    %v3844 = vadd.f32 %v3836, 1.0
    %v3845 = vadd.f32 %v3837, 1.0
    %v3846 = vadd.f32 %v3838, 1.0
    %v3847 = vadd.f32 %v3839, 1.0
    %v3848 = vadd.f32 %v3840, 1.0
    %v3849 = vadd.f32 %v3841, 1.0
    %v3850 = vmul.f32 %v3786, %v3842
    %v3851 = vmul.f32 %v3787, %v3843
    %v3852 = vmul.f32 %v3788, %v3844
    %v3853 = vmul.f32 %v3789, %v3845
    %v3854 = vmul.f32 %v3790, %v3846
    %v3855 = vmul.f32 %v3791, %v3847
    %v3856 = vmul.f32 %v3792, %v3848
    %v3857 = vmul.f32 %v3793, %v3849
    %v3858 = vpack.c.bf16 %v3851, %v3850
    %v3859 = vpack.c.bf16 %v3853, %v3852
    %v3860 = vpack.c.bf16 %v3855, %v3854
    %v3861 = vpack.c.bf16 %v3857, %v3856
    %s3862 = scalar_lea.vmem %s11, 64
    %v3863 = vld [vmem:[%s3862] sm:$0xf]
    %v3864 = vld [vmem:[%s3862 + $0x4] sm:$0xf]
    %v3865 = vld [vmem:[%s3862 + $0x8] sm:$0xf]
    %v3866 = vld [vmem:[%s3862 + $0xc] sm:$0xf]
    %v3867 = vld [vmem:[%s3862 + $0x10] sm:$0xf]
    %v3868 = vld [vmem:[%s3862 + $0x14] sm:$0xf]
    %v3869 = vld [vmem:[%s3862 + $0x18] sm:$0xf]
    %v3870 = vld [vmem:[%s3862 + $0x1c] sm:$0xf]
    %v3871 = vld [vmem:[%s3862 + $0x20] sm:$0xf]
    %v3872 = vld [vmem:[%s3862 + $0x24] sm:$0xf]
    %v3873 = vld [vmem:[%s3862 + $0x28] sm:$0xf]
    %v3874 = vld [vmem:[%s3862 + $0x2c] sm:$0xf]
    %v3875 = vld [vmem:[%s3862 + $0x30] sm:$0xf]
    %v3876 = vld [vmem:[%s3862 + $0x34] sm:$0xf]
    %v3877 = vld [vmem:[%s3862 + $0x38] sm:$0xf]
    %v3878 = vld [vmem:[%s3862 + $0x3c] sm:$0xf]
    %s3879 = scalar_lea.vmem %s12, 1
    %v3880 = vld [vmem:[%s3879] sm:$0x1]
    %v3882 = vperm.slane %v3880, 0
    %v3900 = vunpack.c.l.b16 %v3863
    %v3901 = vunpack.c.l.b16 %v3864
    %v3902 = vunpack.c.l.b16 %v3865
    %v3903 = vunpack.c.l.b16 %v3866
    %v3904 = vunpack.c.l.b16 %v3867
    %v3905 = vunpack.c.l.b16 %v3868
    %v3906 = vunpack.c.l.b16 %v3869
    %v3907 = vunpack.c.l.b16 %v3870
    %v3908 = vunpack.c.l.b16 %v3871
    %v3909 = vunpack.c.l.b16 %v3872
    %v3910 = vunpack.c.l.b16 %v3873
    %v3911 = vunpack.c.l.b16 %v3874
    %v3912 = vunpack.c.l.b16 %v3875
    %v3913 = vunpack.c.l.b16 %v3876
    %v3914 = vunpack.c.l.b16 %v3877
    %v3915 = vunpack.c.l.b16 %v3878
    %v3916 = vpack.c.b16 %v3901, %v3900
    %v3917 = vpack.c.b16 %v3903, %v3902
    %v3918 = vpack.c.b16 %v3905, %v3904
    %v3919 = vpack.c.b16 %v3907, %v3906
    %v3920 = vpack.c.b16 %v3909, %v3908
    %v3921 = vpack.c.b16 %v3911, %v3910
    %v3922 = vpack.c.b16 %v3913, %v3912
    %v3923 = vpack.c.b16 %v3915, %v3914
    %3932 = vmatpush.bf16.msra.mxu0 %v3923
    %3933 = vmatpush.bf16.msra.mxu0 %v3922
    %3934 = vmatpush.bf16.msra.mxu0 %v3921
    %3935 = vmatpush.bf16.msra.mxu0 %v3920
    %3936 = vmatpush.bf16.msra.mxu0 %v3919
    %3937 = vmatpush.bf16.msra.mxu0 %v3918
    %3938 = vmatpush.bf16.msra.mxu0 %v3917
    %3939 = vmatpush.bf16.msra.mxu0 %v3916
    %3940 = vmatmul.bf16.gmra.mxu0 %v3858
    %v3941 = vpop.f32.mrf.mxu0
    %v3942 = vpop.f32.mrf.mxu0
    %3943 = vmatmul.bf16.gmra.mxu0 %v3859
    %v3944 = vpop.f32.mrf.mxu0
    %v3945 = vadd.f32 %v3882, %v3944
    %v3946 = vpop.f32.mrf.mxu0
    %v3947 = vadd.f32 %v3882, %v3946
    %3948 = vmatmul.bf16.gmra.mxu0 %v3860
    %v3949 = vpop.f32.mrf.mxu0
    %v3950 = vpop.f32.mrf.mxu0
    %3951 = vmatmul.bf16.gmra.mxu0 %v3861
    %v3952 = vpop.f32.mrf.mxu0
    %v3953 = vadd.f32 %v3882, %v3952
    %v3954 = vpop.f32.mrf.mxu0
    %v3955 = vadd.f32 %v3882, %v3954
    %3956 = vdwg.mxu0
    %v3957 = vadd.f32 %v3511, %v3945
    %v3958 = vadd.f32 %v3512, %v3947
    %v3959 = vadd.f32 %v3515, %v3953
    %v3960 = vadd.f32 %v3516, %v3955
    %v3961 = vld [vmem:[%s13] sm:$0x1]
    %v3962 = vld [vmem:[%s14] sm:$0x1]
    %v3963 = vsel %vm65, %v3957, 0.0
    %3964 = vadd.xlane.f32.xlu0 %v3963
    %v3965 = vpop.xlane.xlu0 %3964
    %v3966 = vsel %vm65, %v3958, 0.0
    %3967 = vadd.xlane.f32.xlu0 %v3966
    %v3968 = vpop.xlane.xlu0 %3967
    %v3969 = vsel %vm65, %v3959, 0.0
    %3970 = vadd.xlane.f32.xlu0 %v3969
    %v3971 = vpop.xlane.xlu0 %3970
    %v3972 = vsel %vm65, %v3960, 0.0
    %3973 = vadd.xlane.f32.xlu0 %v3972
    %v3974 = vpop.xlane.xlu0 %3973
    %v3975 = vmul.f32 %v3965, %v96
    %v3976 = vmul.f32 %v3968, %v96
    %v3977 = vmul.f32 %v3971, %v96
    %v3978 = vmul.f32 %v3974, %v96
    %v3979 = vsub.f32 %v3957, %v3975
    %v3980 = vsub.f32 %v3958, %v3976
    %v3981 = vsub.f32 %v3959, %v3977
    %v3982 = vsub.f32 %v3960, %v3978
    %v3983 = vmul.f32 %v3979, %v3979
    %v3984 = vmul.f32 %v3980, %v3980
    %v3985 = vmul.f32 %v3981, %v3981
    %v3986 = vmul.f32 %v3982, %v3982
    %v3987 = vsel %vm65, %v3983, 0.0
    %3988 = vadd.xlane.f32.xlu0 %v3987
    %v3989 = vpop.xlane.xlu0 %3988
    %v3990 = vsel %vm65, %v3984, 0.0
    %3991 = vadd.xlane.f32.xlu0 %v3990
    %v3992 = vpop.xlane.xlu0 %3991
    %v3993 = vsel %vm65, %v3985, 0.0
    %3994 = vadd.xlane.f32.xlu0 %v3993
    %v3995 = vpop.xlane.xlu0 %3994
    %v3996 = vsel %vm65, %v3986, 0.0
    %3997 = vadd.xlane.f32.xlu0 %v3996
    %v3998 = vpop.xlane.xlu0 %3997
    %v3999 = vmul.f32 %v3989, %v96
    %v4000 = vmul.f32 %v3992, %v96
    %v4001 = vmul.f32 %v3995, %v96
    %v4002 = vmul.f32 %v3998, %v96
    %v4003 = vadd.f32 %v3999, 1e-05
    %v4004 = vadd.f32 %v4000, 1e-05
    %v4005 = vadd.f32 %v4001, 1e-05
    %v4006 = vadd.f32 %v4002, 1e-05
    %v4007 = vrsqrt.pop %v4003
    %v4008 = vmul.f32 %v4007, %v4003
    %v4009 = vmul.f32 %v4008, %v4007
    %v4010 = vmul.f32 0.5, %v4009
    %v4011 = vsub.f32 1.5, %v4010
    %v4012 = vmul.f32 %v4007, %v4011
    %vm4013 = vweird.f32 %v4003
    %vm4014 = vweird.f32 %v4007
    %vm4015 = vmor %vm4013, %vm4014
    %v4016 = vsel %vm4015, %v4007, %v4012
    %v4017 = vrsqrt.pop %v4004
    %v4018 = vmul.f32 %v4017, %v4004
    %v4019 = vmul.f32 %v4018, %v4017
    %v4020 = vmul.f32 0.5, %v4019
    %v4021 = vsub.f32 1.5, %v4020
    %v4022 = vmul.f32 %v4017, %v4021
    %vm4023 = vweird.f32 %v4004
    %vm4024 = vweird.f32 %v4017
    %vm4025 = vmor %vm4023, %vm4024
    %v4026 = vsel %vm4025, %v4017, %v4022
    %v4027 = vrsqrt.pop %v4005
    %v4028 = vmul.f32 %v4027, %v4005
    %v4029 = vmul.f32 %v4028, %v4027
    %v4030 = vmul.f32 0.5, %v4029
    %v4031 = vsub.f32 1.5, %v4030
    %v4032 = vmul.f32 %v4027, %v4031
    %vm4033 = vweird.f32 %v4005
    %vm4034 = vweird.f32 %v4027
    %vm4035 = vmor %vm4033, %vm4034
    %v4036 = vsel %vm4035, %v4027, %v4032
    %v4037 = vrsqrt.pop %v4006
    %v4038 = vmul.f32 %v4037, %v4006
    %v4039 = vmul.f32 %v4038, %v4037
    %v4040 = vmul.f32 0.5, %v4039
    %v4041 = vsub.f32 1.5, %v4040
    %v4042 = vmul.f32 %v4037, %v4041
    %vm4043 = vweird.f32 %v4006
    %vm4044 = vweird.f32 %v4037
    %vm4045 = vmor %vm4043, %vm4044
    %v4046 = vsel %vm4045, %v4037, %v4042
    %v4047 = vmul.f32 %v3979, %v4016
    %v4048 = vmul.f32 %v3980, %v4026
    %v4049 = vmul.f32 %v3981, %v4036
    %v4050 = vmul.f32 %v3982, %v4046
    %v4052 = vperm.slane %v3961, 0
    %v4054 = vmul.f32 %v4047, %v4052
    %v4055 = vmul.f32 %v4048, %v4052
    %v4056 = vmul.f32 %v4049, %v4052
    %v4057 = vmul.f32 %v4050, %v4052
    %v4059 = vperm.slane %v3962, 0
    %v4061 = vadd.f32 %v4054, %v4059
    %v4062 = vadd.f32 %v4055, %v4059
    %v4063 = vadd.f32 %v4056, %v4059
    %v4064 = vadd.f32 %v4057, %v4059
    %v4065 = vpack.c.bf16 %v4062, %v4061
    %v4066 = vpack.c.bf16 %v4064, %v4063
    %v4067 = vld [vmem:[%s15] sm:$0xf]
    %v4068 = vld [vmem:[%s15 + $0x4] sm:$0xf]
    %v4069 = vld [vmem:[%s15 + $0x8] sm:$0xf]
    %v4070 = vld [vmem:[%s15 + $0xc] sm:$0xf]
    %v4075 = vunpack.c.l.b16 %v4067
    %v4076 = vunpack.c.l.b16 %v4068
    %v4077 = vunpack.c.l.b16 %v4069
    %v4078 = vunpack.c.l.b16 %v4070
    %v4079 = vpack.c.b16 %v4076, %v4075
    %v4080 = vpack.c.b16 %v4078, %v4077
    %v4084 = vsel %vm65, %v4065, 0
    %v4087 = vsel %vm65, %v4066, 0
    %4089 = vmatpush.bf16.msra.mxu0 0
    %4090 = vmatpush.bf16.msra.mxu0 0
    %4091 = vmatpush.bf16.msra.mxu0 0
    %4092 = vmatpush.bf16.msra.mxu0 0
    %4093 = vmatpush.bf16.msra.mxu0 0
    %4094 = vmatpush.bf16.msra.mxu0 0
    %4095 = vmatpush.bf16.msra.mxu0 %v4080
    %4096 = vmatpush.bf16.msra.mxu0 %v4079
    %4097 = vmatmul.bf16.gmra.mxu0 %v4084
    %v4098 = vpop.f32.mrf.mxu0
    %v4099 = vadd.f32 0.0, %v4098
    %v4100 = vpop.f32.mrf.mxu0
    %v4101 = vadd.f32 0.0, %v4100
    %4102 = vmatmul.bf16.gmra.mxu0 %v4087
    %v4103 = vpop.f32.mrf.mxu0
    %v4104 = vadd.f32 0.0, %v4103
    %v4105 = vpop.f32.mrf.mxu0
    %v4106 = vadd.f32 0.0, %v4105
    %4107 = vdwg.mxu0
    %4108 = vst [vmem:[#allocation2] sm:$0xff] %v4099
    %4109 = vst [vmem:[#allocation2 + $0x8] sm:$0xff] %v4101
    %4110 = vst [vmem:[#allocation2 + $0x10] sm:$0xff] %v4104
    %4111 = vst [vmem:[#allocation2 + $0x18] sm:$0xff] %v4106
    // Predicated region
    $region66: #{tpu_custom_call.1} parent=1 // pred_check
      _
    $region67: #{tpu_custom_call.1} parent=1 // pred_check_branch
      %4113 = sbr.rel (0) target = $region69
    $region68: #{tpu_custom_call.1} parent=1 // pred_region
      %4115 = vsyncadd [#allocation3], 0
      %s4116 = sshll.u32 [#allocation2], 4
      %s4117 = int_to_ptr.vmem [resolvable:$true] %s4116
      %s4118 = sshll.u32 %s16, 4
      %s4119 = int_to_ptr.hbm [resolvable:$true] %s4118
      %4124 = dma.vmem_to_hbm [thread:$0]  %s4117, 512, %s4119, [#allocation3], 128, 128, 8
    $region69: #{tpu_custom_call.1} parent=1 // pred_fallthru
      _
    // Predicated region
    $region70: #{tpu_custom_call.1} parent=1 // pred_check
      _
    $region71: #{tpu_custom_call.1} parent=1 // pred_check_branch
      %4126 = sbr.rel (0) target = $region73
    $region72: #{tpu_custom_call.1} parent=1 // pred_region
      %4128 = dma.done [#allocation3], 512
    $region73: #{tpu_custom_call.1} parent=1 // pred_fallthru
      _
    %4129 = vsyncpa [#allocation3], 1

</llo_original>
